<compile_context>
chip_gen: v6e
topology: v6e:2x2x1
jax: 0.10.0
libtpu: 0.0.40
codegen_flags: <defaults>
</compile_context>

<pallas_src>
import functools
import math

import jax
import jax.numpy as jnp
from jax.experimental import pallas as pl
from jax.experimental.pallas import tpu as pltpu

EPS = 1e-5  # torch.nn.LayerNorm default


def _layer_norm(h, g, b):
    mu = jnp.mean(h, axis=-1, keepdims=True)
    var = jnp.mean(jnp.square(h - mu), axis=-1, keepdims=True)
    return (h - mu) * jax.lax.rsqrt(var + EPS) * g + b


# -----------------------------------------------------------------------------
# Single fused kernel: one grid step == one batch element, everything in VMEM.
# -----------------------------------------------------------------------------
def _fused_forward_kernel(
        x_ref, td_ref,
        emb_wqkv_ref, emb_bqkv_ref, ln_g_ref, ln_b_ref,
        mha_wqkv_ref, mha_bqkv_ref, mha_wo_ref, mha_bo_ref,
        ln1_g_ref, ln1_b_ref, w1_ref, bf1_ref, w2_ref, bf2_ref,
        ln2_g_ref, ln2_b_ref, wf_ref, bf_ref,
        logp_ref, attn_ref,
        *, n_head, d_k, num_emb_layers, n_mha_layers):
    P = x_ref.shape[1]
    E = x_ref.shape[3]

    # 1) adaptive_max_pool1d over the words axis  -> (P, E)
    pooled = jnp.max(x_ref[...], axis=2)[0]
    td = td_ref[0]

    g = ln_g_ref[...]    # shared LayerNorm scale/shift (matches reference)
    be = ln_b_ref[...]

    # 2) embedding stack: q/k/v branches batched as one (3, P, E) slab;
    #    one batched matmul + one LayerNorm pass per embedding layer.
    qkv = jnp.broadcast_to(pooled[None], (3, P, E))
    for i in range(num_emb_layers):            # static unrolled loop
        h = jnp.einsum('spe,sef->spf', qkv, emb_wqkv_ref[i],
                       preferred_element_type=jnp.float32) + emb_bqkv_ref[i]
        qkv = _layer_norm(h, g, be)
    qkv = qkv + td                             # time_delay added to q, k and v

    scale = 1.0 / math.sqrt(d_k)

    # 3) transformer encoder stack (post-norm MHA + position-wise FFN)
    out = qkv[0]
    for l in range(n_mha_layers):              # static unrolled loop
        # merged q/k/v projection over all heads: (3,P,E) @ (3,E,H*dk)
        proj = jnp.einsum('spe,sef->spf', qkv, mha_wqkv_ref[l],
                          preferred_element_type=jnp.float32) + mha_bqkv_ref[l]

        def heads(t):                          # (P, H*dk) -> (H, P, dk)
            return jnp.stack(
                [t[:, h * d_k:(h + 1) * d_k] for h in range(n_head)], axis=0)

        Qh = heads(proj[0])
        Kh = heads(proj[1])
        Vh = heads(proj[2])

        # scores + softmax for all heads at once
        s = jnp.einsum('hpd,hqd->hpq', Qh, Kh,
                       preferred_element_type=jnp.float32) * scale   # (H,P,P)
        s = s - jnp.max(s, axis=-1, keepdims=True)
        e = jnp.exp(s)
        a = e * pl.reciprocal(jnp.sum(e, axis=-1, keepdims=True), approx=True)
        attn_ref[0, l] = a                     # single contiguous store per layer

        ctx = jnp.einsum('hpq,hqd->hpd', a, Vh,
                         preferred_element_type=jnp.float32)          # (H,P,dk)
        ctx_flat = jnp.concatenate(
            [ctx[h] for h in range(n_head)], axis=-1)                 # (P, H*dk)
        o = jnp.dot(ctx_flat, mha_wo_ref[l],
                    preferred_element_type=jnp.float32) + mha_bo_ref[l]

        # residual (query side) + LN, then FFN + residual + LN
        h1 = _layer_norm(o + qkv[0], ln1_g_ref[l], ln1_b_ref[l])
        f = jnp.maximum(
            jnp.dot(h1, w1_ref[l], preferred_element_type=jnp.float32)
            + bf1_ref[l], 0.0)
        f = jnp.dot(f, w2_ref[l], preferred_element_type=jnp.float32) + bf2_ref[l]
        out = _layer_norm(f + h1, ln2_g_ref[l], ln2_b_ref[l])
        qkv = jnp.broadcast_to(out[None], (3, P, E))   # next layer: q = k = v

    # 4) max-pool over posts + final Linear + LogSoftmax(dim=1)
    pooled2 = jnp.max(out, axis=0, keepdims=True)                     # (1, E)
    logits = jnp.dot(pooled2, wf_ref[...],
                     preferred_element_type=jnp.float32) + bf_ref[...]
    z = logits - jnp.max(logits, axis=-1, keepdims=True)
    logp_ref[0] = z - jnp.log(jnp.sum(jnp.exp(z), axis=-1, keepdims=True))


# -----------------------------------------------------------------------------
# Wrapper: one pallas_call for the whole forward pass.
# -----------------------------------------------------------------------------
def transformer_baseline_forward(X, time_delay, params, n_head,
                                 num_emb_layers, n_mha_layers):
    B, P, W, E = X.shape
    C = params["final_w"].shape[-1]
    d_k = E // n_head

    kern = functools.partial(_fused_forward_kernel, n_head=n_head, d_k=d_k,
                             num_emb_layers=num_emb_layers,
                             n_mha_layers=n_mha_layers)

    vmem = pl.BlockSpec(memory_space=pltpu.MemorySpace.VMEM)   # weights: resident
    x_spec = pl.BlockSpec((1, P, W, E), lambda b: (b, 0, 0, 0))
    td_spec = pl.BlockSpec((1, P, E), lambda b: (b, 0, 0))
    logp_spec = pl.BlockSpec((1, 1, C), lambda b: (b, 0, 0))
    attn_spec = pl.BlockSpec((1, n_mha_layers, n_head, P, P),
                             lambda b: (b, 0, 0, 0, 0))

    logp, attn = pl.pallas_call(
        kern,
        out_shape=(jax.ShapeDtypeStruct((B, 1, C), jnp.float32),
                   jax.ShapeDtypeStruct((B, n_mha_layers, n_head, P, P),
                                        jnp.float32)),
        grid=(B,),
        in_specs=[x_spec, td_spec] + [vmem] * 18,
        out_specs=(logp_spec, attn_spec),
        compiler_params=pltpu.CompilerParams(dimension_semantics=("parallel",)),
    )(X, time_delay,
      params["emb_wqkv"], params["emb_bqkv"], params["ln_g"], params["ln_b"],
      params["mha_wqkv"], params["mha_bqkv"], params["mha_wo"], params["mha_bo"],
      params["ln1_g"], params["ln1_b"], params["w1"], params["bf1"],
      params["w2"], params["bf2"], params["ln2_g"], params["ln2_b"],
      params["final_w"], params["final_b"])

    attn_dict = {f"layer_{i}": attn[:, i] for i in range(n_mha_layers)}
    return logp[:, 0, :], attn_dict


# -----------------------------------------------------------------------------
# Deterministic parameter construction (xavier-normal weights, zero biases,
# unit layer-norm scale) — synthetic, no checkpoint loading.
# -----------------------------------------------------------------------------
def init_params(key, E, H, L_emb, L_mha, d_ff, C):
    dk = E // H
    keys = iter(jax.random.split(key, 64))

    def xav(k, fan_in, fan_out, shape):
        std = math.sqrt(2.0 / (fan_in + fan_out))
        return jax.random.normal(k, shape, jnp.float32) * std

    return {
        # embedding stage: q/k/v weights stacked (layer, branch, in, out)
        "emb_wqkv": jnp.stack([
            jnp.stack([xav(next(keys), E, E, (E, E)) for _ in range(3)])
            for _ in range(L_emb)]),                       # (L_emb, 3, E, E)
        "emb_bqkv": jnp.zeros((L_emb, 3, 1, E), jnp.float32),
        "ln_g": jnp.ones((1, E), jnp.float32),
        "ln_b": jnp.zeros((1, E), jnp.float32),
        # encoder stack: per-layer merged q/k/v (all heads packed into out dim)
        "mha_wqkv": jnp.stack([
            jnp.stack([xav(next(keys), E, H * dk, (E, H * dk)) for _ in range(3)])
            for _ in range(L_mha)]),                       # (L_mha, 3, E, H*dk)
        "mha_bqkv": jnp.zeros((L_mha, 3, 1, H * dk), jnp.float32),
        "mha_wo": jnp.stack([xav(next(keys), H * dk, E, (H * dk, E))
                             for _ in range(L_mha)]),      # (L_mha, H*dk, E)
        "mha_bo": jnp.zeros((L_mha, 1, E), jnp.float32),
        "ln1_g": jnp.ones((L_mha, 1, E), jnp.float32),
        "ln1_b": jnp.zeros((L_mha, 1, E), jnp.float32),
        "w1": jnp.stack([xav(next(keys), E, d_ff, (E, d_ff))
                         for _ in range(L_mha)]),
        "bf1": jnp.zeros((L_mha, 1, d_ff), jnp.float32),
        "w2": jnp.stack([xav(next(keys), d_ff, E, (d_ff, E))
                         for _ in range(L_mha)]),
        "bf2": jnp.zeros((L_mha, 1, E), jnp.float32),
        "ln2_g": jnp.ones((L_mha, 1, E), jnp.float32),
        "ln2_b": jnp.zeros((L_mha, 1, E), jnp.float32),
        "final_w": xav(next(keys), E, C, (E, C)),
        "final_b": jnp.zeros((1, C), jnp.float32),
    }


if __name__ == "__main__":
    # config: emb_dim = d_model = 32, n_head = 4, num_emb_layers = 2,
    #         n_mha_layers = 2, d_ff = 64, num_classes = 4
    B, P, W, E = 2, 8, 6, 32
    H, L_emb, L_mha, d_ff, C = 4, 2, 2, 64, 4

    key = jax.random.PRNGKey(0)
    kx, kt, kp = jax.random.split(key, 3)
    X = jax.random.normal(kx, (B, P, W, E), jnp.float32)
    time_delay = 0.1 * jax.random.normal(kt, (B, P, E), jnp.float32)
    params = init_params(kp, E, H, L_emb, L_mha, d_ff, C)

    fwd = jax.jit(functools.partial(transformer_baseline_forward,
                                    n_head=H, num_emb_layers=L_emb,
                                    n_mha_layers=L_mha))
    out, attn_dict = fwd(X, time_delay, params)
    jax.block_until_ready(out)
    for a in attn_dict.values():
        jax.block_until_ready(a)

    assert out.shape == (B, C)
    assert all(a.shape == (B, H, P, P) for a in attn_dict.values())
    print("KERNEL_OK")
</pallas_src>

<mosaic_0001>
module attributes {stable_mosaic.version = 11 : i64} {
  func.func @_fused_forward_kernel(%arg0: i32, %arg1: memref<1x8x6x32xf32, #tpu.memory_space<vmem>>, %arg2: memref<1x8x32xf32, #tpu.memory_space<vmem>>, %arg3: memref<2x3x32x32xf32, #tpu.memory_space<vmem>>, %arg4: memref<2x3x1x32xf32, #tpu.memory_space<vmem>>, %arg5: memref<1x32xf32, #tpu.memory_space<vmem>>, %arg6: memref<1x32xf32, #tpu.memory_space<vmem>>, %arg7: memref<2x3x32x32xf32, #tpu.memory_space<vmem>>, %arg8: memref<2x3x1x32xf32, #tpu.memory_space<vmem>>, %arg9: memref<2x32x32xf32, #tpu.memory_space<vmem>>, %arg10: memref<2x1x32xf32, #tpu.memory_space<vmem>>, %arg11: memref<2x1x32xf32, #tpu.memory_space<vmem>>, %arg12: memref<2x1x32xf32, #tpu.memory_space<vmem>>, %arg13: memref<2x32x64xf32, #tpu.memory_space<vmem>>, %arg14: memref<2x1x64xf32, #tpu.memory_space<vmem>>, %arg15: memref<2x64x32xf32, #tpu.memory_space<vmem>>, %arg16: memref<2x1x32xf32, #tpu.memory_space<vmem>>, %arg17: memref<2x1x32xf32, #tpu.memory_space<vmem>>, %arg18: memref<2x1x32xf32, #tpu.memory_space<vmem>>, %arg19: memref<32x4xf32, #tpu.memory_space<vmem>>, %arg20: memref<1x4xf32, #tpu.memory_space<vmem>>, %arg21: memref<1x1x4xf32, #tpu.memory_space<vmem>>, %arg22: memref<1x2x4x8x8xf32, #tpu.memory_space<vmem>>) attributes {dimension_semantics = [#tpu.dimension_semantics<parallel>], iteration_bounds = array<i64: 2>, scalar_prefetch = 0 : i64, scratch_operands = 0 : i64, tpu.core_type = #tpu.core_type<tc>, window_params = [{transform_indices = @transform_0, window_bounds = array<i64: 1, 8, 6, 32>}, {transform_indices = @transform_1, window_bounds = array<i64: 1, 8, 32>}, {pipeline_mode = #tpu.pipeline_mode<synchronous>, transform_indices = @transform_2, window_bounds = array<i64: 2, 3, 32, 32>}, {pipeline_mode = #tpu.pipeline_mode<synchronous>, transform_indices = @transform_3, window_bounds = array<i64: 2, 3, 1, 32>}, {pipeline_mode = #tpu.pipeline_mode<synchronous>, transform_indices = @transform_4, window_bounds = array<i64: 1, 32>}, {pipeline_mode = #tpu.pipeline_mode<synchronous>, transform_indices = @transform_5, window_bounds = array<i64: 1, 32>}, {pipeline_mode = #tpu.pipeline_mode<synchronous>, transform_indices = @transform_6, window_bounds = array<i64: 2, 3, 32, 32>}, {pipeline_mode = #tpu.pipeline_mode<synchronous>, transform_indices = @transform_7, window_bounds = array<i64: 2, 3, 1, 32>}, {pipeline_mode = #tpu.pipeline_mode<synchronous>, transform_indices = @transform_8, window_bounds = array<i64: 2, 32, 32>}, {pipeline_mode = #tpu.pipeline_mode<synchronous>, transform_indices = @transform_9, window_bounds = array<i64: 2, 1, 32>}, {pipeline_mode = #tpu.pipeline_mode<synchronous>, transform_indices = @transform_10, window_bounds = array<i64: 2, 1, 32>}, {pipeline_mode = #tpu.pipeline_mode<synchronous>, transform_indices = @transform_11, window_bounds = array<i64: 2, 1, 32>}, {pipeline_mode = #tpu.pipeline_mode<synchronous>, transform_indices = @transform_12, window_bounds = array<i64: 2, 32, 64>}, {pipeline_mode = #tpu.pipeline_mode<synchronous>, transform_indices = @transform_13, window_bounds = array<i64: 2, 1, 64>}, {pipeline_mode = #tpu.pipeline_mode<synchronous>, transform_indices = @transform_14, window_bounds = array<i64: 2, 64, 32>}, {pipeline_mode = #tpu.pipeline_mode<synchronous>, transform_indices = @transform_15, window_bounds = array<i64: 2, 1, 32>}, {pipeline_mode = #tpu.pipeline_mode<synchronous>, transform_indices = @transform_16, window_bounds = array<i64: 2, 1, 32>}, {pipeline_mode = #tpu.pipeline_mode<synchronous>, transform_indices = @transform_17, window_bounds = array<i64: 2, 1, 32>}, {pipeline_mode = #tpu.pipeline_mode<synchronous>, transform_indices = @transform_18, window_bounds = array<i64: 32, 4>}, {pipeline_mode = #tpu.pipeline_mode<synchronous>, transform_indices = @transform_19, window_bounds = array<i64: 1, 4>}, {transform_indices = @transform_20, window_bounds = array<i64: 1, 1, 4>}, {transform_indices = @transform_21, window_bounds = array<i64: 1, 2, 4, 8, 8>}]} {
    %c0 = arith.constant 0 : index
    %c0_0 = arith.constant 0 : index
    %c0_1 = arith.constant 0 : index
    %c0_2 = arith.constant 0 : index
    %0 = vector.load %arg1[%c0, %c0_0, %c0_1, %c0_2] : memref<1x8x6x32xf32, #tpu.memory_space<vmem>>, vector<1x8x6x32xf32>
    %cst = arith.constant dense<0xFF800000> : vector<1x8x32xf32>
    %1 = vector.multi_reduction <maximumf>, %0, %cst [2] : vector<1x8x6x32xf32> to vector<1x8x32xf32>
    %2 = vector.shape_cast %1 : vector<1x8x32xf32> to vector<8x32xf32>
    %c0_3 = arith.constant 0 : index
    %c0_4 = arith.constant 0 : index
    %c0_5 = arith.constant 0 : index
    %3 = vector.load %arg2[%c0_3, %c0_4, %c0_5] : memref<1x8x32xf32, #tpu.memory_space<vmem>>, vector<1x8x32xf32>
    %4 = vector.shape_cast %3 : vector<1x8x32xf32> to vector<8x32xf32>
    %c0_6 = arith.constant 0 : index
    %c0_7 = arith.constant 0 : index
    %5 = vector.load %arg5[%c0_6, %c0_7] : memref<1x32xf32, #tpu.memory_space<vmem>>, vector<1x32xf32>
    %c0_8 = arith.constant 0 : index
    %c0_9 = arith.constant 0 : index
    %6 = vector.load %arg6[%c0_8, %c0_9] : memref<1x32xf32, #tpu.memory_space<vmem>>, vector<1x32xf32>
    %7 = vector.shape_cast %2 : vector<8x32xf32> to vector<1x8x32xf32>
    %8 = vector.shape_cast %7 : vector<1x8x32xf32> to vector<1x8x32xf32>
    %9 = vector.broadcast %8 : vector<1x8x32xf32> to vector<3x8x32xf32>
    %c0_10 = arith.constant 0 : index
    %c0_11 = arith.constant 0 : index
    %c0_12 = arith.constant 0 : index
    %c0_13 = arith.constant 0 : index
    %10 = vector.load %arg3[%c0_10, %c0_11, %c0_12, %c0_13] : memref<2x3x32x32xf32, #tpu.memory_space<vmem>>, vector<1x3x32x32xf32>
    %11 = vector.shape_cast %10 : vector<1x3x32x32xf32> to vector<3x32x32xf32>
    "tpu.trace_start"() <{level = 10 : i32, message = "spe,sef->spf"}> : () -> ()
    %cst_14 = arith.constant dense<0.000000e+00> : vector<3x8x32xf32>
    %12 = tpu.matmul %9, %11, %cst_14 {dimension_numbers = #tpu.dot_dimension_numbers<[2], [1], [1], [2], [0, 0, 0, 1, 1, 2], [0], [0]>} : vector<3x8x32xf32>, vector<3x32x32xf32>, vector<3x8x32xf32> -> vector<3x8x32xf32>
    "tpu.trace_stop"() : () -> ()
    %c0_15 = arith.constant 0 : index
    %c0_16 = arith.constant 0 : index
    %c0_17 = arith.constant 0 : index
    %c0_18 = arith.constant 0 : index
    %13 = vector.load %arg4[%c0_15, %c0_16, %c0_17, %c0_18] : memref<2x3x1x32xf32, #tpu.memory_space<vmem>>, vector<1x3x1x32xf32>
    %14 = vector.shape_cast %13 : vector<1x3x1x32xf32> to vector<3x1x32xf32>
    %15 = vector.broadcast %14 : vector<3x1x32xf32> to vector<3x8x32xf32>
    %16 = arith.addf %12, %15 : vector<3x8x32xf32>
    %cst_19 = arith.constant dense<0.000000e+00> : vector<3x8xf32>
    %17 = vector.multi_reduction <add>, %16, %cst_19 [2] : vector<3x8x32xf32> to vector<3x8xf32>
    %18 = vector.shape_cast %17 : vector<3x8xf32> to vector<3x8x1xf32>
    %cst_20 = arith.constant 3.200000e+01 : f32
    %19 = vector.broadcast %cst_20 : f32 to vector<3x8x1xf32>
    %20 = arith.divf %18, %19 : vector<3x8x1xf32>
    %21 = vector.broadcast %20 : vector<3x8x1xf32> to vector<3x8x32xf32>
    %22 = arith.subf %16, %21 : vector<3x8x32xf32>
    %23 = arith.mulf %22, %22 : vector<3x8x32xf32>
    %cst_21 = arith.constant dense<0.000000e+00> : vector<3x8xf32>
    %24 = vector.multi_reduction <add>, %23, %cst_21 [2] : vector<3x8x32xf32> to vector<3x8xf32>
    %25 = vector.shape_cast %24 : vector<3x8xf32> to vector<3x8x1xf32>
    %cst_22 = arith.constant 3.200000e+01 : f32
    %26 = vector.broadcast %cst_22 : f32 to vector<3x8x1xf32>
    %27 = arith.divf %25, %26 : vector<3x8x1xf32>
    %28 = vector.broadcast %20 : vector<3x8x1xf32> to vector<3x8x32xf32>
    %29 = arith.subf %16, %28 : vector<3x8x32xf32>
    %cst_23 = arith.constant 9.99999974E-6 : f32
    %30 = vector.broadcast %cst_23 : f32 to vector<3x8x1xf32>
    %31 = arith.addf %27, %30 : vector<3x8x1xf32>
    %32 = math.rsqrt %31 : vector<3x8x1xf32>
    %33 = vector.broadcast %32 : vector<3x8x1xf32> to vector<3x8x32xf32>
    %34 = arith.mulf %29, %33 : vector<3x8x32xf32>
    %35 = vector.shape_cast %5 : vector<1x32xf32> to vector<1x1x32xf32>
    %36 = vector.broadcast %35 : vector<1x1x32xf32> to vector<3x8x32xf32>
    %37 = arith.mulf %34, %36 : vector<3x8x32xf32>
    %38 = vector.shape_cast %6 : vector<1x32xf32> to vector<1x1x32xf32>
    %39 = vector.broadcast %38 : vector<1x1x32xf32> to vector<3x8x32xf32>
    %40 = arith.addf %37, %39 : vector<3x8x32xf32>
    %c1 = arith.constant 1 : index
    %c0_24 = arith.constant 0 : index
    %c0_25 = arith.constant 0 : index
    %c0_26 = arith.constant 0 : index
    %41 = vector.load %arg3[%c1, %c0_24, %c0_25, %c0_26] : memref<2x3x32x32xf32, #tpu.memory_space<vmem>>, vector<1x3x32x32xf32>
    %42 = vector.shape_cast %41 : vector<1x3x32x32xf32> to vector<3x32x32xf32>
    "tpu.trace_start"() <{level = 10 : i32, message = "spe,sef->spf"}> : () -> ()
    %cst_27 = arith.constant dense<0.000000e+00> : vector<3x8x32xf32>
    %43 = tpu.matmul %40, %42, %cst_27 {dimension_numbers = #tpu.dot_dimension_numbers<[2], [1], [1], [2], [0, 0, 0, 1, 1, 2], [0], [0]>} : vector<3x8x32xf32>, vector<3x32x32xf32>, vector<3x8x32xf32> -> vector<3x8x32xf32>
    "tpu.trace_stop"() : () -> ()
    %c1_28 = arith.constant 1 : index
    %c0_29 = arith.constant 0 : index
    %c0_30 = arith.constant 0 : index
    %c0_31 = arith.constant 0 : index
    %44 = vector.load %arg4[%c1_28, %c0_29, %c0_30, %c0_31] : memref<2x3x1x32xf32, #tpu.memory_space<vmem>>, vector<1x3x1x32xf32>
    %45 = vector.shape_cast %44 : vector<1x3x1x32xf32> to vector<3x1x32xf32>
    %46 = vector.broadcast %45 : vector<3x1x32xf32> to vector<3x8x32xf32>
    %47 = arith.addf %43, %46 : vector<3x8x32xf32>
    %cst_32 = arith.constant dense<0.000000e+00> : vector<3x8xf32>
    %48 = vector.multi_reduction <add>, %47, %cst_32 [2] : vector<3x8x32xf32> to vector<3x8xf32>
    %49 = vector.shape_cast %48 : vector<3x8xf32> to vector<3x8x1xf32>
    %cst_33 = arith.constant 3.200000e+01 : f32
    %50 = vector.broadcast %cst_33 : f32 to vector<3x8x1xf32>
    %51 = arith.divf %49, %50 : vector<3x8x1xf32>
    %52 = vector.broadcast %51 : vector<3x8x1xf32> to vector<3x8x32xf32>
    %53 = arith.subf %47, %52 : vector<3x8x32xf32>
    %54 = arith.mulf %53, %53 : vector<3x8x32xf32>
    %cst_34 = arith.constant dense<0.000000e+00> : vector<3x8xf32>
    %55 = vector.multi_reduction <add>, %54, %cst_34 [2] : vector<3x8x32xf32> to vector<3x8xf32>
    %56 = vector.shape_cast %55 : vector<3x8xf32> to vector<3x8x1xf32>
    %cst_35 = arith.constant 3.200000e+01 : f32
    %57 = vector.broadcast %cst_35 : f32 to vector<3x8x1xf32>
    %58 = arith.divf %56, %57 : vector<3x8x1xf32>
    %59 = vector.broadcast %51 : vector<3x8x1xf32> to vector<3x8x32xf32>
    %60 = arith.subf %47, %59 : vector<3x8x32xf32>
    %cst_36 = arith.constant 9.99999974E-6 : f32
    %61 = vector.broadcast %cst_36 : f32 to vector<3x8x1xf32>
    %62 = arith.addf %58, %61 : vector<3x8x1xf32>
    %63 = math.rsqrt %62 : vector<3x8x1xf32>
    %64 = vector.broadcast %63 : vector<3x8x1xf32> to vector<3x8x32xf32>
    %65 = arith.mulf %60, %64 : vector<3x8x32xf32>
    %66 = vector.shape_cast %5 : vector<1x32xf32> to vector<1x1x32xf32>
    %67 = vector.broadcast %66 : vector<1x1x32xf32> to vector<3x8x32xf32>
    %68 = arith.mulf %65, %67 : vector<3x8x32xf32>
    %69 = vector.shape_cast %6 : vector<1x32xf32> to vector<1x1x32xf32>
    %70 = vector.broadcast %69 : vector<1x1x32xf32> to vector<3x8x32xf32>
    %71 = arith.addf %68, %70 : vector<3x8x32xf32>
    %72 = vector.shape_cast %4 : vector<8x32xf32> to vector<1x8x32xf32>
    %73 = vector.broadcast %72 : vector<1x8x32xf32> to vector<3x8x32xf32>
    %74 = arith.addf %71, %73 : vector<3x8x32xf32>
    %c0_37 = arith.constant 0 : index
    %c0_38 = arith.constant 0 : index
    %c0_39 = arith.constant 0 : index
    %c0_40 = arith.constant 0 : index
    %75 = vector.load %arg7[%c0_37, %c0_38, %c0_39, %c0_40] : memref<2x3x32x32xf32, #tpu.memory_space<vmem>>, vector<1x3x32x32xf32>
    %76 = vector.shape_cast %75 : vector<1x3x32x32xf32> to vector<3x32x32xf32>
    "tpu.trace_start"() <{level = 10 : i32, message = "spe,sef->spf"}> : () -> ()
    %cst_41 = arith.constant dense<0.000000e+00> : vector<3x8x32xf32>
    %77 = tpu.matmul %74, %76, %cst_41 {dimension_numbers = #tpu.dot_dimension_numbers<[2], [1], [1], [2], [0, 0, 0, 1, 1, 2], [0], [0]>} : vector<3x8x32xf32>, vector<3x32x32xf32>, vector<3x8x32xf32> -> vector<3x8x32xf32>
    "tpu.trace_stop"() : () -> ()
    %c0_42 = arith.constant 0 : index
    %c0_43 = arith.constant 0 : index
    %c0_44 = arith.constant 0 : index
    %c0_45 = arith.constant 0 : index
    %78 = vector.load %arg8[%c0_42, %c0_43, %c0_44, %c0_45] : memref<2x3x1x32xf32, #tpu.memory_space<vmem>>, vector<1x3x1x32xf32>
    %79 = vector.shape_cast %78 : vector<1x3x1x32xf32> to vector<3x1x32xf32>
    %80 = vector.broadcast %79 : vector<3x1x32xf32> to vector<3x8x32xf32>
    %81 = arith.addf %77, %80 : vector<3x8x32xf32>
    %82 = vector.extract_strided_slice %81 {offsets = [0, 0, 0], sizes = [1, 8, 32], strides = [1, 1, 1]} : vector<3x8x32xf32> to vector<1x8x32xf32>
    %83 = vector.shape_cast %82 : vector<1x8x32xf32> to vector<8x32xf32>
    %84 = vector.extract_strided_slice %83 {offsets = [0, 0], sizes = [8, 8], strides = [1, 1]} : vector<8x32xf32> to vector<8x8xf32>
    %85 = vector.extract_strided_slice %83 {offsets = [0, 8], sizes = [8, 8], strides = [1, 1]} : vector<8x32xf32> to vector<8x8xf32>
    %86 = vector.extract_strided_slice %83 {offsets = [0, 16], sizes = [8, 8], strides = [1, 1]} : vector<8x32xf32> to vector<8x8xf32>
    %87 = vector.extract_strided_slice %83 {offsets = [0, 24], sizes = [8, 8], strides = [1, 1]} : vector<8x32xf32> to vector<8x8xf32>
    %88 = vector.shape_cast %84 : vector<8x8xf32> to vector<1x8x8xf32>
    %89 = vector.shape_cast %85 : vector<8x8xf32> to vector<1x8x8xf32>
    %90 = vector.shape_cast %86 : vector<8x8xf32> to vector<1x8x8xf32>
    %91 = vector.shape_cast %87 : vector<8x8xf32> to vector<1x8x8xf32>
    %92 = tpu.concatenate %88, %89, %90, %91 in 0 : vector<1x8x8xf32>, vector<1x8x8xf32>, vector<1x8x8xf32>, vector<1x8x8xf32> -> vector<4x8x8xf32>
    %93 = vector.extract_strided_slice %81 {offsets = [1, 0, 0], sizes = [1, 8, 32], strides = [1, 1, 1]} : vector<3x8x32xf32> to vector<1x8x32xf32>
    %94 = vector.shape_cast %93 : vector<1x8x32xf32> to vector<8x32xf32>
    %95 = vector.extract_strided_slice %94 {offsets = [0, 0], sizes = [8, 8], strides = [1, 1]} : vector<8x32xf32> to vector<8x8xf32>
    %96 = vector.extract_strided_slice %94 {offsets = [0, 8], sizes = [8, 8], strides = [1, 1]} : vector<8x32xf32> to vector<8x8xf32>
    %97 = vector.extract_strided_slice %94 {offsets = [0, 16], sizes = [8, 8], strides = [1, 1]} : vector<8x32xf32> to vector<8x8xf32>
    %98 = vector.extract_strided_slice %94 {offsets = [0, 24], sizes = [8, 8], strides = [1, 1]} : vector<8x32xf32> to vector<8x8xf32>
    %99 = vector.shape_cast %95 : vector<8x8xf32> to vector<1x8x8xf32>
    %100 = vector.shape_cast %96 : vector<8x8xf32> to vector<1x8x8xf32>
    %101 = vector.shape_cast %97 : vector<8x8xf32> to vector<1x8x8xf32>
    %102 = vector.shape_cast %98 : vector<8x8xf32> to vector<1x8x8xf32>
    %103 = tpu.concatenate %99, %100, %101, %102 in 0 : vector<1x8x8xf32>, vector<1x8x8xf32>, vector<1x8x8xf32>, vector<1x8x8xf32> -> vector<4x8x8xf32>
    %104 = vector.extract_strided_slice %81 {offsets = [2, 0, 0], sizes = [1, 8, 32], strides = [1, 1, 1]} : vector<3x8x32xf32> to vector<1x8x32xf32>
    %105 = vector.shape_cast %104 : vector<1x8x32xf32> to vector<8x32xf32>
    %106 = vector.extract_strided_slice %105 {offsets = [0, 0], sizes = [8, 8], strides = [1, 1]} : vector<8x32xf32> to vector<8x8xf32>
    %107 = vector.extract_strided_slice %105 {offsets = [0, 8], sizes = [8, 8], strides = [1, 1]} : vector<8x32xf32> to vector<8x8xf32>
    %108 = vector.extract_strided_slice %105 {offsets = [0, 16], sizes = [8, 8], strides = [1, 1]} : vector<8x32xf32> to vector<8x8xf32>
    %109 = vector.extract_strided_slice %105 {offsets = [0, 24], sizes = [8, 8], strides = [1, 1]} : vector<8x32xf32> to vector<8x8xf32>
    %110 = vector.shape_cast %106 : vector<8x8xf32> to vector<1x8x8xf32>
    %111 = vector.shape_cast %107 : vector<8x8xf32> to vector<1x8x8xf32>
    %112 = vector.shape_cast %108 : vector<8x8xf32> to vector<1x8x8xf32>
    %113 = vector.shape_cast %109 : vector<8x8xf32> to vector<1x8x8xf32>
    %114 = tpu.concatenate %110, %111, %112, %113 in 0 : vector<1x8x8xf32>, vector<1x8x8xf32>, vector<1x8x8xf32>, vector<1x8x8xf32> -> vector<4x8x8xf32>
    "tpu.trace_start"() <{level = 10 : i32, message = "hpd,hqd->hpq"}> : () -> ()
    %cst_46 = arith.constant dense<0.000000e+00> : vector<4x8x8xf32>
    %115 = tpu.matmul %92, %103, %cst_46 {dimension_numbers = #tpu.dot_dimension_numbers<[2], [2], [1], [1], [0, 0, 0, 1, 1, 1], [0], [0]>} : vector<4x8x8xf32>, vector<4x8x8xf32>, vector<4x8x8xf32> -> vector<4x8x8xf32>
    "tpu.trace_stop"() : () -> ()
    %cst_47 = arith.constant 0.353553385 : f32
    %116 = vector.broadcast %cst_47 : f32 to vector<4x8x8xf32>
    %117 = arith.mulf %115, %116 : vector<4x8x8xf32>
    %cst_48 = arith.constant dense<0xFF800000> : vector<4x8xf32>
    %118 = vector.multi_reduction <maximumf>, %117, %cst_48 [2] : vector<4x8x8xf32> to vector<4x8xf32>
    %119 = vector.shape_cast %118 : vector<4x8xf32> to vector<4x8x1xf32>
    %120 = vector.broadcast %119 : vector<4x8x1xf32> to vector<4x8x8xf32>
    %121 = arith.subf %117, %120 : vector<4x8x8xf32>
    %122 = math.exp %121 : vector<4x8x8xf32>
    %cst_49 = arith.constant dense<0.000000e+00> : vector<4x8xf32>
    %123 = vector.multi_reduction <add>, %122, %cst_49 [2] : vector<4x8x8xf32> to vector<4x8xf32>
    %124 = vector.shape_cast %123 : vector<4x8xf32> to vector<4x8x1xf32>
    %125 = tpu.reciprocal %124 {approx = true} : vector<4x8x1xf32> -> vector<4x8x1xf32>
    %126 = vector.broadcast %125 : vector<4x8x1xf32> to vector<4x8x8xf32>
    %127 = arith.mulf %122, %126 : vector<4x8x8xf32>
    %c0_50 = arith.constant 0 : index
    %c0_51 = arith.constant 0 : index
    %c0_52 = arith.constant 0 : index
    %c0_53 = arith.constant 0 : index
    %c0_54 = arith.constant 0 : index
    %128 = vector.load %arg22[%c0_50, %c0_51, %c0_52, %c0_53, %c0_54] : memref<1x2x4x8x8xf32, #tpu.memory_space<vmem>>, vector<1x1x4x8x8xf32>
    %129 = vector.shape_cast %128 : vector<1x1x4x8x8xf32> to vector<4x8x8xf32>
    %130 = vector.shape_cast %127 : vector<4x8x8xf32> to vector<1x1x4x8x8xf32>
    tpu.vector_store %arg22[%c0_50, %c0_51, %c0_52, %c0_53, %c0_54], %130 {strides = array<i32>} : memref<1x2x4x8x8xf32, #tpu.memory_space<vmem>>, vector<1x1x4x8x8xf32>,
    "tpu.trace_start"() <{level = 10 : i32, message = "hpq,hqd->hpd"}> : () -> ()
    %cst_55 = arith.constant dense<0.000000e+00> : vector<4x8x8xf32>
    %131 = tpu.matmul %127, %114, %cst_55 {dimension_numbers = #tpu.dot_dimension_numbers<[2], [1], [1], [2], [0, 0, 0, 1, 1, 2], [0], [0]>} : vector<4x8x8xf32>, vector<4x8x8xf32>, vector<4x8x8xf32> -> vector<4x8x8xf32>
    "tpu.trace_stop"() : () -> ()
    %132 = vector.extract_strided_slice %131 {offsets = [0, 0, 0], sizes = [1, 8, 8], strides = [1, 1, 1]} : vector<4x8x8xf32> to vector<1x8x8xf32>
    %133 = vector.shape_cast %132 : vector<1x8x8xf32> to vector<8x8xf32>
    %134 = vector.extract_strided_slice %131 {offsets = [1, 0, 0], sizes = [1, 8, 8], strides = [1, 1, 1]} : vector<4x8x8xf32> to vector<1x8x8xf32>
    %135 = vector.shape_cast %134 : vector<1x8x8xf32> to vector<8x8xf32>
    %136 = vector.extract_strided_slice %131 {offsets = [2, 0, 0], sizes = [1, 8, 8], strides = [1, 1, 1]} : vector<4x8x8xf32> to vector<1x8x8xf32>
    %137 = vector.shape_cast %136 : vector<1x8x8xf32> to vector<8x8xf32>
    %138 = vector.extract_strided_slice %131 {offsets = [3, 0, 0], sizes = [1, 8, 8], strides = [1, 1, 1]} : vector<4x8x8xf32> to vector<1x8x8xf32>
    %139 = vector.shape_cast %138 : vector<1x8x8xf32> to vector<8x8xf32>
    %140 = tpu.concatenate %133, %135, %137, %139 in 1 : vector<8x8xf32>, vector<8x8xf32>, vector<8x8xf32>, vector<8x8xf32> -> vector<8x32xf32>
    %c0_56 = arith.constant 0 : index
    %c0_57 = arith.constant 0 : index
    %c0_58 = arith.constant 0 : index
    %141 = vector.load %arg9[%c0_56, %c0_57, %c0_58] : memref<2x32x32xf32, #tpu.memory_space<vmem>>, vector<1x32x32xf32>
    %142 = vector.shape_cast %141 : vector<1x32x32xf32> to vector<32x32xf32>
    %cst_59 = arith.constant dense<0.000000e+00> : vector<8x32xf32>
    %143 = tpu.matmul %140, %142, %cst_59 {dimension_numbers = #tpu.dot_dimension_numbers<[1], [0], [0], [1], [0, 0, 1, 1], [], []>} : vector<8x32xf32>, vector<32x32xf32>, vector<8x32xf32> -> vector<8x32xf32>
    %c0_60 = arith.constant 0 : index
    %c0_61 = arith.constant 0 : index
    %c0_62 = arith.constant 0 : index
    %144 = vector.load %arg10[%c0_60, %c0_61, %c0_62] : memref<2x1x32xf32, #tpu.memory_space<vmem>>, vector<1x1x32xf32>
    %145 = vector.shape_cast %144 : vector<1x1x32xf32> to vector<1x32xf32>
    %146 = vector.broadcast %145 : vector<1x32xf32> to vector<8x32xf32>
    %147 = arith.addf %143, %146 : vector<8x32xf32>
    %148 = vector.extract_strided_slice %74 {offsets = [0, 0, 0], sizes = [1, 8, 32], strides = [1, 1, 1]} : vector<3x8x32xf32> to vector<1x8x32xf32>
    %149 = vector.shape_cast %148 : vector<1x8x32xf32> to vector<8x32xf32>
    %150 = arith.addf %147, %149 : vector<8x32xf32>
    %c0_63 = arith.constant 0 : index
    %c0_64 = arith.constant 0 : index
    %c0_65 = arith.constant 0 : index
    %151 = vector.load %arg11[%c0_63, %c0_64, %c0_65] : memref<2x1x32xf32, #tpu.memory_space<vmem>>, vector<1x1x32xf32>
    %152 = vector.shape_cast %151 : vector<1x1x32xf32> to vector<1x32xf32>
    %c0_66 = arith.constant 0 : index
    %c0_67 = arith.constant 0 : index
    %c0_68 = arith.constant 0 : index
    %153 = vector.load %arg12[%c0_66, %c0_67, %c0_68] : memref<2x1x32xf32, #tpu.memory_space<vmem>>, vector<1x1x32xf32>
    %154 = vector.shape_cast %153 : vector<1x1x32xf32> to vector<1x32xf32>
    %cst_69 = arith.constant dense<0.000000e+00> : vector<8xf32>
    %155 = vector.multi_reduction <add>, %150, %cst_69 [1] : vector<8x32xf32> to vector<8xf32>
    %156 = vector.shape_cast %155 : vector<8xf32> to vector<8x1xf32>
    %cst_70 = arith.constant 3.200000e+01 : f32
    %157 = vector.broadcast %cst_70 : f32 to vector<8x1xf32>
    %158 = arith.divf %156, %157 : vector<8x1xf32>
    %159 = vector.broadcast %158 : vector<8x1xf32> to vector<8x32xf32>
    %160 = arith.subf %150, %159 : vector<8x32xf32>
    %161 = arith.mulf %160, %160 : vector<8x32xf32>
    %cst_71 = arith.constant dense<0.000000e+00> : vector<8xf32>
    %162 = vector.multi_reduction <add>, %161, %cst_71 [1] : vector<8x32xf32> to vector<8xf32>
    %163 = vector.shape_cast %162 : vector<8xf32> to vector<8x1xf32>
    %cst_72 = arith.constant 3.200000e+01 : f32
    %164 = vector.broadcast %cst_72 : f32 to vector<8x1xf32>
    %165 = arith.divf %163, %164 : vector<8x1xf32>
    %166 = vector.broadcast %158 : vector<8x1xf32> to vector<8x32xf32>
    %167 = arith.subf %150, %166 : vector<8x32xf32>
    %cst_73 = arith.constant 9.99999974E-6 : f32
    %168 = vector.broadcast %cst_73 : f32 to vector<8x1xf32>
    %169 = arith.addf %165, %168 : vector<8x1xf32>
    %170 = math.rsqrt %169 : vector<8x1xf32>
    %171 = vector.broadcast %170 : vector<8x1xf32> to vector<8x32xf32>
    %172 = arith.mulf %167, %171 : vector<8x32xf32>
    %173 = vector.broadcast %152 : vector<1x32xf32> to vector<8x32xf32>
    %174 = arith.mulf %172, %173 : vector<8x32xf32>
    %175 = vector.broadcast %154 : vector<1x32xf32> to vector<8x32xf32>
    %176 = arith.addf %174, %175 : vector<8x32xf32>
    %c0_74 = arith.constant 0 : index
    %c0_75 = arith.constant 0 : index
    %c0_76 = arith.constant 0 : index
    %177 = vector.load %arg13[%c0_74, %c0_75, %c0_76] : memref<2x32x64xf32, #tpu.memory_space<vmem>>, vector<1x32x64xf32>
    %178 = vector.shape_cast %177 : vector<1x32x64xf32> to vector<32x64xf32>
    %cst_77 = arith.constant dense<0.000000e+00> : vector<8x64xf32>
    %179 = tpu.matmul %176, %178, %cst_77 {dimension_numbers = #tpu.dot_dimension_numbers<[1], [0], [0], [1], [0, 0, 1, 1], [], []>} : vector<8x32xf32>, vector<32x64xf32>, vector<8x64xf32> -> vector<8x64xf32>
    %c0_78 = arith.constant 0 : index
    %c0_79 = arith.constant 0 : index
    %c0_80 = arith.constant 0 : index
    %180 = vector.load %arg14[%c0_78, %c0_79, %c0_80] : memref<2x1x64xf32, #tpu.memory_space<vmem>>, vector<1x1x64xf32>
    %181 = vector.shape_cast %180 : vector<1x1x64xf32> to vector<1x64xf32>
    %182 = vector.broadcast %181 : vector<1x64xf32> to vector<8x64xf32>
    %183 = arith.addf %179, %182 : vector<8x64xf32>
    %cst_81 = arith.constant 0.000000e+00 : f32
    %184 = vector.broadcast %cst_81 : f32 to vector<8x64xf32>
    %185 = arith.maximumf %183, %184 : vector<8x64xf32>
    %c0_82 = arith.constant 0 : index
    %c0_83 = arith.constant 0 : index
    %c0_84 = arith.constant 0 : index
    %186 = vector.load %arg15[%c0_82, %c0_83, %c0_84] : memref<2x64x32xf32, #tpu.memory_space<vmem>>, vector<1x64x32xf32>
    %187 = vector.shape_cast %186 : vector<1x64x32xf32> to vector<64x32xf32>
    %cst_85 = arith.constant dense<0.000000e+00> : vector<8x32xf32>
    %188 = tpu.matmul %185, %187, %cst_85 {dimension_numbers = #tpu.dot_dimension_numbers<[1], [0], [0], [1], [0, 0, 1, 1], [], []>} : vector<8x64xf32>, vector<64x32xf32>, vector<8x32xf32> -> vector<8x32xf32>
    %c0_86 = arith.constant 0 : index
    %c0_87 = arith.constant 0 : index
    %c0_88 = arith.constant 0 : index
    %189 = vector.load %arg16[%c0_86, %c0_87, %c0_88] : memref<2x1x32xf32, #tpu.memory_space<vmem>>, vector<1x1x32xf32>
    %190 = vector.shape_cast %189 : vector<1x1x32xf32> to vector<1x32xf32>
    %191 = vector.broadcast %190 : vector<1x32xf32> to vector<8x32xf32>
    %192 = arith.addf %188, %191 : vector<8x32xf32>
    %193 = arith.addf %192, %176 : vector<8x32xf32>
    %c0_89 = arith.constant 0 : index
    %c0_90 = arith.constant 0 : index
    %c0_91 = arith.constant 0 : index
    %194 = vector.load %arg17[%c0_89, %c0_90, %c0_91] : memref<2x1x32xf32, #tpu.memory_space<vmem>>, vector<1x1x32xf32>
    %195 = vector.shape_cast %194 : vector<1x1x32xf32> to vector<1x32xf32>
    %c0_92 = arith.constant 0 : index
    %c0_93 = arith.constant 0 : index
    %c0_94 = arith.constant 0 : index
    %196 = vector.load %arg18[%c0_92, %c0_93, %c0_94] : memref<2x1x32xf32, #tpu.memory_space<vmem>>, vector<1x1x32xf32>
    %197 = vector.shape_cast %196 : vector<1x1x32xf32> to vector<1x32xf32>
    %cst_95 = arith.constant dense<0.000000e+00> : vector<8xf32>
    %198 = vector.multi_reduction <add>, %193, %cst_95 [1] : vector<8x32xf32> to vector<8xf32>
    %199 = vector.shape_cast %198 : vector<8xf32> to vector<8x1xf32>
    %cst_96 = arith.constant 3.200000e+01 : f32
    %200 = vector.broadcast %cst_96 : f32 to vector<8x1xf32>
    %201 = arith.divf %199, %200 : vector<8x1xf32>
    %202 = vector.broadcast %201 : vector<8x1xf32> to vector<8x32xf32>
    %203 = arith.subf %193, %202 : vector<8x32xf32>
    %204 = arith.mulf %203, %203 : vector<8x32xf32>
    %cst_97 = arith.constant dense<0.000000e+00> : vector<8xf32>
    %205 = vector.multi_reduction <add>, %204, %cst_97 [1] : vector<8x32xf32> to vector<8xf32>
    %206 = vector.shape_cast %205 : vector<8xf32> to vector<8x1xf32>
    %cst_98 = arith.constant 3.200000e+01 : f32
    %207 = vector.broadcast %cst_98 : f32 to vector<8x1xf32>
    %208 = arith.divf %206, %207 : vector<8x1xf32>
    %209 = vector.broadcast %201 : vector<8x1xf32> to vector<8x32xf32>
    %210 = arith.subf %193, %209 : vector<8x32xf32>
    %cst_99 = arith.constant 9.99999974E-6 : f32
    %211 = vector.broadcast %cst_99 : f32 to vector<8x1xf32>
    %212 = arith.addf %208, %211 : vector<8x1xf32>
    %213 = math.rsqrt %212 : vector<8x1xf32>
    %214 = vector.broadcast %213 : vector<8x1xf32> to vector<8x32xf32>
    %215 = arith.mulf %210, %214 : vector<8x32xf32>
    %216 = vector.broadcast %195 : vector<1x32xf32> to vector<8x32xf32>
    %217 = arith.mulf %215, %216 : vector<8x32xf32>
    %218 = vector.broadcast %197 : vector<1x32xf32> to vector<8x32xf32>
    %219 = arith.addf %217, %218 : vector<8x32xf32>
    %220 = vector.shape_cast %219 : vector<8x32xf32> to vector<1x8x32xf32>
    %221 = vector.shape_cast %220 : vector<1x8x32xf32> to vector<1x8x32xf32>
    %222 = vector.broadcast %221 : vector<1x8x32xf32> to vector<3x8x32xf32>
    %c1_100 = arith.constant 1 : index
    %c0_101 = arith.constant 0 : index
    %c0_102 = arith.constant 0 : index
    %c0_103 = arith.constant 0 : index
    %223 = vector.load %arg7[%c1_100, %c0_101, %c0_102, %c0_103] : memref<2x3x32x32xf32, #tpu.memory_space<vmem>>, vector<1x3x32x32xf32>
    %224 = vector.shape_cast %223 : vector<1x3x32x32xf32> to vector<3x32x32xf32>
    "tpu.trace_start"() <{level = 10 : i32, message = "spe,sef->spf"}> : () -> ()
    %cst_104 = arith.constant dense<0.000000e+00> : vector<3x8x32xf32>
    %225 = tpu.matmul %222, %224, %cst_104 {dimension_numbers = #tpu.dot_dimension_numbers<[2], [1], [1], [2], [0, 0, 0, 1, 1, 2], [0], [0]>} : vector<3x8x32xf32>, vector<3x32x32xf32>, vector<3x8x32xf32> -> vector<3x8x32xf32>
    "tpu.trace_stop"() : () -> ()
    %c1_105 = arith.constant 1 : index
    %c0_106 = arith.constant 0 : index
    %c0_107 = arith.constant 0 : index
    %c0_108 = arith.constant 0 : index
    %226 = vector.load %arg8[%c1_105, %c0_106, %c0_107, %c0_108] : memref<2x3x1x32xf32, #tpu.memory_space<vmem>>, vector<1x3x1x32xf32>
    %227 = vector.shape_cast %226 : vector<1x3x1x32xf32> to vector<3x1x32xf32>
    %228 = vector.broadcast %227 : vector<3x1x32xf32> to vector<3x8x32xf32>
    %229 = arith.addf %225, %228 : vector<3x8x32xf32>
    %230 = vector.extract_strided_slice %229 {offsets = [0, 0, 0], sizes = [1, 8, 32], strides = [1, 1, 1]} : vector<3x8x32xf32> to vector<1x8x32xf32>
    %231 = vector.shape_cast %230 : vector<1x8x32xf32> to vector<8x32xf32>
    %232 = vector.extract_strided_slice %231 {offsets = [0, 0], sizes = [8, 8], strides = [1, 1]} : vector<8x32xf32> to vector<8x8xf32>
    %233 = vector.extract_strided_slice %231 {offsets = [0, 8], sizes = [8, 8], strides = [1, 1]} : vector<8x32xf32> to vector<8x8xf32>
    %234 = vector.extract_strided_slice %231 {offsets = [0, 16], sizes = [8, 8], strides = [1, 1]} : vector<8x32xf32> to vector<8x8xf32>
    %235 = vector.extract_strided_slice %231 {offsets = [0, 24], sizes = [8, 8], strides = [1, 1]} : vector<8x32xf32> to vector<8x8xf32>
    %236 = vector.shape_cast %232 : vector<8x8xf32> to vector<1x8x8xf32>
    %237 = vector.shape_cast %233 : vector<8x8xf32> to vector<1x8x8xf32>
    %238 = vector.shape_cast %234 : vector<8x8xf32> to vector<1x8x8xf32>
    %239 = vector.shape_cast %235 : vector<8x8xf32> to vector<1x8x8xf32>
    %240 = tpu.concatenate %236, %237, %238, %239 in 0 : vector<1x8x8xf32>, vector<1x8x8xf32>, vector<1x8x8xf32>, vector<1x8x8xf32> -> vector<4x8x8xf32>
    %241 = vector.extract_strided_slice %229 {offsets = [1, 0, 0], sizes = [1, 8, 32], strides = [1, 1, 1]} : vector<3x8x32xf32> to vector<1x8x32xf32>
    %242 = vector.shape_cast %241 : vector<1x8x32xf32> to vector<8x32xf32>
    %243 = vector.extract_strided_slice %242 {offsets = [0, 0], sizes = [8, 8], strides = [1, 1]} : vector<8x32xf32> to vector<8x8xf32>
    %244 = vector.extract_strided_slice %242 {offsets = [0, 8], sizes = [8, 8], strides = [1, 1]} : vector<8x32xf32> to vector<8x8xf32>
    %245 = vector.extract_strided_slice %242 {offsets = [0, 16], sizes = [8, 8], strides = [1, 1]} : vector<8x32xf32> to vector<8x8xf32>
    %246 = vector.extract_strided_slice %242 {offsets = [0, 24], sizes = [8, 8], strides = [1, 1]} : vector<8x32xf32> to vector<8x8xf32>
    %247 = vector.shape_cast %243 : vector<8x8xf32> to vector<1x8x8xf32>
    %248 = vector.shape_cast %244 : vector<8x8xf32> to vector<1x8x8xf32>
    %249 = vector.shape_cast %245 : vector<8x8xf32> to vector<1x8x8xf32>
    %250 = vector.shape_cast %246 : vector<8x8xf32> to vector<1x8x8xf32>
    %251 = tpu.concatenate %247, %248, %249, %250 in 0 : vector<1x8x8xf32>, vector<1x8x8xf32>, vector<1x8x8xf32>, vector<1x8x8xf32> -> vector<4x8x8xf32>
    %252 = vector.extract_strided_slice %229 {offsets = [2, 0, 0], sizes = [1, 8, 32], strides = [1, 1, 1]} : vector<3x8x32xf32> to vector<1x8x32xf32>
    %253 = vector.shape_cast %252 : vector<1x8x32xf32> to vector<8x32xf32>
    %254 = vector.extract_strided_slice %253 {offsets = [0, 0], sizes = [8, 8], strides = [1, 1]} : vector<8x32xf32> to vector<8x8xf32>
    %255 = vector.extract_strided_slice %253 {offsets = [0, 8], sizes = [8, 8], strides = [1, 1]} : vector<8x32xf32> to vector<8x8xf32>
    %256 = vector.extract_strided_slice %253 {offsets = [0, 16], sizes = [8, 8], strides = [1, 1]} : vector<8x32xf32> to vector<8x8xf32>
    %257 = vector.extract_strided_slice %253 {offsets = [0, 24], sizes = [8, 8], strides = [1, 1]} : vector<8x32xf32> to vector<8x8xf32>
    %258 = vector.shape_cast %254 : vector<8x8xf32> to vector<1x8x8xf32>
    %259 = vector.shape_cast %255 : vector<8x8xf32> to vector<1x8x8xf32>
    %260 = vector.shape_cast %256 : vector<8x8xf32> to vector<1x8x8xf32>
    %261 = vector.shape_cast %257 : vector<8x8xf32> to vector<1x8x8xf32>
    %262 = tpu.concatenate %258, %259, %260, %261 in 0 : vector<1x8x8xf32>, vector<1x8x8xf32>, vector<1x8x8xf32>, vector<1x8x8xf32> -> vector<4x8x8xf32>
    "tpu.trace_start"() <{level = 10 : i32, message = "hpd,hqd->hpq"}> : () -> ()
    %cst_109 = arith.constant dense<0.000000e+00> : vector<4x8x8xf32>
    %263 = tpu.matmul %240, %251, %cst_109 {dimension_numbers = #tpu.dot_dimension_numbers<[2], [2], [1], [1], [0, 0, 0, 1, 1, 1], [0], [0]>} : vector<4x8x8xf32>, vector<4x8x8xf32>, vector<4x8x8xf32> -> vector<4x8x8xf32>
    "tpu.trace_stop"() : () -> ()
    %cst_110 = arith.constant 0.353553385 : f32
    %264 = vector.broadcast %cst_110 : f32 to vector<4x8x8xf32>
    %265 = arith.mulf %263, %264 : vector<4x8x8xf32>
    %cst_111 = arith.constant dense<0xFF800000> : vector<4x8xf32>
    %266 = vector.multi_reduction <maximumf>, %265, %cst_111 [2] : vector<4x8x8xf32> to vector<4x8xf32>
    %267 = vector.shape_cast %266 : vector<4x8xf32> to vector<4x8x1xf32>
    %268 = vector.broadcast %267 : vector<4x8x1xf32> to vector<4x8x8xf32>
    %269 = arith.subf %265, %268 : vector<4x8x8xf32>
    %270 = math.exp %269 : vector<4x8x8xf32>
    %cst_112 = arith.constant dense<0.000000e+00> : vector<4x8xf32>
    %271 = vector.multi_reduction <add>, %270, %cst_112 [2] : vector<4x8x8xf32> to vector<4x8xf32>
    %272 = vector.shape_cast %271 : vector<4x8xf32> to vector<4x8x1xf32>
    %273 = tpu.reciprocal %272 {approx = true} : vector<4x8x1xf32> -> vector<4x8x1xf32>
    %274 = vector.broadcast %273 : vector<4x8x1xf32> to vector<4x8x8xf32>
    %275 = arith.mulf %270, %274 : vector<4x8x8xf32>
    %c0_113 = arith.constant 0 : index
    %c1_114 = arith.constant 1 : index
    %c0_115 = arith.constant 0 : index
    %c0_116 = arith.constant 0 : index
    %c0_117 = arith.constant 0 : index
    %276 = vector.load %arg22[%c0_113, %c1_114, %c0_115, %c0_116, %c0_117] : memref<1x2x4x8x8xf32, #tpu.memory_space<vmem>>, vector<1x1x4x8x8xf32>
    %277 = vector.shape_cast %276 : vector<1x1x4x8x8xf32> to vector<4x8x8xf32>
    %278 = vector.shape_cast %275 : vector<4x8x8xf32> to vector<1x1x4x8x8xf32>
    tpu.vector_store %arg22[%c0_113, %c1_114, %c0_115, %c0_116, %c0_117], %278 {strides = array<i32>} : memref<1x2x4x8x8xf32, #tpu.memory_space<vmem>>, vector<1x1x4x8x8xf32>,
    "tpu.trace_start"() <{level = 10 : i32, message = "hpq,hqd->hpd"}> : () -> ()
    %cst_118 = arith.constant dense<0.000000e+00> : vector<4x8x8xf32>
    %279 = tpu.matmul %275, %262, %cst_118 {dimension_numbers = #tpu.dot_dimension_numbers<[2], [1], [1], [2], [0, 0, 0, 1, 1, 2], [0], [0]>} : vector<4x8x8xf32>, vector<4x8x8xf32>, vector<4x8x8xf32> -> vector<4x8x8xf32>
    "tpu.trace_stop"() : () -> ()
    %280 = vector.extract_strided_slice %279 {offsets = [0, 0, 0], sizes = [1, 8, 8], strides = [1, 1, 1]} : vector<4x8x8xf32> to vector<1x8x8xf32>
    %281 = vector.shape_cast %280 : vector<1x8x8xf32> to vector<8x8xf32>
    %282 = vector.extract_strided_slice %279 {offsets = [1, 0, 0], sizes = [1, 8, 8], strides = [1, 1, 1]} : vector<4x8x8xf32> to vector<1x8x8xf32>
    %283 = vector.shape_cast %282 : vector<1x8x8xf32> to vector<8x8xf32>
    %284 = vector.extract_strided_slice %279 {offsets = [2, 0, 0], sizes = [1, 8, 8], strides = [1, 1, 1]} : vector<4x8x8xf32> to vector<1x8x8xf32>
    %285 = vector.shape_cast %284 : vector<1x8x8xf32> to vector<8x8xf32>
    %286 = vector.extract_strided_slice %279 {offsets = [3, 0, 0], sizes = [1, 8, 8], strides = [1, 1, 1]} : vector<4x8x8xf32> to vector<1x8x8xf32>
    %287 = vector.shape_cast %286 : vector<1x8x8xf32> to vector<8x8xf32>
    %288 = tpu.concatenate %281, %283, %285, %287 in 1 : vector<8x8xf32>, vector<8x8xf32>, vector<8x8xf32>, vector<8x8xf32> -> vector<8x32xf32>
    %c1_119 = arith.constant 1 : index
    %c0_120 = arith.constant 0 : index
    %c0_121 = arith.constant 0 : index
    %289 = vector.load %arg9[%c1_119, %c0_120, %c0_121] : memref<2x32x32xf32, #tpu.memory_space<vmem>>, vector<1x32x32xf32>
    %290 = vector.shape_cast %289 : vector<1x32x32xf32> to vector<32x32xf32>
    %cst_122 = arith.constant dense<0.000000e+00> : vector<8x32xf32>
    %291 = tpu.matmul %288, %290, %cst_122 {dimension_numbers = #tpu.dot_dimension_numbers<[1], [0], [0], [1], [0, 0, 1, 1], [], []>} : vector<8x32xf32>, vector<32x32xf32>, vector<8x32xf32> -> vector<8x32xf32>
    %c1_123 = arith.constant 1 : index
    %c0_124 = arith.constant 0 : index
    %c0_125 = arith.constant 0 : index
    %292 = vector.load %arg10[%c1_123, %c0_124, %c0_125] : memref<2x1x32xf32, #tpu.memory_space<vmem>>, vector<1x1x32xf32>
    %293 = vector.shape_cast %292 : vector<1x1x32xf32> to vector<1x32xf32>
    %294 = vector.broadcast %293 : vector<1x32xf32> to vector<8x32xf32>
    %295 = arith.addf %291, %294 : vector<8x32xf32>
    %296 = vector.extract_strided_slice %222 {offsets = [0, 0, 0], sizes = [1, 8, 32], strides = [1, 1, 1]} : vector<3x8x32xf32> to vector<1x8x32xf32>
    %297 = vector.shape_cast %296 : vector<1x8x32xf32> to vector<8x32xf32>
    %298 = arith.addf %295, %297 : vector<8x32xf32>
    %c1_126 = arith.constant 1 : index
    %c0_127 = arith.constant 0 : index
    %c0_128 = arith.constant 0 : index
    %299 = vector.load %arg11[%c1_126, %c0_127, %c0_128] : memref<2x1x32xf32, #tpu.memory_space<vmem>>, vector<1x1x32xf32>
    %300 = vector.shape_cast %299 : vector<1x1x32xf32> to vector<1x32xf32>
    %c1_129 = arith.constant 1 : index
    %c0_130 = arith.constant 0 : index
    %c0_131 = arith.constant 0 : index
    %301 = vector.load %arg12[%c1_129, %c0_130, %c0_131] : memref<2x1x32xf32, #tpu.memory_space<vmem>>, vector<1x1x32xf32>
    %302 = vector.shape_cast %301 : vector<1x1x32xf32> to vector<1x32xf32>
    %cst_132 = arith.constant dense<0.000000e+00> : vector<8xf32>
    %303 = vector.multi_reduction <add>, %298, %cst_132 [1] : vector<8x32xf32> to vector<8xf32>
    %304 = vector.shape_cast %303 : vector<8xf32> to vector<8x1xf32>
    %cst_133 = arith.constant 3.200000e+01 : f32
    %305 = vector.broadcast %cst_133 : f32 to vector<8x1xf32>
    %306 = arith.divf %304, %305 : vector<8x1xf32>
    %307 = vector.broadcast %306 : vector<8x1xf32> to vector<8x32xf32>
    %308 = arith.subf %298, %307 : vector<8x32xf32>
    %309 = arith.mulf %308, %308 : vector<8x32xf32>
    %cst_134 = arith.constant dense<0.000000e+00> : vector<8xf32>
    %310 = vector.multi_reduction <add>, %309, %cst_134 [1] : vector<8x32xf32> to vector<8xf32>
    %311 = vector.shape_cast %310 : vector<8xf32> to vector<8x1xf32>
    %cst_135 = arith.constant 3.200000e+01 : f32
    %312 = vector.broadcast %cst_135 : f32 to vector<8x1xf32>
    %313 = arith.divf %311, %312 : vector<8x1xf32>
    %314 = vector.broadcast %306 : vector<8x1xf32> to vector<8x32xf32>
    %315 = arith.subf %298, %314 : vector<8x32xf32>
    %cst_136 = arith.constant 9.99999974E-6 : f32
    %316 = vector.broadcast %cst_136 : f32 to vector<8x1xf32>
    %317 = arith.addf %313, %316 : vector<8x1xf32>
    %318 = math.rsqrt %317 : vector<8x1xf32>
    %319 = vector.broadcast %318 : vector<8x1xf32> to vector<8x32xf32>
    %320 = arith.mulf %315, %319 : vector<8x32xf32>
    %321 = vector.broadcast %300 : vector<1x32xf32> to vector<8x32xf32>
    %322 = arith.mulf %320, %321 : vector<8x32xf32>
    %323 = vector.broadcast %302 : vector<1x32xf32> to vector<8x32xf32>
    %324 = arith.addf %322, %323 : vector<8x32xf32>
    %c1_137 = arith.constant 1 : index
    %c0_138 = arith.constant 0 : index
    %c0_139 = arith.constant 0 : index
    %325 = vector.load %arg13[%c1_137, %c0_138, %c0_139] : memref<2x32x64xf32, #tpu.memory_space<vmem>>, vector<1x32x64xf32>
    %326 = vector.shape_cast %325 : vector<1x32x64xf32> to vector<32x64xf32>
    %cst_140 = arith.constant dense<0.000000e+00> : vector<8x64xf32>
    %327 = tpu.matmul %324, %326, %cst_140 {dimension_numbers = #tpu.dot_dimension_numbers<[1], [0], [0], [1], [0, 0, 1, 1], [], []>} : vector<8x32xf32>, vector<32x64xf32>, vector<8x64xf32> -> vector<8x64xf32>
    %c1_141 = arith.constant 1 : index
    %c0_142 = arith.constant 0 : index
    %c0_143 = arith.constant 0 : index
    %328 = vector.load %arg14[%c1_141, %c0_142, %c0_143] : memref<2x1x64xf32, #tpu.memory_space<vmem>>, vector<1x1x64xf32>
    %329 = vector.shape_cast %328 : vector<1x1x64xf32> to vector<1x64xf32>
    %330 = vector.broadcast %329 : vector<1x64xf32> to vector<8x64xf32>
    %331 = arith.addf %327, %330 : vector<8x64xf32>
    %cst_144 = arith.constant 0.000000e+00 : f32
    %332 = vector.broadcast %cst_144 : f32 to vector<8x64xf32>
    %333 = arith.maximumf %331, %332 : vector<8x64xf32>
    %c1_145 = arith.constant 1 : index
    %c0_146 = arith.constant 0 : index
    %c0_147 = arith.constant 0 : index
    %334 = vector.load %arg15[%c1_145, %c0_146, %c0_147] : memref<2x64x32xf32, #tpu.memory_space<vmem>>, vector<1x64x32xf32>
    %335 = vector.shape_cast %334 : vector<1x64x32xf32> to vector<64x32xf32>
    %cst_148 = arith.constant dense<0.000000e+00> : vector<8x32xf32>
    %336 = tpu.matmul %333, %335, %cst_148 {dimension_numbers = #tpu.dot_dimension_numbers<[1], [0], [0], [1], [0, 0, 1, 1], [], []>} : vector<8x64xf32>, vector<64x32xf32>, vector<8x32xf32> -> vector<8x32xf32>
    %c1_149 = arith.constant 1 : index
    %c0_150 = arith.constant 0 : index
    %c0_151 = arith.constant 0 : index
    %337 = vector.load %arg16[%c1_149, %c0_150, %c0_151] : memref<2x1x32xf32, #tpu.memory_space<vmem>>, vector<1x1x32xf32>
    %338 = vector.shape_cast %337 : vector<1x1x32xf32> to vector<1x32xf32>
    %339 = vector.broadcast %338 : vector<1x32xf32> to vector<8x32xf32>
    %340 = arith.addf %336, %339 : vector<8x32xf32>
    %341 = arith.addf %340, %324 : vector<8x32xf32>
    %c1_152 = arith.constant 1 : index
    %c0_153 = arith.constant 0 : index
    %c0_154 = arith.constant 0 : index
    %342 = vector.load %arg17[%c1_152, %c0_153, %c0_154] : memref<2x1x32xf32, #tpu.memory_space<vmem>>, vector<1x1x32xf32>
    %343 = vector.shape_cast %342 : vector<1x1x32xf32> to vector<1x32xf32>
    %c1_155 = arith.constant 1 : index
    %c0_156 = arith.constant 0 : index
    %c0_157 = arith.constant 0 : index
    %344 = vector.load %arg18[%c1_155, %c0_156, %c0_157] : memref<2x1x32xf32, #tpu.memory_space<vmem>>, vector<1x1x32xf32>
    %345 = vector.shape_cast %344 : vector<1x1x32xf32> to vector<1x32xf32>
    %cst_158 = arith.constant dense<0.000000e+00> : vector<8xf32>
    %346 = vector.multi_reduction <add>, %341, %cst_158 [1] : vector<8x32xf32> to vector<8xf32>
    %347 = vector.shape_cast %346 : vector<8xf32> to vector<8x1xf32>
    %cst_159 = arith.constant 3.200000e+01 : f32
    %348 = vector.broadcast %cst_159 : f32 to vector<8x1xf32>
    %349 = arith.divf %347, %348 : vector<8x1xf32>
    %350 = vector.broadcast %349 : vector<8x1xf32> to vector<8x32xf32>
    %351 = arith.subf %341, %350 : vector<8x32xf32>
    %352 = arith.mulf %351, %351 : vector<8x32xf32>
    %cst_160 = arith.constant dense<0.000000e+00> : vector<8xf32>
    %353 = vector.multi_reduction <add>, %352, %cst_160 [1] : vector<8x32xf32> to vector<8xf32>
    %354 = vector.shape_cast %353 : vector<8xf32> to vector<8x1xf32>
    %cst_161 = arith.constant 3.200000e+01 : f32
    %355 = vector.broadcast %cst_161 : f32 to vector<8x1xf32>
    %356 = arith.divf %354, %355 : vector<8x1xf32>
    %357 = vector.broadcast %349 : vector<8x1xf32> to vector<8x32xf32>
    %358 = arith.subf %341, %357 : vector<8x32xf32>
    %cst_162 = arith.constant 9.99999974E-6 : f32
    %359 = vector.broadcast %cst_162 : f32 to vector<8x1xf32>
    %360 = arith.addf %356, %359 : vector<8x1xf32>
    %361 = math.rsqrt %360 : vector<8x1xf32>
    %362 = vector.broadcast %361 : vector<8x1xf32> to vector<8x32xf32>
    %363 = arith.mulf %358, %362 : vector<8x32xf32>
    %364 = vector.broadcast %343 : vector<1x32xf32> to vector<8x32xf32>
    %365 = arith.mulf %363, %364 : vector<8x32xf32>
    %366 = vector.broadcast %345 : vector<1x32xf32> to vector<8x32xf32>
    %367 = arith.addf %365, %366 : vector<8x32xf32>
    %cst_163 = arith.constant dense<0xFF800000> : vector<32xf32>
    %368 = vector.multi_reduction <maximumf>, %367, %cst_163 [0] : vector<8x32xf32> to vector<32xf32>
    %369 = vector.shape_cast %368 : vector<32xf32> to vector<1x32xf32>
    %c0_164 = arith.constant 0 : index
    %c0_165 = arith.constant 0 : index
    %370 = vector.load %arg19[%c0_164, %c0_165] : memref<32x4xf32, #tpu.memory_space<vmem>>, vector<32x4xf32>
    %cst_166 = arith.constant dense<0.000000e+00> : vector<1x4xf32>
    %371 = tpu.matmul %369, %370, %cst_166 {dimension_numbers = #tpu.dot_dimension_numbers<[1], [0], [0], [1], [0, 0, 1, 1], [], []>} : vector<1x32xf32>, vector<32x4xf32>, vector<1x4xf32> -> vector<1x4xf32>
    %c0_167 = arith.constant 0 : index
    %c0_168 = arith.constant 0 : index
    %372 = vector.load %arg20[%c0_167, %c0_168] : memref<1x4xf32, #tpu.memory_space<vmem>>, vector<1x4xf32>
    %373 = arith.addf %371, %372 : vector<1x4xf32>
    %cst_169 = arith.constant dense<0xFF800000> : vector<1xf32>
    %374 = vector.multi_reduction <maximumf>, %373, %cst_169 [1] : vector<1x4xf32> to vector<1xf32>
    %375 = vector.shape_cast %374 : vector<1xf32> to vector<1x1xf32>
    %376 = vector.broadcast %375 : vector<1x1xf32> to vector<1x4xf32>
    %377 = arith.subf %373, %376 : vector<1x4xf32>
    %378 = math.exp %377 : vector<1x4xf32>
    %cst_170 = arith.constant dense<0.000000e+00> : vector<1xf32>
    %379 = vector.multi_reduction <add>, %378, %cst_170 [1] : vector<1x4xf32> to vector<1xf32>
    %380 = vector.shape_cast %379 : vector<1xf32> to vector<1x1xf32>
    %381 = math.log %380 : vector<1x1xf32>
    %382 = vector.broadcast %381 : vector<1x1xf32> to vector<1x4xf32>
    %383 = arith.subf %377, %382 : vector<1x4xf32>
    %c0_171 = arith.constant 0 : index
    %c0_172 = arith.constant 0 : index
    %c0_173 = arith.constant 0 : index
    %384 = vector.load %arg21[%c0_171, %c0_172, %c0_173] : memref<1x1x4xf32, #tpu.memory_space<vmem>>, vector<1x1x4xf32>
    %385 = vector.shape_cast %384 : vector<1x1x4xf32> to vector<1x4xf32>
    %386 = vector.shape_cast %383 : vector<1x4xf32> to vector<1x1x4xf32>
    tpu.vector_store %arg21[%c0_171, %c0_172, %c0_173], %386 {strides = array<i32>} : memref<1x1x4xf32, #tpu.memory_space<vmem>>, vector<1x1x4xf32>,
    return
  }
  func.func @transform_0(%arg0: i32) -> (i32, i32, i32, i32) {
    %c0_i32 = arith.constant 0 : i32
    %c0_i32_0 = arith.constant 0 : i32
    %c0_i32_1 = arith.constant 0 : i32
    %c0_i32_2 = arith.constant 0 : i32
    return %arg0, %c0_i32, %c0_i32_0, %c0_i32_1 : i32, i32, i32, i32
  }
  func.func @transform_1(%arg0: i32) -> (i32, i32, i32) {
    %c0_i32 = arith.constant 0 : i32
    %c0_i32_0 = arith.constant 0 : i32
    %c0_i32_1 = arith.constant 0 : i32
    return %arg0, %c0_i32, %c0_i32_0 : i32, i32, i32
  }
  func.func @transform_2(%arg0: i32) -> (i32, i32, i32, i32) {
    %c0_i32 = arith.constant 0 : i32
    %c0_i32_0 = arith.constant 0 : i32
    %c0_i32_1 = arith.constant 0 : i32
    %c0_i32_2 = arith.constant 0 : i32
    %c0_i32_3 = arith.constant 0 : i32
    return %c0_i32, %c0_i32_0, %c0_i32_1, %c0_i32_2 : i32, i32, i32, i32
  }
  func.func @transform_3(%arg0: i32) -> (i32, i32, i32, i32) {
    %c0_i32 = arith.constant 0 : i32
    %c0_i32_0 = arith.constant 0 : i32
    %c0_i32_1 = arith.constant 0 : i32
    %c0_i32_2 = arith.constant 0 : i32
    %c0_i32_3 = arith.constant 0 : i32
    return %c0_i32, %c0_i32_0, %c0_i32_1, %c0_i32_2 : i32, i32, i32, i32
  }
  func.func @transform_4(%arg0: i32) -> (i32, i32) {
    %c0_i32 = arith.constant 0 : i32
    %c0_i32_0 = arith.constant 0 : i32
    %c0_i32_1 = arith.constant 0 : i32
    return %c0_i32, %c0_i32_0 : i32, i32
  }
  func.func @transform_5(%arg0: i32) -> (i32, i32) {
    %c0_i32 = arith.constant 0 : i32
    %c0_i32_0 = arith.constant 0 : i32
    %c0_i32_1 = arith.constant 0 : i32
    return %c0_i32, %c0_i32_0 : i32, i32
  }
  func.func @transform_6(%arg0: i32) -> (i32, i32, i32, i32) {
    %c0_i32 = arith.constant 0 : i32
    %c0_i32_0 = arith.constant 0 : i32
    %c0_i32_1 = arith.constant 0 : i32
    %c0_i32_2 = arith.constant 0 : i32
    %c0_i32_3 = arith.constant 0 : i32
    return %c0_i32, %c0_i32_0, %c0_i32_1, %c0_i32_2 : i32, i32, i32, i32
  }
  func.func @transform_7(%arg0: i32) -> (i32, i32, i32, i32) {
    %c0_i32 = arith.constant 0 : i32
    %c0_i32_0 = arith.constant 0 : i32
    %c0_i32_1 = arith.constant 0 : i32
    %c0_i32_2 = arith.constant 0 : i32
    %c0_i32_3 = arith.constant 0 : i32
    return %c0_i32, %c0_i32_0, %c0_i32_1, %c0_i32_2 : i32, i32, i32, i32
  }
  func.func @transform_8(%arg0: i32) -> (i32, i32, i32) {
    %c0_i32 = arith.constant 0 : i32
    %c0_i32_0 = arith.constant 0 : i32
    %c0_i32_1 = arith.constant 0 : i32
    %c0_i32_2 = arith.constant 0 : i32
    return %c0_i32, %c0_i32_0, %c0_i32_1 : i32, i32, i32
  }
  func.func @transform_9(%arg0: i32) -> (i32, i32, i32) {
    %c0_i32 = arith.constant 0 : i32
    %c0_i32_0 = arith.constant 0 : i32
    %c0_i32_1 = arith.constant 0 : i32
    %c0_i32_2 = arith.constant 0 : i32
    return %c0_i32, %c0_i32_0, %c0_i32_1 : i32, i32, i32
  }
  func.func @transform_10(%arg0: i32) -> (i32, i32, i32) {
    %c0_i32 = arith.constant 0 : i32
    %c0_i32_0 = arith.constant 0 : i32
    %c0_i32_1 = arith.constant 0 : i32
    %c0_i32_2 = arith.constant 0 : i32
    return %c0_i32, %c0_i32_0, %c0_i32_1 : i32, i32, i32
  }
  func.func @transform_11(%arg0: i32) -> (i32, i32, i32) {
    %c0_i32 = arith.constant 0 : i32
    %c0_i32_0 = arith.constant 0 : i32
    %c0_i32_1 = arith.constant 0 : i32
    %c0_i32_2 = arith.constant 0 : i32
    return %c0_i32, %c0_i32_0, %c0_i32_1 : i32, i32, i32
  }
  func.func @transform_12(%arg0: i32) -> (i32, i32, i32) {
    %c0_i32 = arith.constant 0 : i32
    %c0_i32_0 = arith.constant 0 : i32
    %c0_i32_1 = arith.constant 0 : i32
    %c0_i32_2 = arith.constant 0 : i32
    return %c0_i32, %c0_i32_0, %c0_i32_1 : i32, i32, i32
  }
  func.func @transform_13(%arg0: i32) -> (i32, i32, i32) {
    %c0_i32 = arith.constant 0 : i32
    %c0_i32_0 = arith.constant 0 : i32
    %c0_i32_1 = arith.constant 0 : i32
    %c0_i32_2 = arith.constant 0 : i32
    return %c0_i32, %c0_i32_0, %c0_i32_1 : i32, i32, i32
  }
  func.func @transform_14(%arg0: i32) -> (i32, i32, i32) {
    %c0_i32 = arith.constant 0 : i32
    %c0_i32_0 = arith.constant 0 : i32
    %c0_i32_1 = arith.constant 0 : i32
    %c0_i32_2 = arith.constant 0 : i32
    return %c0_i32, %c0_i32_0, %c0_i32_1 : i32, i32, i32
  }
  func.func @transform_15(%arg0: i32) -> (i32, i32, i32) {
    %c0_i32 = arith.constant 0 : i32
    %c0_i32_0 = arith.constant 0 : i32
    %c0_i32_1 = arith.constant 0 : i32
    %c0_i32_2 = arith.constant 0 : i32
    return %c0_i32, %c0_i32_0, %c0_i32_1 : i32, i32, i32
  }
  func.func @transform_16(%arg0: i32) -> (i32, i32, i32) {
    %c0_i32 = arith.constant 0 : i32
    %c0_i32_0 = arith.constant 0 : i32
    %c0_i32_1 = arith.constant 0 : i32
    %c0_i32_2 = arith.constant 0 : i32
    return %c0_i32, %c0_i32_0, %c0_i32_1 : i32, i32, i32
  }
  func.func @transform_17(%arg0: i32) -> (i32, i32, i32) {
    %c0_i32 = arith.constant 0 : i32
    %c0_i32_0 = arith.constant 0 : i32
    %c0_i32_1 = arith.constant 0 : i32
    %c0_i32_2 = arith.constant 0 : i32
    return %c0_i32, %c0_i32_0, %c0_i32_1 : i32, i32, i32
  }
  func.func @transform_18(%arg0: i32) -> (i32, i32) {
    %c0_i32 = arith.constant 0 : i32
    %c0_i32_0 = arith.constant 0 : i32
    %c0_i32_1 = arith.constant 0 : i32
    return %c0_i32, %c0_i32_0 : i32, i32
  }
  func.func @transform_19(%arg0: i32) -> (i32, i32) {
    %c0_i32 = arith.constant 0 : i32
    %c0_i32_0 = arith.constant 0 : i32
    %c0_i32_1 = arith.constant 0 : i32
    return %c0_i32, %c0_i32_0 : i32, i32
  }
  func.func @transform_20(%arg0: i32) -> (i32, i32, i32) {
    %c0_i32 = arith.constant 0 : i32
    %c0_i32_0 = arith.constant 0 : i32
    %c0_i32_1 = arith.constant 0 : i32
    return %arg0, %c0_i32, %c0_i32_0 : i32, i32, i32
  }
  func.func @transform_21(%arg0: i32) -> (i32, i32, i32, i32, i32) {
    %c0_i32 = arith.constant 0 : i32
    %c0_i32_0 = arith.constant 0 : i32
    %c0_i32_1 = arith.constant 0 : i32
    %c0_i32_2 = arith.constant 0 : i32
    %c0_i32_3 = arith.constant 0 : i32
    return %arg0, %c0_i32, %c0_i32_0, %c0_i32_1, %c0_i32_2 : i32, i32, i32, i32, i32
  }
}

</mosaic_0001>

<llo_original>
// kernel: transformer_baseline_forward.1
$region0: #{transformer_baseline_forward.1}
  #allocation0 [shape = 'u32[]', space=smem, size = 0x4, offset = 0x4, fixed_abs, tag = 'smem constant byte address 0x4 - core index']
  #allocation1 [shape = 'u32[144,128]{1,0:T(1,128)}', space=vmem, size = 0x12000, scoped, tag = 'internal scratch']
  %s0 = inlined_call_operand.vmem [shape: f32[2,8,6,32], index: 0, kind: input, shape index: {}]
  %s1 = inlined_call_operand.hbm [shape: f32[2,8,32], index: 1, kind: input, shape index: {}]
  %s2 = inlined_call_operand.vmem [shape: f32[2,3,32,32], index: 2, kind: input, shape index: {}]
  %s3 = inlined_call_operand.vmem [shape: f32[2,3,1,32], index: 3, kind: input, shape index: {}]
  %s4 = inlined_call_operand.vmem [shape: f32[1,32], index: 4, kind: input, shape index: {}]
  %s5 = inlined_call_operand.vmem [shape: f32[1,32], index: 5, kind: input, shape index: {}]
  %s6 = inlined_call_operand.vmem [shape: f32[2,3,32,32], index: 6, kind: input, shape index: {}]
  %s7 = inlined_call_operand.vmem [shape: f32[2,3,1,32], index: 7, kind: input, shape index: {}]
  %s8 = inlined_call_operand.hbm [shape: f32[2,32,32], index: 8, kind: input, shape index: {}]
  %s9 = inlined_call_operand.vmem [shape: f32[2,1,32], index: 9, kind: input, shape index: {}]
  %s10 = inlined_call_operand.vmem [shape: f32[2,1,32], index: 10, kind: input, shape index: {}]
  %s11 = inlined_call_operand.hbm [shape: f32[2,1,32], index: 11, kind: input, shape index: {}]
  %s12 = inlined_call_operand.hbm [shape: f32[2,32,64], index: 12, kind: input, shape index: {}]
  %s13 = inlined_call_operand.hbm [shape: f32[2,1,64], index: 13, kind: input, shape index: {}]
  %s14 = inlined_call_operand.vmem [shape: f32[2,64,32], index: 14, kind: input, shape index: {}]
  %s15 = inlined_call_operand.hbm [shape: f32[2,1,32], index: 15, kind: input, shape index: {}]
  %s16 = inlined_call_operand.hbm [shape: f32[2,1,32], index: 16, kind: input, shape index: {}]
  %s17 = inlined_call_operand.hbm [shape: f32[2,1,32], index: 17, kind: input, shape index: {}]
  %s18 = inlined_call_operand.vmem [shape: f32[32,4], index: 18, kind: input, shape index: {}]
  %s19 = inlined_call_operand.hbm [shape: f32[1,4], index: 19, kind: input, shape index: {}]
  %s20 = inlined_call_operand.hbm [shape: f32[2,1,4], index: 20, kind: output, shape index: {0}]
  %s21 = inlined_call_operand.vmem [shape: f32[2,2,4,8,8], index: 21, kind: output, shape index: {1}]
  %22 = xla_tuple %s20, %s21
  %s23 = sld [smem:[#allocation0]]
  $region157: #{transformer_baseline_forward.1} parent=0
    _
  %s25 = ssub.s32 1, %s23
  %s26 = scalar_select 0, %s25, %s23
  $region1: #{transformer_baseline_forward.1} parent=0
    #allocation2 [shape = 'u8[8192]{0}', space=vmem, size = 0x2000, scoped, tag = 'input window, operand 1']
    #allocation3 [shape = 's32[2]{0}', space=sflag, size = 0x8, scoped, tag = 'scoped memory for transformer_baseline_forward.1']
    #allocation4 [shape = 's32[2]{0}', space=sflag, size = 0x8, scoped, tag = 'scoped memory for transformer_baseline_forward.1']
    #allocation5 [shape = 'u8[32768]{0}', space=vmem, size = 0x8000, scoped, tag = 'input window, operand 8, single buffered']
    #allocation6 [shape = 's32[1]{0}', space=sflag, size = 0x4, scoped, tag = 'scoped memory for transformer_baseline_forward.1']
    #allocation7 [shape = 'u8[1024]{0}', space=vmem, size = 0x400, scoped, tag = 'input window, operand 11, single buffered']
    #allocation8 [shape = 'u8[32768]{0}', space=vmem, size = 0x8000, scoped, tag = 'input window, operand 12, single buffered']
    #allocation9 [shape = 's32[1]{0}', space=sflag, size = 0x4, scoped, tag = 'scoped memory for transformer_baseline_forward.1']
    #allocation10 [shape = 'u8[1024]{0}', space=vmem, size = 0x400, scoped, tag = 'input window, operand 13, single buffered']
    #allocation11 [shape = 'u8[1024]{0}', space=vmem, size = 0x400, scoped, tag = 'input window, operand 15, single buffered']
    #allocation12 [shape = 's32[1]{0}', space=sflag, size = 0x4, scoped, tag = 'scoped memory for transformer_baseline_forward.1']
    #allocation13 [shape = 'u8[1024]{0}', space=vmem, size = 0x400, scoped, tag = 'input window, operand 16, single buffered']
    #allocation14 [shape = 'u8[1024]{0}', space=vmem, size = 0x400, scoped, tag = 'input window, operand 17, single buffered']
    #allocation15 [shape = 's32[1]{0}', space=sflag, size = 0x4, scoped, tag = 'scoped memory for transformer_baseline_forward.1']
    #allocation16 [shape = 'u8[512]{0}', space=vmem, size = 0x400, scoped, tag = 'input window, operand 19, single buffered']
    #allocation17 [shape = 'u8[1024]{0}', space=vmem, size = 0x400, scoped, tag = 'output window, operand 0']
    %27 = vsyncpa [#allocation3], 0
    %s28 = scalar_lea.sflag [#allocation3], 1
    %29 = vsyncpa %s28, 0
    %30 = vsyncpa [#allocation6], 0
    %31 = vsyncpa [#allocation9], 0
    %32 = vsyncpa [#allocation12], 0
    %33 = vsyncpa [#allocation15], 0
    %34 = vsyncpa [#allocation4], 0
    %s35 = scalar_lea.sflag [#allocation4], 1
    %36 = vsyncpa %s35, 0
    loop: start=0, step=1, limit=4
    $region2: #{transformer_baseline_forward.1} parent=1 // loop_pre_header
      _
    $region3: #{transformer_baseline_forward.1} parent=1 // loop_header
      %s38 = sphi 0, %s42
      %p39 = scmp.ge.s32.totalorder %s38, 4
      %s48 = sphi 0, %s50
      %s51 = sphi 0, %s48
      %s52 = sphi 0, %s51
      %s68 = sphi 0, %s52
      %s74 = sphi 0, %s76
      %s77 = sphi 0, %s74
      %s78 = sphi 0, %s77
      %s94 = sphi 0, %s78
      %s98 = sphi 0, %s98
      %s100 = sphi 0, %s98
      %s101 = sphi 0, %s100
      %s115 = sphi 0, %s101
      %s119 = sphi 0, %s119
      %s121 = sphi 0, %s119
      %s122 = sphi 0, %s121
      %s136 = sphi 0, %s122
      %s140 = sphi 0, %s140
      %s142 = sphi 0, %s140
      %s143 = sphi 0, %s142
      %s157 = sphi 0, %s143
      %s161 = sphi 0, %s161
      %s163 = sphi 0, %s161
      %s164 = sphi 0, %s163
      %s178 = sphi 0, %s164
      %s182 = sphi 0, %s182
      %s184 = sphi 0, %s182
      %s185 = sphi 0, %s184
      %s199 = sphi 0, %s185
      %s203 = sphi 0, %s203
      %s205 = sphi 0, %s203
      %s206 = sphi 0, %s205
      %s220 = sphi 0, %s206
      %s224 = sphi 0, %s224
      %s226 = sphi 0, %s224
      %s227 = sphi 0, %s226
      %s241 = sphi 0, %s227
      %s245 = sphi 0, %s245
      %s247 = sphi 0, %s245
      %s248 = sphi 0, %s247
      %s262 = sphi 0, %s248
      %s266 = sphi 0, %s266
      %s268 = sphi 0, %s266
      %s269 = sphi 0, %s268
      %s283 = sphi 0, %s269
      %s287 = sphi 0, %s287
      %s289 = sphi 0, %s287
      %s290 = sphi 0, %s289
      %s304 = sphi 0, %s290
      %s308 = sphi 0, %s308
      %s310 = sphi 0, %s308
      %s311 = sphi 0, %s310
      %s325 = sphi 0, %s311
      %s329 = sphi 0, %s329
      %s331 = sphi 0, %s329
      %s332 = sphi 0, %s331
      %s346 = sphi 0, %s332
      %s350 = sphi 0, %s350
      %s352 = sphi 0, %s350
      %s353 = sphi 0, %s352
      %s367 = sphi 0, %s353
      %s371 = sphi 0, %s371
      %s373 = sphi 0, %s371
      %s374 = sphi 0, %s373
      %s388 = sphi 0, %s374
      %s392 = sphi 0, %s392
      %s394 = sphi 0, %s392
      %s395 = sphi 0, %s394
      %s409 = sphi 0, %s395
      %s413 = sphi 0, %s413
      %s415 = sphi 0, %s413
      %s416 = sphi 0, %s415
      %s430 = sphi 0, %s416
      %s434 = sphi 0, %s434
      %s436 = sphi 0, %s434
      %s437 = sphi 0, %s436
      %s451 = sphi 0, %s437
      %s455 = sphi 0, %s455
      %s457 = sphi 0, %s455
      %s458 = sphi 0, %s457
      %s472 = sphi 0, %s458
      %s478 = sphi 0, %s480
      %s481 = sphi 0, %s478
      %s482 = sphi 0, %s481
      %s498 = sphi 0, %s482
      %s504 = sphi 0, %s506
      %s507 = sphi 0, %s504
      %s508 = sphi 0, %s507
      %s524 = sphi 0, %s508
    $region4: #{transformer_baseline_forward.1} parent=1 // loop_header_branch
      %41 = sbr.rel (%p39) target = $region8
    $region5: #{transformer_baseline_forward.1} parent=1 // loop_body
      %s43 = ssub.s32 %s38, 1
      %s44 = ssub.s32 %s38, 2
      %s45 = sadd.s32 %s38, 1
      %s46 = ssub.s32 %s38, %s45
      %p47 = scmp.eq.s32.totalorder %s46, 0
      %s49 = sadd.s32 %s48, 1
      %s50 = scalar_select %p47, %s48, %s49
      %p53 = pneg %p47
      %p54 = scmp.eq.s32.totalorder %s38, 1
      %p55 = por %p53, %p54
      %p56 = scmp.ne.s32.totalorder %s48, %s51
      %p57 = scmp.eq.s32.totalorder %s38, 0
      %p58 = por %p56, %p57
      %p59 = scmp.ne.s32.totalorder %s48, %s51
      %p60 = scmp.eq.s32.totalorder %s43, 1
      %p61 = por %p59, %p60
      %p62 = scmp.ne.s32.totalorder %s51, %s52
      %p63 = scmp.eq.s32.totalorder %s43, 0
      %p64 = por %p62, %p63
      %p65 = scmp.ne.s32.totalorder %s51, %s52
      %p66 = scmp.eq.s32.totalorder %s44, 1
      %p67 = por %p65, %p66
      %p69 = scmp.ne.s32.totalorder %s52, %s68
      %p70 = scmp.eq.s32.totalorder %s44, 0
      %p71 = por %p69, %p70
      %s72 = ssub.s32 %s38, %s45
      %p73 = scmp.eq.s32.totalorder %s72, 0
      %s75 = sadd.s32 %s74, 1
      %s76 = scalar_select %p73, %s74, %s75
      %p79 = pneg %p73
      %p80 = scmp.eq.s32.totalorder %s38, 1
      %p81 = por %p79, %p80
      %p82 = scmp.ne.s32.totalorder %s74, %s77
      %p83 = scmp.eq.s32.totalorder %s38, 0
      %p84 = por %p82, %p83
      %p85 = scmp.ne.s32.totalorder %s74, %s77
      %p86 = scmp.eq.s32.totalorder %s43, 1
      %p87 = por %p85, %p86
      %p88 = scmp.ne.s32.totalorder %s77, %s78
      %p89 = scmp.eq.s32.totalorder %s43, 0
      %p90 = por %p88, %p89
      %p91 = scmp.ne.s32.totalorder %s77, %s78
      %p92 = scmp.eq.s32.totalorder %s44, 1
      %p93 = por %p91, %p92
      %p95 = scmp.ne.s32.totalorder %s78, %s94
      %p96 = scmp.eq.s32.totalorder %s44, 0
      %p97 = por %p95, %p96
      %s99 = sadd.s32 %s98, 1
      %p102 = scmp.eq.s32.totalorder %s38, 1
      %p103 = scmp.ne.s32.totalorder %s98, %s100
      %p104 = scmp.eq.s32.totalorder %s38, 0
      %p105 = por %p103, %p104
      %p106 = scmp.ne.s32.totalorder %s98, %s100
      %p107 = scmp.eq.s32.totalorder %s43, 1
      %p108 = por %p106, %p107
      %p109 = scmp.ne.s32.totalorder %s100, %s101
      %p110 = scmp.eq.s32.totalorder %s43, 0
      %p111 = por %p109, %p110
      %p112 = scmp.ne.s32.totalorder %s100, %s101
      %p113 = scmp.eq.s32.totalorder %s44, 1
      %p114 = por %p112, %p113
      %p116 = scmp.ne.s32.totalorder %s101, %s115
      %p117 = scmp.eq.s32.totalorder %s44, 0
      %p118 = por %p116, %p117
      %s120 = sadd.s32 %s119, 1
      %p123 = scmp.eq.s32.totalorder %s38, 1
      %p124 = scmp.ne.s32.totalorder %s119, %s121
      %p125 = scmp.eq.s32.totalorder %s38, 0
      %p126 = por %p124, %p125
      %p127 = scmp.ne.s32.totalorder %s119, %s121
      %p128 = scmp.eq.s32.totalorder %s43, 1
      %p129 = por %p127, %p128
      %p130 = scmp.ne.s32.totalorder %s121, %s122
      %p131 = scmp.eq.s32.totalorder %s43, 0
      %p132 = por %p130, %p131
      %p133 = scmp.ne.s32.totalorder %s121, %s122
      %p134 = scmp.eq.s32.totalorder %s44, 1
      %p135 = por %p133, %p134
      %p137 = scmp.ne.s32.totalorder %s122, %s136
      %p138 = scmp.eq.s32.totalorder %s44, 0
      %p139 = por %p137, %p138
      %s141 = sadd.s32 %s140, 1
      %p144 = scmp.eq.s32.totalorder %s38, 1
      %p145 = scmp.ne.s32.totalorder %s140, %s142
      %p146 = scmp.eq.s32.totalorder %s38, 0
      %p147 = por %p145, %p146
      %p148 = scmp.ne.s32.totalorder %s140, %s142
      %p149 = scmp.eq.s32.totalorder %s43, 1
      %p150 = por %p148, %p149
      %p151 = scmp.ne.s32.totalorder %s142, %s143
      %p152 = scmp.eq.s32.totalorder %s43, 0
      %p153 = por %p151, %p152
      %p154 = scmp.ne.s32.totalorder %s142, %s143
      %p155 = scmp.eq.s32.totalorder %s44, 1
      %p156 = por %p154, %p155
      %p158 = scmp.ne.s32.totalorder %s143, %s157
      %p159 = scmp.eq.s32.totalorder %s44, 0
      %p160 = por %p158, %p159
      %s162 = sadd.s32 %s161, 1
      %p165 = scmp.eq.s32.totalorder %s38, 1
      %p166 = scmp.ne.s32.totalorder %s161, %s163
      %p167 = scmp.eq.s32.totalorder %s38, 0
      %p168 = por %p166, %p167
      %p169 = scmp.ne.s32.totalorder %s161, %s163
      %p170 = scmp.eq.s32.totalorder %s43, 1
      %p171 = por %p169, %p170
      %p172 = scmp.ne.s32.totalorder %s163, %s164
      %p173 = scmp.eq.s32.totalorder %s43, 0
      %p174 = por %p172, %p173
      %p175 = scmp.ne.s32.totalorder %s163, %s164
      %p176 = scmp.eq.s32.totalorder %s44, 1
      %p177 = por %p175, %p176
      %p179 = scmp.ne.s32.totalorder %s164, %s178
      %p180 = scmp.eq.s32.totalorder %s44, 0
      %p181 = por %p179, %p180
      %s183 = sadd.s32 %s182, 1
      %p186 = scmp.eq.s32.totalorder %s38, 1
      %p187 = scmp.ne.s32.totalorder %s182, %s184
      %p188 = scmp.eq.s32.totalorder %s38, 0
      %p189 = por %p187, %p188
      %p190 = scmp.ne.s32.totalorder %s182, %s184
      %p191 = scmp.eq.s32.totalorder %s43, 1
      %p192 = por %p190, %p191
      %p193 = scmp.ne.s32.totalorder %s184, %s185
      %p194 = scmp.eq.s32.totalorder %s43, 0
      %p195 = por %p193, %p194
      %p196 = scmp.ne.s32.totalorder %s184, %s185
      %p197 = scmp.eq.s32.totalorder %s44, 1
      %p198 = por %p196, %p197
      %p200 = scmp.ne.s32.totalorder %s185, %s199
      %p201 = scmp.eq.s32.totalorder %s44, 0
      %p202 = por %p200, %p201
      %s204 = sadd.s32 %s203, 1
      %p207 = scmp.eq.s32.totalorder %s38, 1
      %p208 = scmp.ne.s32.totalorder %s203, %s205
      %p209 = scmp.eq.s32.totalorder %s38, 0
      %p210 = por %p208, %p209
      %p211 = scmp.ne.s32.totalorder %s203, %s205
      %p212 = scmp.eq.s32.totalorder %s43, 1
      %p213 = por %p211, %p212
      %p214 = scmp.ne.s32.totalorder %s205, %s206
      %p215 = scmp.eq.s32.totalorder %s43, 0
      %p216 = por %p214, %p215
      %p217 = scmp.ne.s32.totalorder %s205, %s206
      %p218 = scmp.eq.s32.totalorder %s44, 1
      %p219 = por %p217, %p218
      %p221 = scmp.ne.s32.totalorder %s206, %s220
      %p222 = scmp.eq.s32.totalorder %s44, 0
      %p223 = por %p221, %p222
      %s225 = sadd.s32 %s224, 1
      %p228 = scmp.eq.s32.totalorder %s38, 1
      %p229 = scmp.ne.s32.totalorder %s224, %s226
      %p230 = scmp.eq.s32.totalorder %s38, 0
      %p231 = por %p229, %p230
      %p232 = scmp.ne.s32.totalorder %s224, %s226
      %p233 = scmp.eq.s32.totalorder %s43, 1
      %p234 = por %p232, %p233
      %p235 = scmp.ne.s32.totalorder %s226, %s227
      %p236 = scmp.eq.s32.totalorder %s43, 0
      %p237 = por %p235, %p236
      %p238 = scmp.ne.s32.totalorder %s226, %s227
      %p239 = scmp.eq.s32.totalorder %s44, 1
      %p240 = por %p238, %p239
      %p242 = scmp.ne.s32.totalorder %s227, %s241
      %p243 = scmp.eq.s32.totalorder %s44, 0
      %p244 = por %p242, %p243
      %s246 = sadd.s32 %s245, 1
      %p249 = scmp.eq.s32.totalorder %s38, 1
      %p250 = scmp.ne.s32.totalorder %s245, %s247
      %p251 = scmp.eq.s32.totalorder %s38, 0
      %p252 = por %p250, %p251
      %p253 = scmp.ne.s32.totalorder %s245, %s247
      %p254 = scmp.eq.s32.totalorder %s43, 1
      %p255 = por %p253, %p254
      %p256 = scmp.ne.s32.totalorder %s247, %s248
      %p257 = scmp.eq.s32.totalorder %s43, 0
      %p258 = por %p256, %p257
      %p259 = scmp.ne.s32.totalorder %s247, %s248
      %p260 = scmp.eq.s32.totalorder %s44, 1
      %p261 = por %p259, %p260
      %p263 = scmp.ne.s32.totalorder %s248, %s262
      %p264 = scmp.eq.s32.totalorder %s44, 0
      %p265 = por %p263, %p264
      %s267 = sadd.s32 %s266, 1
      %p270 = scmp.eq.s32.totalorder %s38, 1
      %p271 = scmp.ne.s32.totalorder %s266, %s268
      %p272 = scmp.eq.s32.totalorder %s38, 0
      %p273 = por %p271, %p272
      %p274 = scmp.ne.s32.totalorder %s266, %s268
      %p275 = scmp.eq.s32.totalorder %s43, 1
      %p276 = por %p274, %p275
      %p277 = scmp.ne.s32.totalorder %s268, %s269
      %p278 = scmp.eq.s32.totalorder %s43, 0
      %p279 = por %p277, %p278
      %p280 = scmp.ne.s32.totalorder %s268, %s269
      %p281 = scmp.eq.s32.totalorder %s44, 1
      %p282 = por %p280, %p281
      %p284 = scmp.ne.s32.totalorder %s269, %s283
      %p285 = scmp.eq.s32.totalorder %s44, 0
      %p286 = por %p284, %p285
      %s288 = sadd.s32 %s287, 1
      %p291 = scmp.eq.s32.totalorder %s38, 1
      %p292 = scmp.ne.s32.totalorder %s287, %s289
      %p293 = scmp.eq.s32.totalorder %s38, 0
      %p294 = por %p292, %p293
      %p295 = scmp.ne.s32.totalorder %s287, %s289
      %p296 = scmp.eq.s32.totalorder %s43, 1
      %p297 = por %p295, %p296
      %p298 = scmp.ne.s32.totalorder %s289, %s290
      %p299 = scmp.eq.s32.totalorder %s43, 0
      %p300 = por %p298, %p299
      %p301 = scmp.ne.s32.totalorder %s289, %s290
      %p302 = scmp.eq.s32.totalorder %s44, 1
      %p303 = por %p301, %p302
      %p305 = scmp.ne.s32.totalorder %s290, %s304
      %p306 = scmp.eq.s32.totalorder %s44, 0
      %p307 = por %p305, %p306
      %s309 = sadd.s32 %s308, 1
      %p312 = scmp.eq.s32.totalorder %s38, 1
      %p313 = scmp.ne.s32.totalorder %s308, %s310
      %p314 = scmp.eq.s32.totalorder %s38, 0
      %p315 = por %p313, %p314
      %p316 = scmp.ne.s32.totalorder %s308, %s310
      %p317 = scmp.eq.s32.totalorder %s43, 1
      %p318 = por %p316, %p317
      %p319 = scmp.ne.s32.totalorder %s310, %s311
      %p320 = scmp.eq.s32.totalorder %s43, 0
      %p321 = por %p319, %p320
      %p322 = scmp.ne.s32.totalorder %s310, %s311
      %p323 = scmp.eq.s32.totalorder %s44, 1
      %p324 = por %p322, %p323
      %p326 = scmp.ne.s32.totalorder %s311, %s325
      %p327 = scmp.eq.s32.totalorder %s44, 0
      %p328 = por %p326, %p327
      %s330 = sadd.s32 %s329, 1
      %p333 = scmp.eq.s32.totalorder %s38, 1
      %p334 = scmp.ne.s32.totalorder %s329, %s331
      %p335 = scmp.eq.s32.totalorder %s38, 0
      %p336 = por %p334, %p335
      %p337 = scmp.ne.s32.totalorder %s329, %s331
      %p338 = scmp.eq.s32.totalorder %s43, 1
      %p339 = por %p337, %p338
      %p340 = scmp.ne.s32.totalorder %s331, %s332
      %p341 = scmp.eq.s32.totalorder %s43, 0
      %p342 = por %p340, %p341
      %p343 = scmp.ne.s32.totalorder %s331, %s332
      %p344 = scmp.eq.s32.totalorder %s44, 1
      %p345 = por %p343, %p344
      %p347 = scmp.ne.s32.totalorder %s332, %s346
      %p348 = scmp.eq.s32.totalorder %s44, 0
      %p349 = por %p347, %p348
      %s351 = sadd.s32 %s350, 1
      %p354 = scmp.eq.s32.totalorder %s38, 1
      %p355 = scmp.ne.s32.totalorder %s350, %s352
      %p356 = scmp.eq.s32.totalorder %s38, 0
      %p357 = por %p355, %p356
      %p358 = scmp.ne.s32.totalorder %s350, %s352
      %p359 = scmp.eq.s32.totalorder %s43, 1
      %p360 = por %p358, %p359
      %p361 = scmp.ne.s32.totalorder %s352, %s353
      %p362 = scmp.eq.s32.totalorder %s43, 0
      %p363 = por %p361, %p362
      %p364 = scmp.ne.s32.totalorder %s352, %s353
      %p365 = scmp.eq.s32.totalorder %s44, 1
      %p366 = por %p364, %p365
      %p368 = scmp.ne.s32.totalorder %s353, %s367
      %p369 = scmp.eq.s32.totalorder %s44, 0
      %p370 = por %p368, %p369
      %s372 = sadd.s32 %s371, 1
      %p375 = scmp.eq.s32.totalorder %s38, 1
      %p376 = scmp.ne.s32.totalorder %s371, %s373
      %p377 = scmp.eq.s32.totalorder %s38, 0
      %p378 = por %p376, %p377
      %p379 = scmp.ne.s32.totalorder %s371, %s373
      %p380 = scmp.eq.s32.totalorder %s43, 1
      %p381 = por %p379, %p380
      %p382 = scmp.ne.s32.totalorder %s373, %s374
      %p383 = scmp.eq.s32.totalorder %s43, 0
      %p384 = por %p382, %p383
      %p385 = scmp.ne.s32.totalorder %s373, %s374
      %p386 = scmp.eq.s32.totalorder %s44, 1
      %p387 = por %p385, %p386
      %p389 = scmp.ne.s32.totalorder %s374, %s388
      %p390 = scmp.eq.s32.totalorder %s44, 0
      %p391 = por %p389, %p390
      %s393 = sadd.s32 %s392, 1
      %p396 = scmp.eq.s32.totalorder %s38, 1
      %p397 = scmp.ne.s32.totalorder %s392, %s394
      %p398 = scmp.eq.s32.totalorder %s38, 0
      %p399 = por %p397, %p398
      %p400 = scmp.ne.s32.totalorder %s392, %s394
      %p401 = scmp.eq.s32.totalorder %s43, 1
      %p402 = por %p400, %p401
      %p403 = scmp.ne.s32.totalorder %s394, %s395
      %p404 = scmp.eq.s32.totalorder %s43, 0
      %p405 = por %p403, %p404
      %p406 = scmp.ne.s32.totalorder %s394, %s395
      %p407 = scmp.eq.s32.totalorder %s44, 1
      %p408 = por %p406, %p407
      %p410 = scmp.ne.s32.totalorder %s395, %s409
      %p411 = scmp.eq.s32.totalorder %s44, 0
      %p412 = por %p410, %p411
      %s414 = sadd.s32 %s413, 1
      %p417 = scmp.eq.s32.totalorder %s38, 1
      %p418 = scmp.ne.s32.totalorder %s413, %s415
      %p419 = scmp.eq.s32.totalorder %s38, 0
      %p420 = por %p418, %p419
      %p421 = scmp.ne.s32.totalorder %s413, %s415
      %p422 = scmp.eq.s32.totalorder %s43, 1
      %p423 = por %p421, %p422
      %p424 = scmp.ne.s32.totalorder %s415, %s416
      %p425 = scmp.eq.s32.totalorder %s43, 0
      %p426 = por %p424, %p425
      %p427 = scmp.ne.s32.totalorder %s415, %s416
      %p428 = scmp.eq.s32.totalorder %s44, 1
      %p429 = por %p427, %p428
      %p431 = scmp.ne.s32.totalorder %s416, %s430
      %p432 = scmp.eq.s32.totalorder %s44, 0
      %p433 = por %p431, %p432
      %s435 = sadd.s32 %s434, 1
      %p438 = scmp.eq.s32.totalorder %s38, 1
      %p439 = scmp.ne.s32.totalorder %s434, %s436
      %p440 = scmp.eq.s32.totalorder %s38, 0
      %p441 = por %p439, %p440
      %p442 = scmp.ne.s32.totalorder %s434, %s436
      %p443 = scmp.eq.s32.totalorder %s43, 1
      %p444 = por %p442, %p443
      %p445 = scmp.ne.s32.totalorder %s436, %s437
      %p446 = scmp.eq.s32.totalorder %s43, 0
      %p447 = por %p445, %p446
      %p448 = scmp.ne.s32.totalorder %s436, %s437
      %p449 = scmp.eq.s32.totalorder %s44, 1
      %p450 = por %p448, %p449
      %p452 = scmp.ne.s32.totalorder %s437, %s451
      %p453 = scmp.eq.s32.totalorder %s44, 0
      %p454 = por %p452, %p453
      %s456 = sadd.s32 %s455, 1
      %p459 = scmp.eq.s32.totalorder %s38, 1
      %p460 = scmp.ne.s32.totalorder %s455, %s457
      %p461 = scmp.eq.s32.totalorder %s38, 0
      %p462 = por %p460, %p461
      %p463 = scmp.ne.s32.totalorder %s455, %s457
      %p464 = scmp.eq.s32.totalorder %s43, 1
      %p465 = por %p463, %p464
      %p466 = scmp.ne.s32.totalorder %s457, %s458
      %p467 = scmp.eq.s32.totalorder %s43, 0
      %p468 = por %p466, %p467
      %p469 = scmp.ne.s32.totalorder %s457, %s458
      %p470 = scmp.eq.s32.totalorder %s44, 1
      %p471 = por %p469, %p470
      %p473 = scmp.ne.s32.totalorder %s458, %s472
      %p474 = scmp.eq.s32.totalorder %s44, 0
      %p475 = por %p473, %p474
      %s476 = ssub.s32 %s38, %s45
      %p477 = scmp.eq.s32.totalorder %s476, 0
      %s479 = sadd.s32 %s478, 1
      %s480 = scalar_select %p477, %s478, %s479
      %p483 = pneg %p477
      %p484 = scmp.eq.s32.totalorder %s38, 1
      %p485 = por %p483, %p484
      %p486 = scmp.ne.s32.totalorder %s478, %s481
      %p487 = scmp.eq.s32.totalorder %s38, 0
      %p488 = por %p486, %p487
      %p489 = scmp.ne.s32.totalorder %s478, %s481
      %p490 = scmp.eq.s32.totalorder %s43, 1
      %p491 = por %p489, %p490
      %p492 = scmp.ne.s32.totalorder %s481, %s482
      %p493 = scmp.eq.s32.totalorder %s43, 0
      %p494 = por %p492, %p493
      %p495 = scmp.ne.s32.totalorder %s481, %s482
      %p496 = scmp.eq.s32.totalorder %s44, 1
      %p497 = por %p495, %p496
      %p499 = scmp.ne.s32.totalorder %s482, %s498
      %p500 = scmp.eq.s32.totalorder %s44, 0
      %p501 = por %p499, %p500
      %s502 = ssub.s32 %s38, %s45
      %p503 = scmp.eq.s32.totalorder %s502, 0
      %s505 = sadd.s32 %s504, 1
      %s506 = scalar_select %p503, %s504, %s505
      %p509 = pneg %p503
      %p510 = scmp.eq.s32.totalorder %s38, 1
      %p511 = por %p509, %p510
      %p512 = scmp.ne.s32.totalorder %s504, %s507
      %p513 = scmp.eq.s32.totalorder %s38, 0
      %p514 = por %p512, %p513
      %p515 = scmp.ne.s32.totalorder %s504, %s507
      %p516 = scmp.eq.s32.totalorder %s43, 1
      %p517 = por %p515, %p516
      %p518 = scmp.ne.s32.totalorder %s507, %s508
      %p519 = scmp.eq.s32.totalorder %s43, 0
      %p520 = por %p518, %p519
      %p521 = scmp.ne.s32.totalorder %s507, %s508
      %p522 = scmp.eq.s32.totalorder %s44, 1
      %p523 = por %p521, %p522
      %p525 = scmp.ne.s32.totalorder %s508, %s524
      %p526 = scmp.eq.s32.totalorder %s44, 0
      %p527 = por %p525, %p526
      %p528 = scmp.le.s32.totalorder 1, %s38
      %p529 = scmp.lt.s32.totalorder %s38, 3
      %p530 = pnand %p528, %p529
      %p531 = pneg %p530
      // Predicated region
      $region9: #{transformer_baseline_forward.1} parent=5 // pred_check
        _
      $region10: #{transformer_baseline_forward.1} parent=5 // pred_check_branch
        %533 = sbr.rel (%p530) target = $region12
      $region11: #{transformer_baseline_forward.1} parent=5 // pred_region
        %s534 = ssub.s32 %s38, 1
        // Predicated region
        $region13: #{transformer_baseline_forward.1} parent=11 // pred_check
          %p535 = pneg %p111
        $region14: #{transformer_baseline_forward.1} parent=11 // pred_check_branch
          %537 = sbr.rel (%p535) target = $region16
        $region15: #{transformer_baseline_forward.1} parent=11 // pred_region
          _
        $region16: #{transformer_baseline_forward.1} parent=11 // pred_fallthru
          _
        // Predicated region
        $region17: #{transformer_baseline_forward.1} parent=11 // pred_check
          %p538 = pneg %p132
        $region18: #{transformer_baseline_forward.1} parent=11 // pred_check_branch
          %540 = sbr.rel (%p538) target = $region20
        $region19: #{transformer_baseline_forward.1} parent=11 // pred_region
          _
        $region20: #{transformer_baseline_forward.1} parent=11 // pred_fallthru
          _
        // Predicated region
        $region21: #{transformer_baseline_forward.1} parent=11 // pred_check
          %p541 = pneg %p153
        $region22: #{transformer_baseline_forward.1} parent=11 // pred_check_branch
          %543 = sbr.rel (%p541) target = $region24
        $region23: #{transformer_baseline_forward.1} parent=11 // pred_region
          _
        $region24: #{transformer_baseline_forward.1} parent=11 // pred_fallthru
          _
        // Predicated region
        $region25: #{transformer_baseline_forward.1} parent=11 // pred_check
          %p544 = pneg %p174
        $region26: #{transformer_baseline_forward.1} parent=11 // pred_check_branch
          %546 = sbr.rel (%p544) target = $region28
        $region27: #{transformer_baseline_forward.1} parent=11 // pred_region
          _
        $region28: #{transformer_baseline_forward.1} parent=11 // pred_fallthru
          _
        // Predicated region
        $region29: #{transformer_baseline_forward.1} parent=11 // pred_check
          %p547 = pneg %p195
        $region30: #{transformer_baseline_forward.1} parent=11 // pred_check_branch
          %549 = sbr.rel (%p547) target = $region32
        $region31: #{transformer_baseline_forward.1} parent=11 // pred_region
          _
        $region32: #{transformer_baseline_forward.1} parent=11 // pred_fallthru
          _
        // Predicated region
        $region33: #{transformer_baseline_forward.1} parent=11 // pred_check
          %p550 = pneg %p216
        $region34: #{transformer_baseline_forward.1} parent=11 // pred_check_branch
          %552 = sbr.rel (%p550) target = $region36
        $region35: #{transformer_baseline_forward.1} parent=11 // pred_region
          _
        $region36: #{transformer_baseline_forward.1} parent=11 // pred_fallthru
          _
        // Predicated region
        $region37: #{transformer_baseline_forward.1} parent=11 // pred_check
          %p553 = pneg %p237
        $region38: #{transformer_baseline_forward.1} parent=11 // pred_check_branch
          %555 = sbr.rel (%p553) target = $region40
        $region39: #{transformer_baseline_forward.1} parent=11 // pred_region
          %s557 = ssub.s32 1024, 1024
          %558 = vsyncadd [#allocation6], %s557
          %s559 = sshll.u32 [#allocation5], 4
          %s560 = int_to_ptr.vmem [resolvable:$true] %s559
          %565 = dma.hbm_to_vmem [thread:$0]  %s8, 1024, %s560, [#allocation6], 128, 128, 8
        $region40: #{transformer_baseline_forward.1} parent=11 // pred_fallthru
          _
        // Predicated region
        $region41: #{transformer_baseline_forward.1} parent=11 // pred_check
          %p566 = pneg %p258
        $region42: #{transformer_baseline_forward.1} parent=11 // pred_check_branch
          %568 = sbr.rel (%p566) target = $region44
        $region43: #{transformer_baseline_forward.1} parent=11 // pred_region
          _
        $region44: #{transformer_baseline_forward.1} parent=11 // pred_fallthru
          _
        // Predicated region
        $region45: #{transformer_baseline_forward.1} parent=11 // pred_check
          %p569 = pneg %p279
        $region46: #{transformer_baseline_forward.1} parent=11 // pred_check_branch
          %571 = sbr.rel (%p569) target = $region48
        $region47: #{transformer_baseline_forward.1} parent=11 // pred_region
          _
        $region48: #{transformer_baseline_forward.1} parent=11 // pred_fallthru
          _
        // Predicated region
        $region49: #{transformer_baseline_forward.1} parent=11 // pred_check
          %p572 = pneg %p300
        $region50: #{transformer_baseline_forward.1} parent=11 // pred_check_branch
          %574 = sbr.rel (%p572) target = $region52
        $region51: #{transformer_baseline_forward.1} parent=11 // pred_region
          %s576 = ssub.s32 32, 32
          %577 = vsyncadd [#allocation6], %s576
          %s578 = sshll.u32 [#allocation7], 4
          %s579 = int_to_ptr.vmem [resolvable:$true] %s578
          %584 = dma.hbm_to_vmem [thread:$0]  %s11, 32, %s579, [#allocation6], 16, 16, 1
        $region52: #{transformer_baseline_forward.1} parent=11 // pred_fallthru
          _
        // Predicated region
        $region53: #{transformer_baseline_forward.1} parent=11 // pred_check
          %p585 = pneg %p321
        $region54: #{transformer_baseline_forward.1} parent=11 // pred_check_branch
          %587 = sbr.rel (%p585) target = $region56
        $region55: #{transformer_baseline_forward.1} parent=11 // pred_region
          %s589 = ssub.s32 1024, 1024
          %590 = vsyncadd [#allocation9], %s589
          %s591 = sshll.u32 [#allocation8], 4
          %s592 = int_to_ptr.vmem [resolvable:$true] %s591
          %597 = dma.hbm_to_vmem [thread:$0]  %s12, 1024, %s592, [#allocation9], 128, 128, 8
        $region56: #{transformer_baseline_forward.1} parent=11 // pred_fallthru
          _
        // Predicated region
        $region57: #{transformer_baseline_forward.1} parent=11 // pred_check
          %p598 = pneg %p342
        $region58: #{transformer_baseline_forward.1} parent=11 // pred_check_branch
          %600 = sbr.rel (%p598) target = $region60
        $region59: #{transformer_baseline_forward.1} parent=11 // pred_region
          %s602 = ssub.s32 32, 32
          %603 = vsyncadd [#allocation9], %s602
          %s604 = sshll.u32 [#allocation10], 4
          %s605 = int_to_ptr.vmem [resolvable:$true] %s604
          %610 = dma.hbm_to_vmem [thread:$0]  %s13, 32, %s605, [#allocation9], 16, 16, 1
        $region60: #{transformer_baseline_forward.1} parent=11 // pred_fallthru
          _
        // Predicated region
        $region61: #{transformer_baseline_forward.1} parent=11 // pred_check
          %p611 = pneg %p363
        $region62: #{transformer_baseline_forward.1} parent=11 // pred_check_branch
          %613 = sbr.rel (%p611) target = $region64
        $region63: #{transformer_baseline_forward.1} parent=11 // pred_region
          _
        $region64: #{transformer_baseline_forward.1} parent=11 // pred_fallthru
          _
        // Predicated region
        $region65: #{transformer_baseline_forward.1} parent=11 // pred_check
          %p614 = pneg %p384
        $region66: #{transformer_baseline_forward.1} parent=11 // pred_check_branch
          %616 = sbr.rel (%p614) target = $region68
        $region67: #{transformer_baseline_forward.1} parent=11 // pred_region
          %s618 = ssub.s32 32, 32
          %619 = vsyncadd [#allocation12], %s618
          %s620 = sshll.u32 [#allocation11], 4
          %s621 = int_to_ptr.vmem [resolvable:$true] %s620
          %626 = dma.hbm_to_vmem [thread:$0]  %s15, 32, %s621, [#allocation12], 16, 16, 1
        $region68: #{transformer_baseline_forward.1} parent=11 // pred_fallthru
          _
        // Predicated region
        $region69: #{transformer_baseline_forward.1} parent=11 // pred_check
          %p627 = pneg %p405
        $region70: #{transformer_baseline_forward.1} parent=11 // pred_check_branch
          %629 = sbr.rel (%p627) target = $region72
        $region71: #{transformer_baseline_forward.1} parent=11 // pred_region
          %s631 = ssub.s32 32, 32
          %632 = vsyncadd [#allocation12], %s631
          %s633 = sshll.u32 [#allocation13], 4
          %s634 = int_to_ptr.vmem [resolvable:$true] %s633
          %639 = dma.hbm_to_vmem [thread:$0]  %s16, 32, %s634, [#allocation12], 16, 16, 1
        $region72: #{transformer_baseline_forward.1} parent=11 // pred_fallthru
          _
        // Predicated region
        $region73: #{transformer_baseline_forward.1} parent=11 // pred_check
          %p640 = pneg %p426
        $region74: #{transformer_baseline_forward.1} parent=11 // pred_check_branch
          %642 = sbr.rel (%p640) target = $region76
        $region75: #{transformer_baseline_forward.1} parent=11 // pred_region
          %s644 = ssub.s32 32, 32
          %645 = vsyncadd [#allocation15], %s644
          %s646 = sshll.u32 [#allocation14], 4
          %s647 = int_to_ptr.vmem [resolvable:$true] %s646
          %652 = dma.hbm_to_vmem [thread:$0]  %s17, 32, %s647, [#allocation15], 16, 16, 1
        $region76: #{transformer_baseline_forward.1} parent=11 // pred_fallthru
          _
        // Predicated region
        $region77: #{transformer_baseline_forward.1} parent=11 // pred_check
          %p653 = pneg %p447
        $region78: #{transformer_baseline_forward.1} parent=11 // pred_check_branch
          %655 = sbr.rel (%p653) target = $region80
        $region79: #{transformer_baseline_forward.1} parent=11 // pred_region
          _
        $region80: #{transformer_baseline_forward.1} parent=11 // pred_fallthru
          _
        // Predicated region
        $region81: #{transformer_baseline_forward.1} parent=11 // pred_check
          %p656 = pneg %p468
        $region82: #{transformer_baseline_forward.1} parent=11 // pred_check_branch
          %658 = sbr.rel (%p656) target = $region84
        $region83: #{transformer_baseline_forward.1} parent=11 // pred_region
          %s660 = ssub.s32 16, 16
          %661 = vsyncadd [#allocation15], %s660
          %s663 = sshll.u32 [#allocation16], 4
          %s664 = int_to_ptr.vmem [resolvable:$true] %s663
          %666 = dma.hbm_to_vmem [thread:$0]  %s19, 16, %s664, [#allocation15]
        $region84: #{transformer_baseline_forward.1} parent=11 // pred_fallthru
          _
      $region12: #{transformer_baseline_forward.1} parent=5 // pred_fallthru
        _
      %p667 = scmp.lt.s32.totalorder %s38, 2
      // Predicated region
      $region85: #{transformer_baseline_forward.1} parent=5 // pred_check
        %p668 = pneg %p667
      $region86: #{transformer_baseline_forward.1} parent=5 // pred_check_branch
        %670 = sbr.rel (%p668) target = $region88
      $region87: #{transformer_baseline_forward.1} parent=5 // pred_region
        // Predicated region
        $region89: #{transformer_baseline_forward.1} parent=87 // pred_check
          %p671 = pneg %p58
        $region90: #{transformer_baseline_forward.1} parent=87 // pred_check_branch
          %673 = sbr.rel (%p671) target = $region92
        $region91: #{transformer_baseline_forward.1} parent=87 // pred_region
          %p674 = scmp.lt.s32.totalorder %s38, 1
          %s675 = scalar_select %p674, %s38, 1
          %s676 = smul.addr %s675, 8
          %s677 = smul.addr %s676, 8
          %s678 = scalar_lea.vmem %s0, %s677
        $region92: #{transformer_baseline_forward.1} parent=87 // pred_fallthru
          _
        // Predicated region
        $region93: #{transformer_baseline_forward.1} parent=87 // pred_check
          %p679 = pneg %p84
        $region94: #{transformer_baseline_forward.1} parent=87 // pred_check_branch
          %681 = sbr.rel (%p679) target = $region96
        $region95: #{transformer_baseline_forward.1} parent=87 // pred_region
          %s682 = sand.u32 %s74, 1
          %s683 = scalar_lea.sflag [#allocation3], %s682
          %s684 = sand.u32 %s74, 1
          %s685 = smul.addr %s684, 8
          %s686 = scalar_lea.vmem [#allocation2], %s685
          %s688 = ssub.s32 128, 128
          %689 = vsyncadd %s683, %s688
          %s690 = smul.addr %s38, 128
          %s691 = scalar_lea.hbm %s1, %s690
          %s693 = sshll.u32 %s686, 4
          %s694 = int_to_ptr.vmem [resolvable:$true] %s693
          %696 = dma.hbm_to_vmem [thread:$0]  %s691, 128, %s694, %s683
        $region96: #{transformer_baseline_forward.1} parent=87 // pred_fallthru
          _
      $region88: #{transformer_baseline_forward.1} parent=5 // pred_fallthru
        _
      %p697 = scmp.le.s32.totalorder 1, %s38
      %p698 = scmp.lt.s32.totalorder %s38, 3
      %p699 = pnand %p697, %p698
      %p700 = pneg %p699
      // Predicated region
      $region97: #{transformer_baseline_forward.1} parent=5 // pred_check
        _
      $region98: #{transformer_baseline_forward.1} parent=5 // pred_check_branch
        %702 = sbr.rel (%p699) target = $region100
      $region99: #{transformer_baseline_forward.1} parent=5 // pred_region
        %s703 = ssub.s32 %s38, 1
        %s704 = sand.u32 %s77, 1
        %s705 = scalar_lea.sflag [#allocation3], %s704
        %s706 = sand.u32 %s77, 1
        %s707 = smul.addr %s706, 8
        %s708 = scalar_lea.vmem [#allocation2], %s707
        // Predicated region
        $region101: #{transformer_baseline_forward.1} parent=99 // pred_check
          %p709 = pneg %p90
        $region102: #{transformer_baseline_forward.1} parent=99 // pred_check_branch
          %711 = sbr.rel (%p709) target = $region104
        $region103: #{transformer_baseline_forward.1} parent=99 // pred_region
          %712 = dma.done %s705, 128
        $region104: #{transformer_baseline_forward.1} parent=99 // pred_fallthru
          _
        // Predicated region
        $region105: #{transformer_baseline_forward.1} parent=99 // pred_check
          %p713 = pneg %p237
        $region106: #{transformer_baseline_forward.1} parent=99 // pred_check_branch
          %715 = sbr.rel (%p713) target = $region108
        $region107: #{transformer_baseline_forward.1} parent=99 // pred_region
          %716 = dma.done [#allocation6], 1024
        $region108: #{transformer_baseline_forward.1} parent=99 // pred_fallthru
          _
        // Predicated region
        $region109: #{transformer_baseline_forward.1} parent=99 // pred_check
          %p717 = pneg %p300
        $region110: #{transformer_baseline_forward.1} parent=99 // pred_check_branch
          %719 = sbr.rel (%p717) target = $region112
        $region111: #{transformer_baseline_forward.1} parent=99 // pred_region
          %720 = dma.done [#allocation6], 32
        $region112: #{transformer_baseline_forward.1} parent=99 // pred_fallthru
          _
        // Predicated region
        $region113: #{transformer_baseline_forward.1} parent=99 // pred_check
          %p721 = pneg %p321
        $region114: #{transformer_baseline_forward.1} parent=99 // pred_check_branch
          %723 = sbr.rel (%p721) target = $region116
        $region115: #{transformer_baseline_forward.1} parent=99 // pred_region
          %724 = dma.done [#allocation9], 1024
        $region116: #{transformer_baseline_forward.1} parent=99 // pred_fallthru
          _
        // Predicated region
        $region117: #{transformer_baseline_forward.1} parent=99 // pred_check
          %p725 = pneg %p342
        $region118: #{transformer_baseline_forward.1} parent=99 // pred_check_branch
          %727 = sbr.rel (%p725) target = $region120
        $region119: #{transformer_baseline_forward.1} parent=99 // pred_region
          %728 = dma.done [#allocation9], 32
        $region120: #{transformer_baseline_forward.1} parent=99 // pred_fallthru
          _
        // Predicated region
        $region121: #{transformer_baseline_forward.1} parent=99 // pred_check
          %p729 = pneg %p384
        $region122: #{transformer_baseline_forward.1} parent=99 // pred_check_branch
          %731 = sbr.rel (%p729) target = $region124
        $region123: #{transformer_baseline_forward.1} parent=99 // pred_region
          %732 = dma.done [#allocation12], 32
        $region124: #{transformer_baseline_forward.1} parent=99 // pred_fallthru
          _
        // Predicated region
        $region125: #{transformer_baseline_forward.1} parent=99 // pred_check
          %p733 = pneg %p405
        $region126: #{transformer_baseline_forward.1} parent=99 // pred_check_branch
          %735 = sbr.rel (%p733) target = $region128
        $region127: #{transformer_baseline_forward.1} parent=99 // pred_region
          %736 = dma.done [#allocation12], 32
        $region128: #{transformer_baseline_forward.1} parent=99 // pred_fallthru
          _
        // Predicated region
        $region129: #{transformer_baseline_forward.1} parent=99 // pred_check
          %p737 = pneg %p426
        $region130: #{transformer_baseline_forward.1} parent=99 // pred_check_branch
          %739 = sbr.rel (%p737) target = $region132
        $region131: #{transformer_baseline_forward.1} parent=99 // pred_region
          %740 = dma.done [#allocation15], 32
        $region132: #{transformer_baseline_forward.1} parent=99 // pred_fallthru
          _
        // Predicated region
        $region133: #{transformer_baseline_forward.1} parent=99 // pred_check
          %p741 = pneg %p468
        $region134: #{transformer_baseline_forward.1} parent=99 // pred_check_branch
          %743 = sbr.rel (%p741) target = $region136
        $region135: #{transformer_baseline_forward.1} parent=99 // pred_region
          %744 = dma.done [#allocation15], 16
        $region136: #{transformer_baseline_forward.1} parent=99 // pred_fallthru
          _
        %p745 = scmp.lt.s32.totalorder %s43, 1
        %s746 = scalar_select %p745, %s43, 1
        %s747 = smul.addr %s746, 8
        %s748 = smul.addr %s747, 8
        %s749 = scalar_lea.vmem %s0, %s748
        %p750 = pneg %p64
        %p751 = pneg %p61
        %s752 = sand.u32 %s77, 1
        %s753 = scalar_lea.sflag [#allocation3], %s752
        %s754 = sand.u32 %s77, 1
        %s755 = smul.addr %s754, 8
        %s756 = scalar_lea.vmem [#allocation2], %s755
        %p757 = pneg %p90
        %p758 = pneg %p87
        %p759 = pneg %p111
        %p760 = pneg %p108
        %p761 = pneg %p132
        %p762 = pneg %p129
        %p763 = pneg %p153
        %p764 = pneg %p150
        %p765 = pneg %p174
        %p766 = pneg %p171
        %p767 = pneg %p195
        %p768 = pneg %p192
        %p769 = pneg %p216
        %p770 = pneg %p213
        %p771 = pneg %p237
        %p772 = pneg %p234
        %p773 = pneg %p258
        %p774 = pneg %p255
        %p775 = pneg %p279
        %p776 = pneg %p276
        %p777 = pneg %p300
        %p778 = pneg %p297
        %p779 = pneg %p321
        %p780 = pneg %p318
        %p781 = pneg %p342
        %p782 = pneg %p339
        %p783 = pneg %p363
        %p784 = pneg %p360
        %p785 = pneg %p384
        %p786 = pneg %p381
        %p787 = pneg %p405
        %p788 = pneg %p402
        %p789 = pneg %p426
        %p790 = pneg %p423
        %p791 = pneg %p447
        %p792 = pneg %p444
        %p793 = pneg %p468
        %p794 = pneg %p465
        %p795 = pneg %p494
        %p796 = pneg %p491
        %s797 = sand.u32 %s481, 1
        %s798 = scalar_lea.sflag [#allocation4], %s797
        %s799 = sand.u32 %s481, 1
        %s800 = scalar_lea.vmem [#allocation17], %s799
        %p801 = pneg %p520
        %p802 = pneg %p517
        %p803 = scmp.lt.s32.totalorder %s43, 1
        %s804 = scalar_select %p803, %s43, 1
        %s805 = smul.addr %s804, 8
        %s806 = smul.addr %s805, 8
        %s807 = scalar_lea.vmem %s21, %s806
        %p808 = scmp.lt.s32.totalorder %s43, 1
        %s809 = scalar_select %p808, %s43, 1
        %s810 = smul.addr %s809, 8
        %s811 = smul.addr %s810, 8
        %s812 = scalar_lea.vmem %s0, %s811
        %p813 = scmp.lt.s32.totalorder %s43, 1
        %s814 = scalar_select %p813, %s43, 1
        %s815 = smul.addr %s814, 8
        %s816 = smul.addr %s815, 8
        %s817 = scalar_lea.vmem %s21, %s816
        %v818 = vld [vmem:[%s812] sm:$0x3f]
        %v819 = vld [vmem:[%s812 + $0x8] sm:$0x3f]
        %v820 = vld [vmem:[%s812 + $0x10] sm:$0x3f]
        %v821 = vld [vmem:[%s812 + $0x18] sm:$0x3f]
        %v822 = vld [vmem:[%s812 + $0x20] sm:$0x3f]
        %v823 = vld [vmem:[%s812 + $0x28] sm:$0x3f]
        %v824 = vld [vmem:[%s812 + $0x30] sm:$0x3f]
        %v825 = vld [vmem:[%s812 + $0x38] sm:$0x3f]
        %vm826 = vcmask 259072
        %v827 = vsel %vm826, %v818, -inf
        %v828 = vrot.slane %v827, 4
        %v829 = vmax.f32 %v827, %v828
        %v830 = vrot.slane %v829, 2
        %v831 = vmax.f32 %v829, %v830
        %v832 = vrot.slane %v831, 1
        %v833 = vmax.f32 %v831, %v832
        %v834 = vsel %vm826, %v819, -inf
        %v835 = vrot.slane %v834, 4
        %v836 = vmax.f32 %v834, %v835
        %v837 = vrot.slane %v836, 2
        %v838 = vmax.f32 %v836, %v837
        %v839 = vrot.slane %v838, 1
        %v840 = vmax.f32 %v838, %v839
        %v841 = vsel %vm826, %v820, -inf
        %v842 = vrot.slane %v841, 4
        %v843 = vmax.f32 %v841, %v842
        %v844 = vrot.slane %v843, 2
        %v845 = vmax.f32 %v843, %v844
        %v846 = vrot.slane %v845, 1
        %v847 = vmax.f32 %v845, %v846
        %v848 = vsel %vm826, %v821, -inf
        %v849 = vrot.slane %v848, 4
        %v850 = vmax.f32 %v848, %v849
        %v851 = vrot.slane %v850, 2
        %v852 = vmax.f32 %v850, %v851
        %v853 = vrot.slane %v852, 1
        %v854 = vmax.f32 %v852, %v853
        %v855 = vsel %vm826, %v822, -inf
        %v856 = vrot.slane %v855, 4
        %v857 = vmax.f32 %v855, %v856
        %v858 = vrot.slane %v857, 2
        %v859 = vmax.f32 %v857, %v858
        %v860 = vrot.slane %v859, 1
        %v861 = vmax.f32 %v859, %v860
        %v862 = vsel %vm826, %v823, -inf
        %v863 = vrot.slane %v862, 4
        %v864 = vmax.f32 %v862, %v863
        %v865 = vrot.slane %v864, 2
        %v866 = vmax.f32 %v864, %v865
        %v867 = vrot.slane %v866, 1
        %v868 = vmax.f32 %v866, %v867
        %v869 = vsel %vm826, %v824, -inf
        %v870 = vrot.slane %v869, 4
        %v871 = vmax.f32 %v869, %v870
        %v872 = vrot.slane %v871, 2
        %v873 = vmax.f32 %v871, %v872
        %v874 = vrot.slane %v873, 1
        %v875 = vmax.f32 %v873, %v874
        %v876 = vsel %vm826, %v825, -inf
        %v877 = vrot.slane %v876, 4
        %v878 = vmax.f32 %v876, %v877
        %v879 = vrot.slane %v878, 2
        %v880 = vmax.f32 %v878, %v879
        %v881 = vrot.slane %v880, 1
        %v882 = vmax.f32 %v880, %v881
        %v883 = vld [vmem:[%s708] sm:$0xff]
        %v884 = vld [vmem:[%s4] sm:$0x1]
        %v885 = vld [vmem:[%s5] sm:$0x1]
        %v886 = vld [vmem:[%s2] sm:$0xff]
        %v887 = vld [vmem:[%s2 + $0x8] sm:$0xff]
        %v888 = vld [vmem:[%s2 + $0x10] sm:$0xff]
        %v889 = vld [vmem:[%s2 + $0x18] sm:$0xff]
        %v890 = vld [vmem:[%s2 + $0x20] sm:$0xff]
        %v891 = vld [vmem:[%s2 + $0x28] sm:$0xff]
        %v892 = vld [vmem:[%s2 + $0x30] sm:$0xff]
        %v893 = vld [vmem:[%s2 + $0x38] sm:$0xff]
        %v894 = vld [vmem:[%s2 + $0x40] sm:$0xff]
        %v895 = vld [vmem:[%s2 + $0x48] sm:$0xff]
        %v896 = vld [vmem:[%s2 + $0x50] sm:$0xff]
        %v897 = vld [vmem:[%s2 + $0x58] sm:$0xff]
        %v898 = vld [vmem:[%s3] sm:$0x1]
        %v899 = vld [vmem:[%s3 + $0x1] sm:$0x1]
        %v900 = vld [vmem:[%s3 + $0x2] sm:$0x1]
        %v904 = vlaneseq
        %v905 = vshrl.u32 %v904, 7
        %v906 = vsub.s32 0, %v905
        %v907 = vrot.slane %v898, %v906
        %v908 = vlaneseq
        %v909 = vshrl.u32 %v908, 7
        %v910 = vsub.s32 0, %v909
        %v911 = vrot.slane %v899, %v910
        %v912 = vlaneseq
        %v913 = vshrl.u32 %v912, 7
        %v914 = vsub.s32 0, %v913
        %v915 = vrot.slane %v900, %v914
        %vm927 = vcmask 1041409
        %v928 = vsel %vm927, %v840, %v833
        %vm929 = vcmask 1042434
        %v930 = vsel %vm929, %v847, %v928
        %vm931 = vcmask 1043459
        %v932 = vsel %vm931, %v854, %v930
        %vm933 = vcmask 1044484
        %v934 = vsel %vm933, %v861, %v932
        %vm935 = vcmask 1045509
        %v936 = vsel %vm935, %v868, %v934
        %vm937 = vcmask 1046534
        %v938 = vsel %vm937, %v875, %v936
        %vm939 = vcmask 1047559
        %v940 = vsel %vm939, %v882, %v938
        %vm941 = vcmask 261120
        %v942 = vsel %vm941, %v940, 0
        %944 = vmatprep.subr.mxu0 0.0
        %945 = vmatpush1.msra.mxu0 0.0
        %946 = vmatprep.subr.mxu0 0.0
        %947 = vmatpush1.msra.mxu0 0.0
        %948 = vmatprep.subr.mxu0 0.0
        %949 = vmatpush1.msra.mxu0 0.0
        %950 = vmatprep.subr.mxu0 0.0
        %951 = vmatpush1.msra.mxu0 0.0
        %952 = vmatprep.subr.mxu0 0.0
        %953 = vmatpush1.msra.mxu0 0.0
        %954 = vmatprep.subr.mxu0 0.0
        %955 = vmatpush1.msra.mxu0 0.0
        %956 = vmatprep.subr.mxu0 0.0
        %957 = vmatpush1.msra.mxu0 0.0
        %958 = vmatprep.subr.mxu0 0.0
        %959 = vmatpush1.msra.mxu0 0.0
        %960 = vmatprep.subr.mxu0 0.0
        %961 = vmatpush1.msra.mxu0 0.0
        %962 = vmatprep.subr.mxu0 0.0
        %963 = vmatpush1.msra.mxu0 0.0
        %964 = vmatprep.subr.mxu0 0.0
        %965 = vmatpush1.msra.mxu0 0.0
        %966 = vmatprep.subr.mxu0 0.0
        %967 = vmatpush1.msra.mxu0 0.0
        %968 = vmatprep.subr.mxu0 0.0
        %969 = vmatpush1.msra.mxu0 %v889
        %970 = vmatprep.subr.mxu0 0.0
        %971 = vmatpush1.msra.mxu0 %v888
        %972 = vmatprep.subr.mxu0 0.0
        %973 = vmatpush1.msra.mxu0 %v887
        %974 = vmatprep.subr.mxu0 0.0
        %975 = vmatpush1.msra.mxu0 %v886
        %976 = vmatprep.subr.mxu0 0.0
        %977 = vmatpush2.msra.mxu0 0.0
        %978 = vmatprep.subr.mxu0 0.0
        %979 = vmatpush2.msra.mxu0 0.0
        %980 = vmatprep.subr.mxu0 0.0
        %981 = vmatpush2.msra.mxu0 0.0
        %982 = vmatprep.subr.mxu0 0.0
        %983 = vmatpush2.msra.mxu0 0.0
        %984 = vmatprep.subr.mxu0 0.0
        %985 = vmatpush2.msra.mxu0 0.0
        %986 = vmatprep.subr.mxu0 0.0
        %987 = vmatpush2.msra.mxu0 0.0
        %988 = vmatprep.subr.mxu0 0.0
        %989 = vmatpush2.msra.mxu0 0.0
        %990 = vmatprep.subr.mxu0 0.0
        %991 = vmatpush2.msra.mxu0 0.0
        %992 = vmatprep.subr.mxu0 0.0
        %993 = vmatpush2.msra.mxu0 0.0
        %994 = vmatprep.subr.mxu0 0.0
        %995 = vmatpush2.msra.mxu0 0.0
        %996 = vmatprep.subr.mxu0 0.0
        %997 = vmatpush2.msra.mxu0 0.0
        %998 = vmatprep.subr.mxu0 0.0
        %999 = vmatpush2.msra.mxu0 0.0
        %1000 = vmatprep.subr.mxu0 0.0
        %1001 = vmatpush2.msra.mxu0 0.0
        %1002 = vmatprep.subr.mxu0 0.0
        %1003 = vmatpush2.msra.mxu0 0.0
        %1004 = vmatprep.subr.mxu0 0.0
        %1005 = vmatpush2.msra.mxu0 0.0
        %1006 = vmatprep.subr.mxu0 0.0
        %1007 = vmatpush2.msra.mxu0 0.0
        %1008 = vmatprep.mubr.f32.mxu0 0.0
        %1009 = vmatmul.mubr.f32.gmra.mxu0 %v942
        %v1010 = vpop.f32.mrf.mxu0
        %v1011 = vadd.f32 %v907, %v1010
        %v1012 = vpop.f32.mrf.mxu0
        %1013 = vdwg.mxu0
        %1014 = vmatprep.subr.mxu0 0.0
        %1015 = vmatpush1.msra.mxu0 0.0
        %1016 = vmatprep.subr.mxu0 0.0
        %1017 = vmatpush1.msra.mxu0 0.0
        %1018 = vmatprep.subr.mxu0 0.0
        %1019 = vmatpush1.msra.mxu0 0.0
        %1020 = vmatprep.subr.mxu0 0.0
        %1021 = vmatpush1.msra.mxu0 0.0
        %1022 = vmatprep.subr.mxu0 0.0
        %1023 = vmatpush1.msra.mxu0 0.0
        %1024 = vmatprep.subr.mxu0 0.0
        %1025 = vmatpush1.msra.mxu0 0.0
        %1026 = vmatprep.subr.mxu0 0.0
        %1027 = vmatpush1.msra.mxu0 0.0
        %1028 = vmatprep.subr.mxu0 0.0
        %1029 = vmatpush1.msra.mxu0 0.0
        %1030 = vmatprep.subr.mxu0 0.0
        %1031 = vmatpush1.msra.mxu0 0.0
        %1032 = vmatprep.subr.mxu0 0.0
        %1033 = vmatpush1.msra.mxu0 0.0
        %1034 = vmatprep.subr.mxu0 0.0
        %1035 = vmatpush1.msra.mxu0 0.0
        %1036 = vmatprep.subr.mxu0 0.0
        %1037 = vmatpush1.msra.mxu0 0.0
        %1038 = vmatprep.subr.mxu0 0.0
        %1039 = vmatpush1.msra.mxu0 %v893
        %1040 = vmatprep.subr.mxu0 0.0
        %1041 = vmatpush1.msra.mxu0 %v892
        %1042 = vmatprep.subr.mxu0 0.0
        %1043 = vmatpush1.msra.mxu0 %v891
        %1044 = vmatprep.subr.mxu0 0.0
        %1045 = vmatpush1.msra.mxu0 %v890
        %1046 = vmatprep.subr.mxu0 0.0
        %1047 = vmatpush2.msra.mxu0 0.0
        %1048 = vmatprep.subr.mxu0 0.0
        %1049 = vmatpush2.msra.mxu0 0.0
        %1050 = vmatprep.subr.mxu0 0.0
        %1051 = vmatpush2.msra.mxu0 0.0
        %1052 = vmatprep.subr.mxu0 0.0
        %1053 = vmatpush2.msra.mxu0 0.0
        %1054 = vmatprep.subr.mxu0 0.0
        %1055 = vmatpush2.msra.mxu0 0.0
        %1056 = vmatprep.subr.mxu0 0.0
        %1057 = vmatpush2.msra.mxu0 0.0
        %1058 = vmatprep.subr.mxu0 0.0
        %1059 = vmatpush2.msra.mxu0 0.0
        %1060 = vmatprep.subr.mxu0 0.0
        %1061 = vmatpush2.msra.mxu0 0.0
        %1062 = vmatprep.subr.mxu0 0.0
        %1063 = vmatpush2.msra.mxu0 0.0
        %1064 = vmatprep.subr.mxu0 0.0
        %1065 = vmatpush2.msra.mxu0 0.0
        %1066 = vmatprep.subr.mxu0 0.0
        %1067 = vmatpush2.msra.mxu0 0.0
        %1068 = vmatprep.subr.mxu0 0.0
        %1069 = vmatpush2.msra.mxu0 0.0
        %1070 = vmatprep.subr.mxu0 0.0
        %1071 = vmatpush2.msra.mxu0 0.0
        %1072 = vmatprep.subr.mxu0 0.0
        %1073 = vmatpush2.msra.mxu0 0.0
        %1074 = vmatprep.subr.mxu0 0.0
        %1075 = vmatpush2.msra.mxu0 0.0
        %1076 = vmatprep.subr.mxu0 0.0
        %1077 = vmatpush2.msra.mxu0 0.0
        %1078 = vmatprep.mubr.f32.mxu0 0.0
        %1079 = vmatmul.mubr.f32.gmra.mxu0 %v942
        %v1080 = vpop.f32.mrf.mxu0
        %v1081 = vadd.f32 %v911, %v1080
        %v1082 = vpop.f32.mrf.mxu0
        %1083 = vdwg.mxu0
        %1084 = vmatprep.subr.mxu0 0.0
        %1085 = vmatpush1.msra.mxu0 0.0
        %1086 = vmatprep.subr.mxu0 0.0
        %1087 = vmatpush1.msra.mxu0 0.0
        %1088 = vmatprep.subr.mxu0 0.0
        %1089 = vmatpush1.msra.mxu0 0.0
        %1090 = vmatprep.subr.mxu0 0.0
        %1091 = vmatpush1.msra.mxu0 0.0
        %1092 = vmatprep.subr.mxu0 0.0
        %1093 = vmatpush1.msra.mxu0 0.0
        %1094 = vmatprep.subr.mxu0 0.0
        %1095 = vmatpush1.msra.mxu0 0.0
        %1096 = vmatprep.subr.mxu0 0.0
        %1097 = vmatpush1.msra.mxu0 0.0
        %1098 = vmatprep.subr.mxu0 0.0
        %1099 = vmatpush1.msra.mxu0 0.0
        %1100 = vmatprep.subr.mxu0 0.0
        %1101 = vmatpush1.msra.mxu0 0.0
        %1102 = vmatprep.subr.mxu0 0.0
        %1103 = vmatpush1.msra.mxu0 0.0
        %1104 = vmatprep.subr.mxu0 0.0
        %1105 = vmatpush1.msra.mxu0 0.0
        %1106 = vmatprep.subr.mxu0 0.0
        %1107 = vmatpush1.msra.mxu0 0.0
        %1108 = vmatprep.subr.mxu0 0.0
        %1109 = vmatpush1.msra.mxu0 %v897
        %1110 = vmatprep.subr.mxu0 0.0
        %1111 = vmatpush1.msra.mxu0 %v896
        %1112 = vmatprep.subr.mxu0 0.0
        %1113 = vmatpush1.msra.mxu0 %v895
        %1114 = vmatprep.subr.mxu0 0.0
        %1115 = vmatpush1.msra.mxu0 %v894
        %1116 = vmatprep.subr.mxu0 0.0
        %1117 = vmatpush2.msra.mxu0 0.0
        %1118 = vmatprep.subr.mxu0 0.0
        %1119 = vmatpush2.msra.mxu0 0.0
        %1120 = vmatprep.subr.mxu0 0.0
        %1121 = vmatpush2.msra.mxu0 0.0
        %1122 = vmatprep.subr.mxu0 0.0
        %1123 = vmatpush2.msra.mxu0 0.0
        %1124 = vmatprep.subr.mxu0 0.0
        %1125 = vmatpush2.msra.mxu0 0.0
        %1126 = vmatprep.subr.mxu0 0.0
        %1127 = vmatpush2.msra.mxu0 0.0
        %1128 = vmatprep.subr.mxu0 0.0
        %1129 = vmatpush2.msra.mxu0 0.0
        %1130 = vmatprep.subr.mxu0 0.0
        %1131 = vmatpush2.msra.mxu0 0.0
        %1132 = vmatprep.subr.mxu0 0.0
        %1133 = vmatpush2.msra.mxu0 0.0
        %1134 = vmatprep.subr.mxu0 0.0
        %1135 = vmatpush2.msra.mxu0 0.0
        %1136 = vmatprep.subr.mxu0 0.0
        %1137 = vmatpush2.msra.mxu0 0.0
        %1138 = vmatprep.subr.mxu0 0.0
        %1139 = vmatpush2.msra.mxu0 0.0
        %1140 = vmatprep.subr.mxu0 0.0
        %1141 = vmatpush2.msra.mxu0 0.0
        %1142 = vmatprep.subr.mxu0 0.0
        %1143 = vmatpush2.msra.mxu0 0.0
        %1144 = vmatprep.subr.mxu0 0.0
        %1145 = vmatpush2.msra.mxu0 0.0
        %1146 = vmatprep.subr.mxu0 0.0
        %1147 = vmatpush2.msra.mxu0 0.0
        %1148 = vmatprep.mubr.f32.mxu0 0.0
        %1149 = vmatmul.mubr.f32.gmra.mxu0 %v942
        %v1150 = vpop.f32.mrf.mxu0
        %v1151 = vadd.f32 %v915, %v1150
        %v1152 = vpop.f32.mrf.mxu0
        %1153 = vdwg.mxu0
        %v1154 = vsel %vm941, %v1011, 0.0
        %1155 = vadd.xlane.f32.xlu0 %v1154
        %v1156 = vpop.xlane.xlu0 %1155
        %v1157 = vsel %vm941, %v1081, 0.0
        %1158 = vadd.xlane.f32.xlu0 %v1157
        %v1159 = vpop.xlane.xlu0 %1158
        %v1160 = vsel %vm941, %v1151, 0.0
        %1161 = vadd.xlane.f32.xlu0 %v1160
        %v1162 = vpop.xlane.xlu0 %1161
        %v1163 = vrcp.pop 32.0
        %v1164 = vmul.f32 %v1156, %v1163
        %v1165 = vmul.f32 %v1159, %v1163
        %v1166 = vmul.f32 %v1162, %v1163
        %v1167 = vsub.f32 %v1011, %v1164
        %v1168 = vsub.f32 %v1081, %v1165
        %v1169 = vsub.f32 %v1151, %v1166
        %v1170 = vmul.f32 %v1167, %v1167
        %v1171 = vmul.f32 %v1168, %v1168
        %v1172 = vmul.f32 %v1169, %v1169
        %v1173 = vsel %vm941, %v1170, 0.0
        %1174 = vadd.xlane.f32.xlu0 %v1173
        %v1175 = vpop.xlane.xlu0 %1174
        %v1176 = vsel %vm941, %v1171, 0.0
        %1177 = vadd.xlane.f32.xlu0 %v1176
        %v1178 = vpop.xlane.xlu0 %1177
        %v1179 = vsel %vm941, %v1172, 0.0
        %1180 = vadd.xlane.f32.xlu0 %v1179
        %v1181 = vpop.xlane.xlu0 %1180
        %v1182 = vmul.f32 %v1175, %v1163
        %v1183 = vmul.f32 %v1178, %v1163
        %v1184 = vmul.f32 %v1181, %v1163
        %v1185 = vadd.f32 %v1182, 1e-05
        %v1186 = vadd.f32 %v1183, 1e-05
        %v1187 = vadd.f32 %v1184, 1e-05
        %v1188 = vrsqrt.pop %v1185
        %v1189 = vrsqrt.pop %v1186
        %v1190 = vrsqrt.pop %v1187
        %v1191 = vmul.f32 %v1167, %v1188
        %v1192 = vmul.f32 %v1168, %v1189
        %v1193 = vmul.f32 %v1169, %v1190
        %v1195 = vlaneseq
        %v1196 = vshrl.u32 %v1195, 7
        %v1197 = vsub.s32 0, %v1196
        %v1198 = vrot.slane %v884, %v1197
        %v1200 = vmul.f32 %v1191, %v1198
        %v1201 = vmul.f32 %v1192, %v1198
        %v1202 = vmul.f32 %v1193, %v1198
        %v1204 = vlaneseq
        %v1205 = vshrl.u32 %v1204, 7
        %v1206 = vsub.s32 0, %v1205
        %v1207 = vrot.slane %v885, %v1206
        %v1209 = vadd.f32 %v1200, %v1207
        %v1210 = vadd.f32 %v1201, %v1207
        %v1211 = vadd.f32 %v1202, %v1207
        %s1212 = scalar_lea.vmem %s2, 96
        %v1213 = vld [vmem:[%s1212] sm:$0xff]
        %v1214 = vld [vmem:[%s1212 + $0x8] sm:$0xff]
        %v1215 = vld [vmem:[%s1212 + $0x10] sm:$0xff]
        %v1216 = vld [vmem:[%s1212 + $0x18] sm:$0xff]
        %v1217 = vld [vmem:[%s1212 + $0x20] sm:$0xff]
        %v1218 = vld [vmem:[%s1212 + $0x28] sm:$0xff]
        %v1219 = vld [vmem:[%s1212 + $0x30] sm:$0xff]
        %v1220 = vld [vmem:[%s1212 + $0x38] sm:$0xff]
        %v1221 = vld [vmem:[%s1212 + $0x40] sm:$0xff]
        %v1222 = vld [vmem:[%s1212 + $0x48] sm:$0xff]
        %v1223 = vld [vmem:[%s1212 + $0x50] sm:$0xff]
        %v1224 = vld [vmem:[%s1212 + $0x58] sm:$0xff]
        %s1225 = scalar_lea.vmem %s3, 3
        %v1226 = vld [vmem:[%s1225] sm:$0x1]
        %v1227 = vld [vmem:[%s1225 + $0x1] sm:$0x1]
        %v1228 = vld [vmem:[%s1225 + $0x2] sm:$0x1]
        %v1232 = vlaneseq
        %v1233 = vshrl.u32 %v1232, 7
        %v1234 = vsub.s32 0, %v1233
        %v1235 = vrot.slane %v1226, %v1234
        %v1236 = vlaneseq
        %v1237 = vshrl.u32 %v1236, 7
        %v1238 = vsub.s32 0, %v1237
        %v1239 = vrot.slane %v1227, %v1238
        %v1240 = vlaneseq
        %v1241 = vshrl.u32 %v1240, 7
        %v1242 = vsub.s32 0, %v1241
        %v1243 = vrot.slane %v1228, %v1242
        %v1248 = vsel %vm941, %v1209, 0
        %1250 = vmatprep.subr.mxu0 0.0
        %1251 = vmatpush1.msra.mxu0 0.0
        %1252 = vmatprep.subr.mxu0 0.0
        %1253 = vmatpush1.msra.mxu0 0.0
        %1254 = vmatprep.subr.mxu0 0.0
        %1255 = vmatpush1.msra.mxu0 0.0
        %1256 = vmatprep.subr.mxu0 0.0
        %1257 = vmatpush1.msra.mxu0 0.0
        %1258 = vmatprep.subr.mxu0 0.0
        %1259 = vmatpush1.msra.mxu0 0.0
        %1260 = vmatprep.subr.mxu0 0.0
        %1261 = vmatpush1.msra.mxu0 0.0
        %1262 = vmatprep.subr.mxu0 0.0
        %1263 = vmatpush1.msra.mxu0 0.0
        %1264 = vmatprep.subr.mxu0 0.0
        %1265 = vmatpush1.msra.mxu0 0.0
        %1266 = vmatprep.subr.mxu0 0.0
        %1267 = vmatpush1.msra.mxu0 0.0
        %1268 = vmatprep.subr.mxu0 0.0
        %1269 = vmatpush1.msra.mxu0 0.0
        %1270 = vmatprep.subr.mxu0 0.0
        %1271 = vmatpush1.msra.mxu0 0.0
        %1272 = vmatprep.subr.mxu0 0.0
        %1273 = vmatpush1.msra.mxu0 0.0
        %1274 = vmatprep.subr.mxu0 0.0
        %1275 = vmatpush1.msra.mxu0 %v1216
        %1276 = vmatprep.subr.mxu0 0.0
        %1277 = vmatpush1.msra.mxu0 %v1215
        %1278 = vmatprep.subr.mxu0 0.0
        %1279 = vmatpush1.msra.mxu0 %v1214
        %1280 = vmatprep.subr.mxu0 0.0
        %1281 = vmatpush1.msra.mxu0 %v1213
        %1282 = vmatprep.subr.mxu0 0.0
        %1283 = vmatpush2.msra.mxu0 0.0
        %1284 = vmatprep.subr.mxu0 0.0
        %1285 = vmatpush2.msra.mxu0 0.0
        %1286 = vmatprep.subr.mxu0 0.0
        %1287 = vmatpush2.msra.mxu0 0.0
        %1288 = vmatprep.subr.mxu0 0.0
        %1289 = vmatpush2.msra.mxu0 0.0
        %1290 = vmatprep.subr.mxu0 0.0
        %1291 = vmatpush2.msra.mxu0 0.0
        %1292 = vmatprep.subr.mxu0 0.0
        %1293 = vmatpush2.msra.mxu0 0.0
        %1294 = vmatprep.subr.mxu0 0.0
        %1295 = vmatpush2.msra.mxu0 0.0
        %1296 = vmatprep.subr.mxu0 0.0
        %1297 = vmatpush2.msra.mxu0 0.0
        %1298 = vmatprep.subr.mxu0 0.0
        %1299 = vmatpush2.msra.mxu0 0.0
        %1300 = vmatprep.subr.mxu0 0.0
        %1301 = vmatpush2.msra.mxu0 0.0
        %1302 = vmatprep.subr.mxu0 0.0
        %1303 = vmatpush2.msra.mxu0 0.0
        %1304 = vmatprep.subr.mxu0 0.0
        %1305 = vmatpush2.msra.mxu0 0.0
        %1306 = vmatprep.subr.mxu0 0.0
        %1307 = vmatpush2.msra.mxu0 0.0
        %1308 = vmatprep.subr.mxu0 0.0
        %1309 = vmatpush2.msra.mxu0 0.0
        %1310 = vmatprep.subr.mxu0 0.0
        %1311 = vmatpush2.msra.mxu0 0.0
        %1312 = vmatprep.subr.mxu0 0.0
        %1313 = vmatpush2.msra.mxu0 0.0
        %1314 = vmatprep.mubr.f32.mxu0 0.0
        %1315 = vmatmul.mubr.f32.gmra.mxu0 %v1248
        %v1316 = vpop.f32.mrf.mxu0
        %v1317 = vadd.f32 %v1235, %v1316
        %v1318 = vpop.f32.mrf.mxu0
        %1319 = vdwg.mxu0
        %v1321 = vsel %vm941, %v1210, 0
        %1323 = vmatprep.subr.mxu0 0.0
        %1324 = vmatpush1.msra.mxu0 0.0
        %1325 = vmatprep.subr.mxu0 0.0
        %1326 = vmatpush1.msra.mxu0 0.0
        %1327 = vmatprep.subr.mxu0 0.0
        %1328 = vmatpush1.msra.mxu0 0.0
        %1329 = vmatprep.subr.mxu0 0.0
        %1330 = vmatpush1.msra.mxu0 0.0
        %1331 = vmatprep.subr.mxu0 0.0
        %1332 = vmatpush1.msra.mxu0 0.0
        %1333 = vmatprep.subr.mxu0 0.0
        %1334 = vmatpush1.msra.mxu0 0.0
        %1335 = vmatprep.subr.mxu0 0.0
        %1336 = vmatpush1.msra.mxu0 0.0
        %1337 = vmatprep.subr.mxu0 0.0
        %1338 = vmatpush1.msra.mxu0 0.0
        %1339 = vmatprep.subr.mxu0 0.0
        %1340 = vmatpush1.msra.mxu0 0.0
        %1341 = vmatprep.subr.mxu0 0.0
        %1342 = vmatpush1.msra.mxu0 0.0
        %1343 = vmatprep.subr.mxu0 0.0
        %1344 = vmatpush1.msra.mxu0 0.0
        %1345 = vmatprep.subr.mxu0 0.0
        %1346 = vmatpush1.msra.mxu0 0.0
        %1347 = vmatprep.subr.mxu0 0.0
        %1348 = vmatpush1.msra.mxu0 %v1220
        %1349 = vmatprep.subr.mxu0 0.0
        %1350 = vmatpush1.msra.mxu0 %v1219
        %1351 = vmatprep.subr.mxu0 0.0
        %1352 = vmatpush1.msra.mxu0 %v1218
        %1353 = vmatprep.subr.mxu0 0.0
        %1354 = vmatpush1.msra.mxu0 %v1217
        %1355 = vmatprep.subr.mxu0 0.0
        %1356 = vmatpush2.msra.mxu0 0.0
        %1357 = vmatprep.subr.mxu0 0.0
        %1358 = vmatpush2.msra.mxu0 0.0
        %1359 = vmatprep.subr.mxu0 0.0
        %1360 = vmatpush2.msra.mxu0 0.0
        %1361 = vmatprep.subr.mxu0 0.0
        %1362 = vmatpush2.msra.mxu0 0.0
        %1363 = vmatprep.subr.mxu0 0.0
        %1364 = vmatpush2.msra.mxu0 0.0
        %1365 = vmatprep.subr.mxu0 0.0
        %1366 = vmatpush2.msra.mxu0 0.0
        %1367 = vmatprep.subr.mxu0 0.0
        %1368 = vmatpush2.msra.mxu0 0.0
        %1369 = vmatprep.subr.mxu0 0.0
        %1370 = vmatpush2.msra.mxu0 0.0
        %1371 = vmatprep.subr.mxu0 0.0
        %1372 = vmatpush2.msra.mxu0 0.0
        %1373 = vmatprep.subr.mxu0 0.0
        %1374 = vmatpush2.msra.mxu0 0.0
        %1375 = vmatprep.subr.mxu0 0.0
        %1376 = vmatpush2.msra.mxu0 0.0
        %1377 = vmatprep.subr.mxu0 0.0
        %1378 = vmatpush2.msra.mxu0 0.0
        %1379 = vmatprep.subr.mxu0 0.0
        %1380 = vmatpush2.msra.mxu0 0.0
        %1381 = vmatprep.subr.mxu0 0.0
        %1382 = vmatpush2.msra.mxu0 0.0
        %1383 = vmatprep.subr.mxu0 0.0
        %1384 = vmatpush2.msra.mxu0 0.0
        %1385 = vmatprep.subr.mxu0 0.0
        %1386 = vmatpush2.msra.mxu0 0.0
        %1387 = vmatprep.mubr.f32.mxu0 0.0
        %1388 = vmatmul.mubr.f32.gmra.mxu0 %v1321
        %v1389 = vpop.f32.mrf.mxu0
        %v1390 = vadd.f32 %v1239, %v1389
        %v1391 = vpop.f32.mrf.mxu0
        %1392 = vdwg.mxu0
        %v1394 = vsel %vm941, %v1211, 0
        %1396 = vmatprep.subr.mxu0 0.0
        %1397 = vmatpush1.msra.mxu0 0.0
        %1398 = vmatprep.subr.mxu0 0.0
        %1399 = vmatpush1.msra.mxu0 0.0
        %1400 = vmatprep.subr.mxu0 0.0
        %1401 = vmatpush1.msra.mxu0 0.0
        %1402 = vmatprep.subr.mxu0 0.0
        %1403 = vmatpush1.msra.mxu0 0.0
        %1404 = vmatprep.subr.mxu0 0.0
        %1405 = vmatpush1.msra.mxu0 0.0
        %1406 = vmatprep.subr.mxu0 0.0
        %1407 = vmatpush1.msra.mxu0 0.0
        %1408 = vmatprep.subr.mxu0 0.0
        %1409 = vmatpush1.msra.mxu0 0.0
        %1410 = vmatprep.subr.mxu0 0.0
        %1411 = vmatpush1.msra.mxu0 0.0
        %1412 = vmatprep.subr.mxu0 0.0
        %1413 = vmatpush1.msra.mxu0 0.0
        %1414 = vmatprep.subr.mxu0 0.0
        %1415 = vmatpush1.msra.mxu0 0.0
        %1416 = vmatprep.subr.mxu0 0.0
        %1417 = vmatpush1.msra.mxu0 0.0
        %1418 = vmatprep.subr.mxu0 0.0
        %1419 = vmatpush1.msra.mxu0 0.0
        %1420 = vmatprep.subr.mxu0 0.0
        %1421 = vmatpush1.msra.mxu0 %v1224
        %1422 = vmatprep.subr.mxu0 0.0
        %1423 = vmatpush1.msra.mxu0 %v1223
        %1424 = vmatprep.subr.mxu0 0.0
        %1425 = vmatpush1.msra.mxu0 %v1222
        %1426 = vmatprep.subr.mxu0 0.0
        %1427 = vmatpush1.msra.mxu0 %v1221
        %1428 = vmatprep.subr.mxu0 0.0
        %1429 = vmatpush2.msra.mxu0 0.0
        %1430 = vmatprep.subr.mxu0 0.0
        %1431 = vmatpush2.msra.mxu0 0.0
        %1432 = vmatprep.subr.mxu0 0.0
        %1433 = vmatpush2.msra.mxu0 0.0
        %1434 = vmatprep.subr.mxu0 0.0
        %1435 = vmatpush2.msra.mxu0 0.0
        %1436 = vmatprep.subr.mxu0 0.0
        %1437 = vmatpush2.msra.mxu0 0.0
        %1438 = vmatprep.subr.mxu0 0.0
        %1439 = vmatpush2.msra.mxu0 0.0
        %1440 = vmatprep.subr.mxu0 0.0
        %1441 = vmatpush2.msra.mxu0 0.0
        %1442 = vmatprep.subr.mxu0 0.0
        %1443 = vmatpush2.msra.mxu0 0.0
        %1444 = vmatprep.subr.mxu0 0.0
        %1445 = vmatpush2.msra.mxu0 0.0
        %1446 = vmatprep.subr.mxu0 0.0
        %1447 = vmatpush2.msra.mxu0 0.0
        %1448 = vmatprep.subr.mxu0 0.0
        %1449 = vmatpush2.msra.mxu0 0.0
        %1450 = vmatprep.subr.mxu0 0.0
        %1451 = vmatpush2.msra.mxu0 0.0
        %1452 = vmatprep.subr.mxu0 0.0
        %1453 = vmatpush2.msra.mxu0 0.0
        %1454 = vmatprep.subr.mxu0 0.0
        %1455 = vmatpush2.msra.mxu0 0.0
        %1456 = vmatprep.subr.mxu0 0.0
        %1457 = vmatpush2.msra.mxu0 0.0
        %1458 = vmatprep.subr.mxu0 0.0
        %1459 = vmatpush2.msra.mxu0 0.0
        %1460 = vmatprep.mubr.f32.mxu0 0.0
        %1461 = vmatmul.mubr.f32.gmra.mxu0 %v1394
        %v1462 = vpop.f32.mrf.mxu0
        %v1463 = vadd.f32 %v1243, %v1462
        %v1464 = vpop.f32.mrf.mxu0
        %1465 = vdwg.mxu0
        %v1466 = vsel %vm941, %v1317, 0.0
        %1467 = vadd.xlane.f32.xlu0 %v1466
        %v1468 = vpop.xlane.xlu0 %1467
        %v1469 = vsel %vm941, %v1390, 0.0
        %1470 = vadd.xlane.f32.xlu0 %v1469
        %v1471 = vpop.xlane.xlu0 %1470
        %v1472 = vsel %vm941, %v1463, 0.0
        %1473 = vadd.xlane.f32.xlu0 %v1472
        %v1474 = vpop.xlane.xlu0 %1473
        %v1475 = vmul.f32 %v1468, %v1163
        %v1476 = vmul.f32 %v1471, %v1163
        %v1477 = vmul.f32 %v1474, %v1163
        %v1478 = vsub.f32 %v1317, %v1475
        %v1479 = vsub.f32 %v1390, %v1476
        %v1480 = vsub.f32 %v1463, %v1477
        %v1481 = vmul.f32 %v1478, %v1478
        %v1482 = vmul.f32 %v1479, %v1479
        %v1483 = vmul.f32 %v1480, %v1480
        %v1484 = vsel %vm941, %v1481, 0.0
        %1485 = vadd.xlane.f32.xlu0 %v1484
        %v1486 = vpop.xlane.xlu0 %1485
        %v1487 = vsel %vm941, %v1482, 0.0
        %1488 = vadd.xlane.f32.xlu0 %v1487
        %v1489 = vpop.xlane.xlu0 %1488
        %v1490 = vsel %vm941, %v1483, 0.0
        %1491 = vadd.xlane.f32.xlu0 %v1490
        %v1492 = vpop.xlane.xlu0 %1491
        %v1493 = vmul.f32 %v1486, %v1163
        %v1494 = vmul.f32 %v1489, %v1163
        %v1495 = vmul.f32 %v1492, %v1163
        %v1496 = vadd.f32 %v1493, 1e-05
        %v1497 = vadd.f32 %v1494, 1e-05
        %v1498 = vadd.f32 %v1495, 1e-05
        %v1499 = vrsqrt.pop %v1496
        %v1500 = vrsqrt.pop %v1497
        %v1501 = vrsqrt.pop %v1498
        %v1502 = vmul.f32 %v1478, %v1499
        %v1503 = vmul.f32 %v1479, %v1500
        %v1504 = vmul.f32 %v1480, %v1501
        %v1505 = vmul.f32 %v1502, %v1198
        %v1506 = vmul.f32 %v1503, %v1198
        %v1507 = vmul.f32 %v1504, %v1198
        %v1508 = vadd.f32 %v1505, %v1207
        %v1509 = vadd.f32 %v1506, %v1207
        %v1510 = vadd.f32 %v1507, %v1207
        %v1511 = vadd.f32 %v1508, %v883
        %v1512 = vadd.f32 %v1509, %v883
        %v1513 = vadd.f32 %v1510, %v883
        %v1514 = vld [vmem:[%s6] sm:$0xff]
        %v1515 = vld [vmem:[%s6 + $0x8] sm:$0xff]
        %v1516 = vld [vmem:[%s6 + $0x10] sm:$0xff]
        %v1517 = vld [vmem:[%s6 + $0x18] sm:$0xff]
        %v1518 = vld [vmem:[%s6 + $0x20] sm:$0xff]
        %v1519 = vld [vmem:[%s6 + $0x28] sm:$0xff]
        %v1520 = vld [vmem:[%s6 + $0x30] sm:$0xff]
        %v1521 = vld [vmem:[%s6 + $0x38] sm:$0xff]
        %v1522 = vld [vmem:[%s6 + $0x40] sm:$0xff]
        %v1523 = vld [vmem:[%s6 + $0x48] sm:$0xff]
        %v1524 = vld [vmem:[%s6 + $0x50] sm:$0xff]
        %v1525 = vld [vmem:[%s6 + $0x58] sm:$0xff]
        %v1526 = vld [vmem:[%s7] sm:$0x1]
        %v1527 = vld [vmem:[%s7 + $0x1] sm:$0x1]
        %v1528 = vld [vmem:[%s7 + $0x2] sm:$0x1]
        %v1532 = vlaneseq
        %v1533 = vshrl.u32 %v1532, 7
        %v1534 = vsub.s32 0, %v1533
        %v1535 = vrot.slane %v1526, %v1534
        %v1536 = vlaneseq
        %v1537 = vshrl.u32 %v1536, 7
        %v1538 = vsub.s32 0, %v1537
        %v1539 = vrot.slane %v1527, %v1538
        %v1540 = vlaneseq
        %v1541 = vshrl.u32 %v1540, 7
        %v1542 = vsub.s32 0, %v1541
        %v1543 = vrot.slane %v1528, %v1542
        %v1548 = vsel %vm941, %v1511, 0
        %1550 = vmatprep.subr.mxu0 0.0
        %1551 = vmatpush1.msra.mxu0 0.0
        %1552 = vmatprep.subr.mxu0 0.0
        %1553 = vmatpush1.msra.mxu0 0.0
        %1554 = vmatprep.subr.mxu0 0.0
        %1555 = vmatpush1.msra.mxu0 0.0
        %1556 = vmatprep.subr.mxu0 0.0
        %1557 = vmatpush1.msra.mxu0 0.0
        %1558 = vmatprep.subr.mxu0 0.0
        %1559 = vmatpush1.msra.mxu0 0.0
        %1560 = vmatprep.subr.mxu0 0.0
        %1561 = vmatpush1.msra.mxu0 0.0
        %1562 = vmatprep.subr.mxu0 0.0
        %1563 = vmatpush1.msra.mxu0 0.0
        %1564 = vmatprep.subr.mxu0 0.0
        %1565 = vmatpush1.msra.mxu0 0.0
        %1566 = vmatprep.subr.mxu0 0.0
        %1567 = vmatpush1.msra.mxu0 0.0
        %1568 = vmatprep.subr.mxu0 0.0
        %1569 = vmatpush1.msra.mxu0 0.0
        %1570 = vmatprep.subr.mxu0 0.0
        %1571 = vmatpush1.msra.mxu0 0.0
        %1572 = vmatprep.subr.mxu0 0.0
        %1573 = vmatpush1.msra.mxu0 0.0
        %1574 = vmatprep.subr.mxu0 0.0
        %1575 = vmatpush1.msra.mxu0 %v1517
        %1576 = vmatprep.subr.mxu0 0.0
        %1577 = vmatpush1.msra.mxu0 %v1516
        %1578 = vmatprep.subr.mxu0 0.0
        %1579 = vmatpush1.msra.mxu0 %v1515
        %1580 = vmatprep.subr.mxu0 0.0
        %1581 = vmatpush1.msra.mxu0 %v1514
        %1582 = vmatprep.subr.mxu0 0.0
        %1583 = vmatpush2.msra.mxu0 0.0
        %1584 = vmatprep.subr.mxu0 0.0
        %1585 = vmatpush2.msra.mxu0 0.0
        %1586 = vmatprep.subr.mxu0 0.0
        %1587 = vmatpush2.msra.mxu0 0.0
        %1588 = vmatprep.subr.mxu0 0.0
        %1589 = vmatpush2.msra.mxu0 0.0
        %1590 = vmatprep.subr.mxu0 0.0
        %1591 = vmatpush2.msra.mxu0 0.0
        %1592 = vmatprep.subr.mxu0 0.0
        %1593 = vmatpush2.msra.mxu0 0.0
        %1594 = vmatprep.subr.mxu0 0.0
        %1595 = vmatpush2.msra.mxu0 0.0
        %1596 = vmatprep.subr.mxu0 0.0
        %1597 = vmatpush2.msra.mxu0 0.0
        %1598 = vmatprep.subr.mxu0 0.0
        %1599 = vmatpush2.msra.mxu0 0.0
        %1600 = vmatprep.subr.mxu0 0.0
        %1601 = vmatpush2.msra.mxu0 0.0
        %1602 = vmatprep.subr.mxu0 0.0
        %1603 = vmatpush2.msra.mxu0 0.0
        %1604 = vmatprep.subr.mxu0 0.0
        %1605 = vmatpush2.msra.mxu0 0.0
        %1606 = vmatprep.subr.mxu0 0.0
        %1607 = vmatpush2.msra.mxu0 0.0
        %1608 = vmatprep.subr.mxu0 0.0
        %1609 = vmatpush2.msra.mxu0 0.0
        %1610 = vmatprep.subr.mxu0 0.0
        %1611 = vmatpush2.msra.mxu0 0.0
        %1612 = vmatprep.subr.mxu0 0.0
        %1613 = vmatpush2.msra.mxu0 0.0
        %1614 = vmatprep.mubr.f32.mxu0 0.0
        %1615 = vmatmul.mubr.f32.gmra.mxu0 %v1548
        %v1616 = vpop.f32.mrf.mxu0
        %v1617 = vadd.f32 %v1535, %v1616
        %v1618 = vpop.f32.mrf.mxu0
        %1619 = vdwg.mxu0
        %v1621 = vsel %vm941, %v1512, 0
        %1623 = vmatprep.subr.mxu0 0.0
        %1624 = vmatpush1.msra.mxu0 0.0
        %1625 = vmatprep.subr.mxu0 0.0
        %1626 = vmatpush1.msra.mxu0 0.0
        %1627 = vmatprep.subr.mxu0 0.0
        %1628 = vmatpush1.msra.mxu0 0.0
        %1629 = vmatprep.subr.mxu0 0.0
        %1630 = vmatpush1.msra.mxu0 0.0
        %1631 = vmatprep.subr.mxu0 0.0
        %1632 = vmatpush1.msra.mxu0 0.0
        %1633 = vmatprep.subr.mxu0 0.0
        %1634 = vmatpush1.msra.mxu0 0.0
        %1635 = vmatprep.subr.mxu0 0.0
        %1636 = vmatpush1.msra.mxu0 0.0
        %1637 = vmatprep.subr.mxu0 0.0
        %1638 = vmatpush1.msra.mxu0 0.0
        %1639 = vmatprep.subr.mxu0 0.0
        %1640 = vmatpush1.msra.mxu0 0.0
        %1641 = vmatprep.subr.mxu0 0.0
        %1642 = vmatpush1.msra.mxu0 0.0
        %1643 = vmatprep.subr.mxu0 0.0
        %1644 = vmatpush1.msra.mxu0 0.0
        %1645 = vmatprep.subr.mxu0 0.0
        %1646 = vmatpush1.msra.mxu0 0.0
        %1647 = vmatprep.subr.mxu0 0.0
        %1648 = vmatpush1.msra.mxu0 %v1521
        %1649 = vmatprep.subr.mxu0 0.0
        %1650 = vmatpush1.msra.mxu0 %v1520
        %1651 = vmatprep.subr.mxu0 0.0
        %1652 = vmatpush1.msra.mxu0 %v1519
        %1653 = vmatprep.subr.mxu0 0.0
        %1654 = vmatpush1.msra.mxu0 %v1518
        %1655 = vmatprep.subr.mxu0 0.0
        %1656 = vmatpush2.msra.mxu0 0.0
        %1657 = vmatprep.subr.mxu0 0.0
        %1658 = vmatpush2.msra.mxu0 0.0
        %1659 = vmatprep.subr.mxu0 0.0
        %1660 = vmatpush2.msra.mxu0 0.0
        %1661 = vmatprep.subr.mxu0 0.0
        %1662 = vmatpush2.msra.mxu0 0.0
        %1663 = vmatprep.subr.mxu0 0.0
        %1664 = vmatpush2.msra.mxu0 0.0
        %1665 = vmatprep.subr.mxu0 0.0
        %1666 = vmatpush2.msra.mxu0 0.0
        %1667 = vmatprep.subr.mxu0 0.0
        %1668 = vmatpush2.msra.mxu0 0.0
        %1669 = vmatprep.subr.mxu0 0.0
        %1670 = vmatpush2.msra.mxu0 0.0
        %1671 = vmatprep.subr.mxu0 0.0
        %1672 = vmatpush2.msra.mxu0 0.0
        %1673 = vmatprep.subr.mxu0 0.0
        %1674 = vmatpush2.msra.mxu0 0.0
        %1675 = vmatprep.subr.mxu0 0.0
        %1676 = vmatpush2.msra.mxu0 0.0
        %1677 = vmatprep.subr.mxu0 0.0
        %1678 = vmatpush2.msra.mxu0 0.0
        %1679 = vmatprep.subr.mxu0 0.0
        %1680 = vmatpush2.msra.mxu0 0.0
        %1681 = vmatprep.subr.mxu0 0.0
        %1682 = vmatpush2.msra.mxu0 0.0
        %1683 = vmatprep.subr.mxu0 0.0
        %1684 = vmatpush2.msra.mxu0 0.0
        %1685 = vmatprep.subr.mxu0 0.0
        %1686 = vmatpush2.msra.mxu0 0.0
        %1687 = vmatprep.mubr.f32.mxu0 0.0
        %1688 = vmatmul.mubr.f32.gmra.mxu0 %v1621
        %v1689 = vpop.f32.mrf.mxu0
        %v1690 = vadd.f32 %v1539, %v1689
        %v1691 = vpop.f32.mrf.mxu0
        %1692 = vdwg.mxu0
        %v1694 = vsel %vm941, %v1513, 0
        %1696 = vmatprep.subr.mxu0 0.0
        %1697 = vmatpush1.msra.mxu0 0.0
        %1698 = vmatprep.subr.mxu0 0.0
        %1699 = vmatpush1.msra.mxu0 0.0
        %1700 = vmatprep.subr.mxu0 0.0
        %1701 = vmatpush1.msra.mxu0 0.0
        %1702 = vmatprep.subr.mxu0 0.0
        %1703 = vmatpush1.msra.mxu0 0.0
        %1704 = vmatprep.subr.mxu0 0.0
        %1705 = vmatpush1.msra.mxu0 0.0
        %1706 = vmatprep.subr.mxu0 0.0
        %1707 = vmatpush1.msra.mxu0 0.0
        %1708 = vmatprep.subr.mxu0 0.0
        %1709 = vmatpush1.msra.mxu0 0.0
        %1710 = vmatprep.subr.mxu0 0.0
        %1711 = vmatpush1.msra.mxu0 0.0
        %1712 = vmatprep.subr.mxu0 0.0
        %1713 = vmatpush1.msra.mxu0 0.0
        %1714 = vmatprep.subr.mxu0 0.0
        %1715 = vmatpush1.msra.mxu0 0.0
        %1716 = vmatprep.subr.mxu0 0.0
        %1717 = vmatpush1.msra.mxu0 0.0
        %1718 = vmatprep.subr.mxu0 0.0
        %1719 = vmatpush1.msra.mxu0 0.0
        %1720 = vmatprep.subr.mxu0 0.0
        %1721 = vmatpush1.msra.mxu0 %v1525
        %1722 = vmatprep.subr.mxu0 0.0
        %1723 = vmatpush1.msra.mxu0 %v1524
        %1724 = vmatprep.subr.mxu0 0.0
        %1725 = vmatpush1.msra.mxu0 %v1523
        %1726 = vmatprep.subr.mxu0 0.0
        %1727 = vmatpush1.msra.mxu0 %v1522
        %1728 = vmatprep.subr.mxu0 0.0
        %1729 = vmatpush2.msra.mxu0 0.0
        %1730 = vmatprep.subr.mxu0 0.0
        %1731 = vmatpush2.msra.mxu0 0.0
        %1732 = vmatprep.subr.mxu0 0.0
        %1733 = vmatpush2.msra.mxu0 0.0
        %1734 = vmatprep.subr.mxu0 0.0
        %1735 = vmatpush2.msra.mxu0 0.0
        %1736 = vmatprep.subr.mxu0 0.0
        %1737 = vmatpush2.msra.mxu0 0.0
        %1738 = vmatprep.subr.mxu0 0.0
        %1739 = vmatpush2.msra.mxu0 0.0
        %1740 = vmatprep.subr.mxu0 0.0
        %1741 = vmatpush2.msra.mxu0 0.0
        %1742 = vmatprep.subr.mxu0 0.0
        %1743 = vmatpush2.msra.mxu0 0.0
        %1744 = vmatprep.subr.mxu0 0.0
        %1745 = vmatpush2.msra.mxu0 0.0
        %1746 = vmatprep.subr.mxu0 0.0
        %1747 = vmatpush2.msra.mxu0 0.0
        %1748 = vmatprep.subr.mxu0 0.0
        %1749 = vmatpush2.msra.mxu0 0.0
        %1750 = vmatprep.subr.mxu0 0.0
        %1751 = vmatpush2.msra.mxu0 0.0
        %1752 = vmatprep.subr.mxu0 0.0
        %1753 = vmatpush2.msra.mxu0 0.0
        %1754 = vmatprep.subr.mxu0 0.0
        %1755 = vmatpush2.msra.mxu0 0.0
        %1756 = vmatprep.subr.mxu0 0.0
        %1757 = vmatpush2.msra.mxu0 0.0
        %1758 = vmatprep.subr.mxu0 0.0
        %1759 = vmatpush2.msra.mxu0 0.0
        %1760 = vmatprep.mubr.f32.mxu0 0.0
        %1761 = vmatmul.mubr.f32.gmra.mxu0 %v1694
        %v1762 = vpop.f32.mrf.mxu0
        %v1763 = vadd.f32 %v1543, %v1762
        %v1764 = vpop.f32.mrf.mxu0
        %1765 = vdwg.mxu0
        %1767 = vrot.lane.b32.xlu0 %v1617, 120
        %v1768 = vpop.permute.xlu0 %1767
        %1769 = vrot.lane.b32.xlu0 %v1617, 112
        %v1770 = vpop.permute.xlu0 %1769
        %1771 = vrot.lane.b32.xlu0 %v1617, 104
        %v1772 = vpop.permute.xlu0 %1771
        %1774 = vrot.lane.b32.xlu0 %v1690, 120
        %v1775 = vpop.permute.xlu0 %1774
        %1776 = vrot.lane.b32.xlu0 %v1690, 112
        %v1777 = vpop.permute.xlu0 %1776
        %1778 = vrot.lane.b32.xlu0 %v1690, 104
        %v1779 = vpop.permute.xlu0 %1778
        %1781 = vrot.lane.b32.xlu0 %v1763, 120
        %v1782 = vpop.permute.xlu0 %1781
        %1784 = vrot.lane.b32.xlu0 %v1763, 112
        %v1785 = vpop.permute.xlu0 %1784
        %1787 = vrot.lane.b32.xlu0 %v1763, 104
        %v1788 = vpop.permute.xlu0 %1787
        %vm1790 = vcmask 64512
        %v1791 = vsel %vm1790, %v1617, 0
        %v1793 = vsel %vm1790, %v1690, 0
        %1795 = vmatprep.subr.mxu0 0.0
        %1796 = vmatpush1.xpose.msra.mxu0 0.0
        %1797 = vmatprep.subr.mxu0 0.0
        %1798 = vmatpush1.xpose.msra.mxu0 0.0
        %1799 = vmatprep.subr.mxu0 0.0
        %1800 = vmatpush1.xpose.msra.mxu0 0.0
        %1801 = vmatprep.subr.mxu0 0.0
        %1802 = vmatpush1.xpose.msra.mxu0 0.0
        %1803 = vmatprep.subr.mxu0 0.0
        %1804 = vmatpush1.xpose.msra.mxu0 0.0
        %1805 = vmatprep.subr.mxu0 0.0
        %1806 = vmatpush1.xpose.msra.mxu0 0.0
        %1807 = vmatprep.subr.mxu0 0.0
        %1808 = vmatpush1.xpose.msra.mxu0 0.0
        %1809 = vmatprep.subr.mxu0 0.0
        %1810 = vmatpush1.xpose.msra.mxu0 0.0
        %1811 = vmatprep.subr.mxu0 0.0
        %1812 = vmatpush1.xpose.msra.mxu0 0.0
        %1813 = vmatprep.subr.mxu0 0.0
        %1814 = vmatpush1.xpose.msra.mxu0 0.0
        %1815 = vmatprep.subr.mxu0 0.0
        %1816 = vmatpush1.xpose.msra.mxu0 0.0
        %1817 = vmatprep.subr.mxu0 0.0
        %1818 = vmatpush1.xpose.msra.mxu0 0.0
        %1819 = vmatprep.subr.mxu0 0.0
        %1820 = vmatpush1.xpose.msra.mxu0 0.0
        %1821 = vmatprep.subr.mxu0 0.0
        %1822 = vmatpush1.xpose.msra.mxu0 0.0
        %1823 = vmatprep.subr.mxu0 0.0
        %1824 = vmatpush1.xpose.msra.mxu0 0.0
        %1825 = vmatprep.subr.mxu0 0.0
        %1826 = vmatpush1.xpose.msra.mxu0 %v1793
        %1827 = vmatprep.subr.mxu0 0.0
        %1828 = vmatpush2.xpose.msra.mxu0 0.0
        %1829 = vmatprep.subr.mxu0 0.0
        %1830 = vmatpush2.xpose.msra.mxu0 0.0
        %1831 = vmatprep.subr.mxu0 0.0
        %1832 = vmatpush2.xpose.msra.mxu0 0.0
        %1833 = vmatprep.subr.mxu0 0.0
        %1834 = vmatpush2.xpose.msra.mxu0 0.0
        %1835 = vmatprep.subr.mxu0 0.0
        %1836 = vmatpush2.xpose.msra.mxu0 0.0
        %1837 = vmatprep.subr.mxu0 0.0
        %1838 = vmatpush2.xpose.msra.mxu0 0.0
        %1839 = vmatprep.subr.mxu0 0.0
        %1840 = vmatpush2.xpose.msra.mxu0 0.0
        %1841 = vmatprep.subr.mxu0 0.0
        %1842 = vmatpush2.xpose.msra.mxu0 0.0
        %1843 = vmatprep.subr.mxu0 0.0
        %1844 = vmatpush2.xpose.msra.mxu0 0.0
        %1845 = vmatprep.subr.mxu0 0.0
        %1846 = vmatpush2.xpose.msra.mxu0 0.0
        %1847 = vmatprep.subr.mxu0 0.0
        %1848 = vmatpush2.xpose.msra.mxu0 0.0
        %1849 = vmatprep.subr.mxu0 0.0
        %1850 = vmatpush2.xpose.msra.mxu0 0.0
        %1851 = vmatprep.subr.mxu0 0.0
        %1852 = vmatpush2.xpose.msra.mxu0 0.0
        %1853 = vmatprep.subr.mxu0 0.0
        %1854 = vmatpush2.xpose.msra.mxu0 0.0
        %1855 = vmatprep.subr.mxu0 0.0
        %1856 = vmatpush2.xpose.msra.mxu0 0.0
        %1857 = vmatprep.subr.mxu0 0.0
        %1858 = vmatpush2.xpose.msra.mxu0 0.0
        %1859 = vmatprep.mubr.f32.mxu0 0.0
        %1860 = vmatmul.mubr.f32.gmra.mxu0 %v1791
        %v1861 = vpop.f32.mrf.mxu0
        %v1862 = vadd.f32 0.0, %v1861
        %v1863 = vpop.f32.mrf.mxu0
        %1864 = vdwg.mxu0
        %v1865 = vsel %vm1790, %v1768, 0
        %v1867 = vsel %vm1790, %v1775, 0
        %1869 = vmatprep.subr.mxu0 0.0
        %1870 = vmatpush1.xpose.msra.mxu0 0.0
        %1871 = vmatprep.subr.mxu0 0.0
        %1872 = vmatpush1.xpose.msra.mxu0 0.0
        %1873 = vmatprep.subr.mxu0 0.0
        %1874 = vmatpush1.xpose.msra.mxu0 0.0
        %1875 = vmatprep.subr.mxu0 0.0
        %1876 = vmatpush1.xpose.msra.mxu0 0.0
        %1877 = vmatprep.subr.mxu0 0.0
        %1878 = vmatpush1.xpose.msra.mxu0 0.0
        %1879 = vmatprep.subr.mxu0 0.0
        %1880 = vmatpush1.xpose.msra.mxu0 0.0
        %1881 = vmatprep.subr.mxu0 0.0
        %1882 = vmatpush1.xpose.msra.mxu0 0.0
        %1883 = vmatprep.subr.mxu0 0.0
        %1884 = vmatpush1.xpose.msra.mxu0 0.0
        %1885 = vmatprep.subr.mxu0 0.0
        %1886 = vmatpush1.xpose.msra.mxu0 0.0
        %1887 = vmatprep.subr.mxu0 0.0
        %1888 = vmatpush1.xpose.msra.mxu0 0.0
        %1889 = vmatprep.subr.mxu0 0.0
        %1890 = vmatpush1.xpose.msra.mxu0 0.0
        %1891 = vmatprep.subr.mxu0 0.0
        %1892 = vmatpush1.xpose.msra.mxu0 0.0
        %1893 = vmatprep.subr.mxu0 0.0
        %1894 = vmatpush1.xpose.msra.mxu0 0.0
        %1895 = vmatprep.subr.mxu0 0.0
        %1896 = vmatpush1.xpose.msra.mxu0 0.0
        %1897 = vmatprep.subr.mxu0 0.0
        %1898 = vmatpush1.xpose.msra.mxu0 0.0
        %1899 = vmatprep.subr.mxu0 0.0
        %1900 = vmatpush1.xpose.msra.mxu0 %v1867
        %1901 = vmatprep.subr.mxu0 0.0
        %1902 = vmatpush2.xpose.msra.mxu0 0.0
        %1903 = vmatprep.subr.mxu0 0.0
        %1904 = vmatpush2.xpose.msra.mxu0 0.0
        %1905 = vmatprep.subr.mxu0 0.0
        %1906 = vmatpush2.xpose.msra.mxu0 0.0
        %1907 = vmatprep.subr.mxu0 0.0
        %1908 = vmatpush2.xpose.msra.mxu0 0.0
        %1909 = vmatprep.subr.mxu0 0.0
        %1910 = vmatpush2.xpose.msra.mxu0 0.0
        %1911 = vmatprep.subr.mxu0 0.0
        %1912 = vmatpush2.xpose.msra.mxu0 0.0
        %1913 = vmatprep.subr.mxu0 0.0
        %1914 = vmatpush2.xpose.msra.mxu0 0.0
        %1915 = vmatprep.subr.mxu0 0.0
        %1916 = vmatpush2.xpose.msra.mxu0 0.0
        %1917 = vmatprep.subr.mxu0 0.0
        %1918 = vmatpush2.xpose.msra.mxu0 0.0
        %1919 = vmatprep.subr.mxu0 0.0
        %1920 = vmatpush2.xpose.msra.mxu0 0.0
        %1921 = vmatprep.subr.mxu0 0.0
        %1922 = vmatpush2.xpose.msra.mxu0 0.0
        %1923 = vmatprep.subr.mxu0 0.0
        %1924 = vmatpush2.xpose.msra.mxu0 0.0
        %1925 = vmatprep.subr.mxu0 0.0
        %1926 = vmatpush2.xpose.msra.mxu0 0.0
        %1927 = vmatprep.subr.mxu0 0.0
        %1928 = vmatpush2.xpose.msra.mxu0 0.0
        %1929 = vmatprep.subr.mxu0 0.0
        %1930 = vmatpush2.xpose.msra.mxu0 0.0
        %1931 = vmatprep.subr.mxu0 0.0
        %1932 = vmatpush2.xpose.msra.mxu0 0.0
        %1933 = vmatprep.mubr.f32.mxu0 0.0
        %1934 = vmatmul.mubr.f32.gmra.mxu0 %v1865
        %v1935 = vpop.f32.mrf.mxu0
        %v1936 = vadd.f32 0.0, %v1935
        %v1937 = vpop.f32.mrf.mxu0
        %1938 = vdwg.mxu0
        %v1939 = vsel %vm1790, %v1770, 0
        %v1941 = vsel %vm1790, %v1777, 0
        %1943 = vmatprep.subr.mxu0 0.0
        %1944 = vmatpush1.xpose.msra.mxu0 0.0
        %1945 = vmatprep.subr.mxu0 0.0
        %1946 = vmatpush1.xpose.msra.mxu0 0.0
        %1947 = vmatprep.subr.mxu0 0.0
        %1948 = vmatpush1.xpose.msra.mxu0 0.0
        %1949 = vmatprep.subr.mxu0 0.0
        %1950 = vmatpush1.xpose.msra.mxu0 0.0
        %1951 = vmatprep.subr.mxu0 0.0
        %1952 = vmatpush1.xpose.msra.mxu0 0.0
        %1953 = vmatprep.subr.mxu0 0.0
        %1954 = vmatpush1.xpose.msra.mxu0 0.0
        %1955 = vmatprep.subr.mxu0 0.0
        %1956 = vmatpush1.xpose.msra.mxu0 0.0
        %1957 = vmatprep.subr.mxu0 0.0
        %1958 = vmatpush1.xpose.msra.mxu0 0.0
        %1959 = vmatprep.subr.mxu0 0.0
        %1960 = vmatpush1.xpose.msra.mxu0 0.0
        %1961 = vmatprep.subr.mxu0 0.0
        %1962 = vmatpush1.xpose.msra.mxu0 0.0
        %1963 = vmatprep.subr.mxu0 0.0
        %1964 = vmatpush1.xpose.msra.mxu0 0.0
        %1965 = vmatprep.subr.mxu0 0.0
        %1966 = vmatpush1.xpose.msra.mxu0 0.0
        %1967 = vmatprep.subr.mxu0 0.0
        %1968 = vmatpush1.xpose.msra.mxu0 0.0
        %1969 = vmatprep.subr.mxu0 0.0
        %1970 = vmatpush1.xpose.msra.mxu0 0.0
        %1971 = vmatprep.subr.mxu0 0.0
        %1972 = vmatpush1.xpose.msra.mxu0 0.0
        %1973 = vmatprep.subr.mxu0 0.0
        %1974 = vmatpush1.xpose.msra.mxu0 %v1941
        %1975 = vmatprep.subr.mxu0 0.0
        %1976 = vmatpush2.xpose.msra.mxu0 0.0
        %1977 = vmatprep.subr.mxu0 0.0
        %1978 = vmatpush2.xpose.msra.mxu0 0.0
        %1979 = vmatprep.subr.mxu0 0.0
        %1980 = vmatpush2.xpose.msra.mxu0 0.0
        %1981 = vmatprep.subr.mxu0 0.0
        %1982 = vmatpush2.xpose.msra.mxu0 0.0
        %1983 = vmatprep.subr.mxu0 0.0
        %1984 = vmatpush2.xpose.msra.mxu0 0.0
        %1985 = vmatprep.subr.mxu0 0.0
        %1986 = vmatpush2.xpose.msra.mxu0 0.0
        %1987 = vmatprep.subr.mxu0 0.0
        %1988 = vmatpush2.xpose.msra.mxu0 0.0
        %1989 = vmatprep.subr.mxu0 0.0
        %1990 = vmatpush2.xpose.msra.mxu0 0.0
        %1991 = vmatprep.subr.mxu0 0.0
        %1992 = vmatpush2.xpose.msra.mxu0 0.0
        %1993 = vmatprep.subr.mxu0 0.0
        %1994 = vmatpush2.xpose.msra.mxu0 0.0
        %1995 = vmatprep.subr.mxu0 0.0
        %1996 = vmatpush2.xpose.msra.mxu0 0.0
        %1997 = vmatprep.subr.mxu0 0.0
        %1998 = vmatpush2.xpose.msra.mxu0 0.0
        %1999 = vmatprep.subr.mxu0 0.0
        %2000 = vmatpush2.xpose.msra.mxu0 0.0
        %2001 = vmatprep.subr.mxu0 0.0
        %2002 = vmatpush2.xpose.msra.mxu0 0.0
        %2003 = vmatprep.subr.mxu0 0.0
        %2004 = vmatpush2.xpose.msra.mxu0 0.0
        %2005 = vmatprep.subr.mxu0 0.0
        %2006 = vmatpush2.xpose.msra.mxu0 0.0
        %2007 = vmatprep.mubr.f32.mxu0 0.0
        %2008 = vmatmul.mubr.f32.gmra.mxu0 %v1939
        %v2009 = vpop.f32.mrf.mxu0
        %v2010 = vadd.f32 0.0, %v2009
        %v2011 = vpop.f32.mrf.mxu0
        %2012 = vdwg.mxu0
        %v2013 = vsel %vm1790, %v1772, 0
        %v2015 = vsel %vm1790, %v1779, 0
        %2017 = vmatprep.subr.mxu0 0.0
        %2018 = vmatpush1.xpose.msra.mxu0 0.0
        %2019 = vmatprep.subr.mxu0 0.0
        %2020 = vmatpush1.xpose.msra.mxu0 0.0
        %2021 = vmatprep.subr.mxu0 0.0
        %2022 = vmatpush1.xpose.msra.mxu0 0.0
        %2023 = vmatprep.subr.mxu0 0.0
        %2024 = vmatpush1.xpose.msra.mxu0 0.0
        %2025 = vmatprep.subr.mxu0 0.0
        %2026 = vmatpush1.xpose.msra.mxu0 0.0
        %2027 = vmatprep.subr.mxu0 0.0
        %2028 = vmatpush1.xpose.msra.mxu0 0.0
        %2029 = vmatprep.subr.mxu0 0.0
        %2030 = vmatpush1.xpose.msra.mxu0 0.0
        %2031 = vmatprep.subr.mxu0 0.0
        %2032 = vmatpush1.xpose.msra.mxu0 0.0
        %2033 = vmatprep.subr.mxu0 0.0
        %2034 = vmatpush1.xpose.msra.mxu0 0.0
        %2035 = vmatprep.subr.mxu0 0.0
        %2036 = vmatpush1.xpose.msra.mxu0 0.0
        %2037 = vmatprep.subr.mxu0 0.0
        %2038 = vmatpush1.xpose.msra.mxu0 0.0
        %2039 = vmatprep.subr.mxu0 0.0
        %2040 = vmatpush1.xpose.msra.mxu0 0.0
        %2041 = vmatprep.subr.mxu0 0.0
        %2042 = vmatpush1.xpose.msra.mxu0 0.0
        %2043 = vmatprep.subr.mxu0 0.0
        %2044 = vmatpush1.xpose.msra.mxu0 0.0
        %2045 = vmatprep.subr.mxu0 0.0
        %2046 = vmatpush1.xpose.msra.mxu0 0.0
        %2047 = vmatprep.subr.mxu0 0.0
        %2048 = vmatpush1.xpose.msra.mxu0 %v2015
        %2049 = vmatprep.subr.mxu0 0.0
        %2050 = vmatpush2.xpose.msra.mxu0 0.0
        %2051 = vmatprep.subr.mxu0 0.0
        %2052 = vmatpush2.xpose.msra.mxu0 0.0
        %2053 = vmatprep.subr.mxu0 0.0
        %2054 = vmatpush2.xpose.msra.mxu0 0.0
        %2055 = vmatprep.subr.mxu0 0.0
        %2056 = vmatpush2.xpose.msra.mxu0 0.0
        %2057 = vmatprep.subr.mxu0 0.0
        %2058 = vmatpush2.xpose.msra.mxu0 0.0
        %2059 = vmatprep.subr.mxu0 0.0
        %2060 = vmatpush2.xpose.msra.mxu0 0.0
        %2061 = vmatprep.subr.mxu0 0.0
        %2062 = vmatpush2.xpose.msra.mxu0 0.0
        %2063 = vmatprep.subr.mxu0 0.0
        %2064 = vmatpush2.xpose.msra.mxu0 0.0
        %2065 = vmatprep.subr.mxu0 0.0
        %2066 = vmatpush2.xpose.msra.mxu0 0.0
        %2067 = vmatprep.subr.mxu0 0.0
        %2068 = vmatpush2.xpose.msra.mxu0 0.0
        %2069 = vmatprep.subr.mxu0 0.0
        %2070 = vmatpush2.xpose.msra.mxu0 0.0
        %2071 = vmatprep.subr.mxu0 0.0
        %2072 = vmatpush2.xpose.msra.mxu0 0.0
        %2073 = vmatprep.subr.mxu0 0.0
        %2074 = vmatpush2.xpose.msra.mxu0 0.0
        %2075 = vmatprep.subr.mxu0 0.0
        %2076 = vmatpush2.xpose.msra.mxu0 0.0
        %2077 = vmatprep.subr.mxu0 0.0
        %2078 = vmatpush2.xpose.msra.mxu0 0.0
        %2079 = vmatprep.subr.mxu0 0.0
        %2080 = vmatpush2.xpose.msra.mxu0 0.0
        %2081 = vmatprep.mubr.f32.mxu0 0.0
        %2082 = vmatmul.mubr.f32.gmra.mxu0 %v2013
        %v2083 = vpop.f32.mrf.mxu0
        %v2084 = vadd.f32 0.0, %v2083
        %v2085 = vpop.f32.mrf.mxu0
        %2086 = vdwg.mxu0
        %v2087 = vmul.f32 %v1862, 0.35355338
        %v2088 = vmul.f32 %v1936, 0.35355338
        %v2089 = vmul.f32 %v2010, 0.35355338
        %v2090 = vmul.f32 %v2084, 0.35355338
        %v2091 = vsel %vm1790, %v2087, -inf
        %2092 = vmax.xlane.f32.xlu0 %v2091
        %v2093 = vpop.xlane.xlu0 %2092
        %v2094 = vsel %vm1790, %v2088, -inf
        %2095 = vmax.xlane.f32.xlu0 %v2094
        %v2096 = vpop.xlane.xlu0 %2095
        %v2097 = vsel %vm1790, %v2089, -inf
        %2098 = vmax.xlane.f32.xlu0 %v2097
        %v2099 = vpop.xlane.xlu0 %2098
        %v2100 = vsel %vm1790, %v2090, -inf
        %2101 = vmax.xlane.f32.xlu0 %v2100
        %v2102 = vpop.xlane.xlu0 %2101
        %v2103 = vsub.f32 %v2087, %v2093
        %v2104 = vsub.f32 %v2088, %v2096
        %v2105 = vsub.f32 %v2089, %v2099
        %v2106 = vsub.f32 %v2090, %v2102
        %v2107 = vmul.f32 %v2103, 1.442695
        %v2108 = vpow.pop %v2107
        %v2109 = vmul.f32 %v2104, 1.442695
        %v2110 = vpow.pop %v2109
        %v2111 = vmul.f32 %v2105, 1.442695
        %v2112 = vpow.pop %v2111
        %v2113 = vmul.f32 %v2106, 1.442695
        %v2114 = vpow.pop %v2113
        %v2115 = vsel %vm1790, %v2108, 0.0
        %2116 = vadd.xlane.f32.xlu0 %v2115
        %v2117 = vpop.xlane.xlu0 %2116
        %v2118 = vsel %vm1790, %v2110, 0.0
        %2119 = vadd.xlane.f32.xlu0 %v2118
        %v2120 = vpop.xlane.xlu0 %2119
        %v2121 = vsel %vm1790, %v2112, 0.0
        %2122 = vadd.xlane.f32.xlu0 %v2121
        %v2123 = vpop.xlane.xlu0 %2122
        %v2124 = vsel %vm1790, %v2114, 0.0
        %2125 = vadd.xlane.f32.xlu0 %v2124
        %v2126 = vpop.xlane.xlu0 %2125
        %v2127 = vrcp.pop %v2117
        %v2128 = vrcp.pop %v2120
        %v2129 = vrcp.pop %v2123
        %v2130 = vrcp.pop %v2126
        %v2131 = vmul.f32 %v2108, %v2127
        %v2132 = vmul.f32 %v2110, %v2128
        %v2133 = vmul.f32 %v2112, %v2129
        %v2134 = vmul.f32 %v2114, %v2130
        %2135 = vst.msk [vmem:[%s817] sm:$0xff] %vm1790, %v2131
        %2136 = vst.msk [vmem:[%s817 + $0x8] sm:$0xff] %vm1790, %v2132
        %2137 = vst.msk [vmem:[%s817 + $0x10] sm:$0xff] %vm1790, %v2133
        %2138 = vst.msk [vmem:[%s817 + $0x18] sm:$0xff] %vm1790, %v2134
        %v2140 = vsel %vm1790, %v2131, 0
        %2142 = vmatprep.subr.mxu0 0.0
        %2143 = vmatpush1.msra.mxu0 0.0
        %2144 = vmatprep.subr.mxu0 0.0
        %2145 = vmatpush1.msra.mxu0 0.0
        %2146 = vmatprep.subr.mxu0 0.0
        %2147 = vmatpush1.msra.mxu0 0.0
        %2148 = vmatprep.subr.mxu0 0.0
        %2149 = vmatpush1.msra.mxu0 0.0
        %2150 = vmatprep.subr.mxu0 0.0
        %2151 = vmatpush1.msra.mxu0 0.0
        %2152 = vmatprep.subr.mxu0 0.0
        %2153 = vmatpush1.msra.mxu0 0.0
        %2154 = vmatprep.subr.mxu0 0.0
        %2155 = vmatpush1.msra.mxu0 0.0
        %2156 = vmatprep.subr.mxu0 0.0
        %2157 = vmatpush1.msra.mxu0 0.0
        %2158 = vmatprep.subr.mxu0 0.0
        %2159 = vmatpush1.msra.mxu0 0.0
        %2160 = vmatprep.subr.mxu0 0.0
        %2161 = vmatpush1.msra.mxu0 0.0
        %2162 = vmatprep.subr.mxu0 0.0
        %2163 = vmatpush1.msra.mxu0 0.0
        %2164 = vmatprep.subr.mxu0 0.0
        %2165 = vmatpush1.msra.mxu0 0.0
        %2166 = vmatprep.subr.mxu0 0.0
        %2167 = vmatpush1.msra.mxu0 0.0
        %2168 = vmatprep.subr.mxu0 0.0
        %2169 = vmatpush1.msra.mxu0 0.0
        %2170 = vmatprep.subr.mxu0 0.0
        %2171 = vmatpush1.msra.mxu0 0.0
        %2172 = vmatprep.subr.mxu0 0.0
        %2173 = vmatpush1.msra.mxu0 %v1763
        %2174 = vmatprep.subr.mxu0 0.0
        %2175 = vmatpush2.msra.mxu0 0.0
        %2176 = vmatprep.subr.mxu0 0.0
        %2177 = vmatpush2.msra.mxu0 0.0
        %2178 = vmatprep.subr.mxu0 0.0
        %2179 = vmatpush2.msra.mxu0 0.0
        %2180 = vmatprep.subr.mxu0 0.0
        %2181 = vmatpush2.msra.mxu0 0.0
        %2182 = vmatprep.subr.mxu0 0.0
        %2183 = vmatpush2.msra.mxu0 0.0
        %2184 = vmatprep.subr.mxu0 0.0
        %2185 = vmatpush2.msra.mxu0 0.0
        %2186 = vmatprep.subr.mxu0 0.0
        %2187 = vmatpush2.msra.mxu0 0.0
        %2188 = vmatprep.subr.mxu0 0.0
        %2189 = vmatpush2.msra.mxu0 0.0
        %2190 = vmatprep.subr.mxu0 0.0
        %2191 = vmatpush2.msra.mxu0 0.0
        %2192 = vmatprep.subr.mxu0 0.0
        %2193 = vmatpush2.msra.mxu0 0.0
        %2194 = vmatprep.subr.mxu0 0.0
        %2195 = vmatpush2.msra.mxu0 0.0
        %2196 = vmatprep.subr.mxu0 0.0
        %2197 = vmatpush2.msra.mxu0 0.0
        %2198 = vmatprep.subr.mxu0 0.0
        %2199 = vmatpush2.msra.mxu0 0.0
        %2200 = vmatprep.subr.mxu0 0.0
        %2201 = vmatpush2.msra.mxu0 0.0
        %2202 = vmatprep.subr.mxu0 0.0
        %2203 = vmatpush2.msra.mxu0 0.0
        %2204 = vmatprep.subr.mxu0 0.0
        %2205 = vmatpush2.msra.mxu0 0.0
        %2206 = vmatprep.mubr.f32.mxu0 0.0
        %2207 = vmatmul.mubr.f32.gmra.mxu0 %v2140
        %v2208 = vpop.f32.mrf.mxu0
        %v2209 = vadd.f32 0.0, %v2208
        %v2210 = vpop.f32.mrf.mxu0
        %2211 = vdwg.mxu0
        %v2213 = vsel %vm1790, %v2132, 0
        %2215 = vmatprep.subr.mxu0 0.0
        %2216 = vmatpush1.msra.mxu0 0.0
        %2217 = vmatprep.subr.mxu0 0.0
        %2218 = vmatpush1.msra.mxu0 0.0
        %2219 = vmatprep.subr.mxu0 0.0
        %2220 = vmatpush1.msra.mxu0 0.0
        %2221 = vmatprep.subr.mxu0 0.0
        %2222 = vmatpush1.msra.mxu0 0.0
        %2223 = vmatprep.subr.mxu0 0.0
        %2224 = vmatpush1.msra.mxu0 0.0
        %2225 = vmatprep.subr.mxu0 0.0
        %2226 = vmatpush1.msra.mxu0 0.0
        %2227 = vmatprep.subr.mxu0 0.0
        %2228 = vmatpush1.msra.mxu0 0.0
        %2229 = vmatprep.subr.mxu0 0.0
        %2230 = vmatpush1.msra.mxu0 0.0
        %2231 = vmatprep.subr.mxu0 0.0
        %2232 = vmatpush1.msra.mxu0 0.0
        %2233 = vmatprep.subr.mxu0 0.0
        %2234 = vmatpush1.msra.mxu0 0.0
        %2235 = vmatprep.subr.mxu0 0.0
        %2236 = vmatpush1.msra.mxu0 0.0
        %2237 = vmatprep.subr.mxu0 0.0
        %2238 = vmatpush1.msra.mxu0 0.0
        %2239 = vmatprep.subr.mxu0 0.0
        %2240 = vmatpush1.msra.mxu0 0.0
        %2241 = vmatprep.subr.mxu0 0.0
        %2242 = vmatpush1.msra.mxu0 0.0
        %2243 = vmatprep.subr.mxu0 0.0
        %2244 = vmatpush1.msra.mxu0 0.0
        %2245 = vmatprep.subr.mxu0 0.0
        %2246 = vmatpush1.msra.mxu0 %v1782
        %2247 = vmatprep.subr.mxu0 0.0
        %2248 = vmatpush2.msra.mxu0 0.0
        %2249 = vmatprep.subr.mxu0 0.0
        %2250 = vmatpush2.msra.mxu0 0.0
        %2251 = vmatprep.subr.mxu0 0.0
        %2252 = vmatpush2.msra.mxu0 0.0
        %2253 = vmatprep.subr.mxu0 0.0
        %2254 = vmatpush2.msra.mxu0 0.0
        %2255 = vmatprep.subr.mxu0 0.0
        %2256 = vmatpush2.msra.mxu0 0.0
        %2257 = vmatprep.subr.mxu0 0.0
        %2258 = vmatpush2.msra.mxu0 0.0
        %2259 = vmatprep.subr.mxu0 0.0
        %2260 = vmatpush2.msra.mxu0 0.0
        %2261 = vmatprep.subr.mxu0 0.0
        %2262 = vmatpush2.msra.mxu0 0.0
        %2263 = vmatprep.subr.mxu0 0.0
        %2264 = vmatpush2.msra.mxu0 0.0
        %2265 = vmatprep.subr.mxu0 0.0
        %2266 = vmatpush2.msra.mxu0 0.0
        %2267 = vmatprep.subr.mxu0 0.0
        %2268 = vmatpush2.msra.mxu0 0.0
        %2269 = vmatprep.subr.mxu0 0.0
        %2270 = vmatpush2.msra.mxu0 0.0
        %2271 = vmatprep.subr.mxu0 0.0
        %2272 = vmatpush2.msra.mxu0 0.0
        %2273 = vmatprep.subr.mxu0 0.0
        %2274 = vmatpush2.msra.mxu0 0.0
        %2275 = vmatprep.subr.mxu0 0.0
        %2276 = vmatpush2.msra.mxu0 0.0
        %2277 = vmatprep.subr.mxu0 0.0
        %2278 = vmatpush2.msra.mxu0 0.0
        %2279 = vmatprep.mubr.f32.mxu0 0.0
        %2280 = vmatmul.mubr.f32.gmra.mxu0 %v2213
        %v2281 = vpop.f32.mrf.mxu0
        %v2282 = vadd.f32 0.0, %v2281
        %v2283 = vpop.f32.mrf.mxu0
        %2284 = vdwg.mxu0
        %v2286 = vsel %vm1790, %v2133, 0
        %2288 = vmatprep.subr.mxu0 0.0
        %2289 = vmatpush1.msra.mxu0 0.0
        %2290 = vmatprep.subr.mxu0 0.0
        %2291 = vmatpush1.msra.mxu0 0.0
        %2292 = vmatprep.subr.mxu0 0.0
        %2293 = vmatpush1.msra.mxu0 0.0
        %2294 = vmatprep.subr.mxu0 0.0
        %2295 = vmatpush1.msra.mxu0 0.0
        %2296 = vmatprep.subr.mxu0 0.0
        %2297 = vmatpush1.msra.mxu0 0.0
        %2298 = vmatprep.subr.mxu0 0.0
        %2299 = vmatpush1.msra.mxu0 0.0
        %2300 = vmatprep.subr.mxu0 0.0
        %2301 = vmatpush1.msra.mxu0 0.0
        %2302 = vmatprep.subr.mxu0 0.0
        %2303 = vmatpush1.msra.mxu0 0.0
        %2304 = vmatprep.subr.mxu0 0.0
        %2305 = vmatpush1.msra.mxu0 0.0
        %2306 = vmatprep.subr.mxu0 0.0
        %2307 = vmatpush1.msra.mxu0 0.0
        %2308 = vmatprep.subr.mxu0 0.0
        %2309 = vmatpush1.msra.mxu0 0.0
        %2310 = vmatprep.subr.mxu0 0.0
        %2311 = vmatpush1.msra.mxu0 0.0
        %2312 = vmatprep.subr.mxu0 0.0
        %2313 = vmatpush1.msra.mxu0 0.0
        %2314 = vmatprep.subr.mxu0 0.0
        %2315 = vmatpush1.msra.mxu0 0.0
        %2316 = vmatprep.subr.mxu0 0.0
        %2317 = vmatpush1.msra.mxu0 0.0
        %2318 = vmatprep.subr.mxu0 0.0
        %2319 = vmatpush1.msra.mxu0 %v1785
        %2320 = vmatprep.subr.mxu0 0.0
        %2321 = vmatpush2.msra.mxu0 0.0
        %2322 = vmatprep.subr.mxu0 0.0
        %2323 = vmatpush2.msra.mxu0 0.0
        %2324 = vmatprep.subr.mxu0 0.0
        %2325 = vmatpush2.msra.mxu0 0.0
        %2326 = vmatprep.subr.mxu0 0.0
        %2327 = vmatpush2.msra.mxu0 0.0
        %2328 = vmatprep.subr.mxu0 0.0
        %2329 = vmatpush2.msra.mxu0 0.0
        %2330 = vmatprep.subr.mxu0 0.0
        %2331 = vmatpush2.msra.mxu0 0.0
        %2332 = vmatprep.subr.mxu0 0.0
        %2333 = vmatpush2.msra.mxu0 0.0
        %2334 = vmatprep.subr.mxu0 0.0
        %2335 = vmatpush2.msra.mxu0 0.0
        %2336 = vmatprep.subr.mxu0 0.0
        %2337 = vmatpush2.msra.mxu0 0.0
        %2338 = vmatprep.subr.mxu0 0.0
        %2339 = vmatpush2.msra.mxu0 0.0
        %2340 = vmatprep.subr.mxu0 0.0
        %2341 = vmatpush2.msra.mxu0 0.0
        %2342 = vmatprep.subr.mxu0 0.0
        %2343 = vmatpush2.msra.mxu0 0.0
        %2344 = vmatprep.subr.mxu0 0.0
        %2345 = vmatpush2.msra.mxu0 0.0
        %2346 = vmatprep.subr.mxu0 0.0
        %2347 = vmatpush2.msra.mxu0 0.0
        %2348 = vmatprep.subr.mxu0 0.0
        %2349 = vmatpush2.msra.mxu0 0.0
        %2350 = vmatprep.subr.mxu0 0.0
        %2351 = vmatpush2.msra.mxu0 0.0
        %2352 = vmatprep.mubr.f32.mxu0 0.0
        %2353 = vmatmul.mubr.f32.gmra.mxu0 %v2286
        %v2354 = vpop.f32.mrf.mxu0
        %v2355 = vadd.f32 0.0, %v2354
        %v2356 = vpop.f32.mrf.mxu0
        %2357 = vdwg.mxu0
        %v2359 = vsel %vm1790, %v2134, 0
        %2361 = vmatprep.subr.mxu0 0.0
        %2362 = vmatpush1.msra.mxu0 0.0
        %2363 = vmatprep.subr.mxu0 0.0
        %2364 = vmatpush1.msra.mxu0 0.0
        %2365 = vmatprep.subr.mxu0 0.0
        %2366 = vmatpush1.msra.mxu0 0.0
        %2367 = vmatprep.subr.mxu0 0.0
        %2368 = vmatpush1.msra.mxu0 0.0
        %2369 = vmatprep.subr.mxu0 0.0
        %2370 = vmatpush1.msra.mxu0 0.0
        %2371 = vmatprep.subr.mxu0 0.0
        %2372 = vmatpush1.msra.mxu0 0.0
        %2373 = vmatprep.subr.mxu0 0.0
        %2374 = vmatpush1.msra.mxu0 0.0
        %2375 = vmatprep.subr.mxu0 0.0
        %2376 = vmatpush1.msra.mxu0 0.0
        %2377 = vmatprep.subr.mxu0 0.0
        %2378 = vmatpush1.msra.mxu0 0.0
        %2379 = vmatprep.subr.mxu0 0.0
        %2380 = vmatpush1.msra.mxu0 0.0
        %2381 = vmatprep.subr.mxu0 0.0
        %2382 = vmatpush1.msra.mxu0 0.0
        %2383 = vmatprep.subr.mxu0 0.0
        %2384 = vmatpush1.msra.mxu0 0.0
        %2385 = vmatprep.subr.mxu0 0.0
        %2386 = vmatpush1.msra.mxu0 0.0
        %2387 = vmatprep.subr.mxu0 0.0
        %2388 = vmatpush1.msra.mxu0 0.0
        %2389 = vmatprep.subr.mxu0 0.0
        %2390 = vmatpush1.msra.mxu0 0.0
        %2391 = vmatprep.subr.mxu0 0.0
        %2392 = vmatpush1.msra.mxu0 %v1788
        %2393 = vmatprep.subr.mxu0 0.0
        %2394 = vmatpush2.msra.mxu0 0.0
        %2395 = vmatprep.subr.mxu0 0.0
        %2396 = vmatpush2.msra.mxu0 0.0
        %2397 = vmatprep.subr.mxu0 0.0
        %2398 = vmatpush2.msra.mxu0 0.0
        %2399 = vmatprep.subr.mxu0 0.0
        %2400 = vmatpush2.msra.mxu0 0.0
        %2401 = vmatprep.subr.mxu0 0.0
        %2402 = vmatpush2.msra.mxu0 0.0
        %2403 = vmatprep.subr.mxu0 0.0
        %2404 = vmatpush2.msra.mxu0 0.0
        %2405 = vmatprep.subr.mxu0 0.0
        %2406 = vmatpush2.msra.mxu0 0.0
        %2407 = vmatprep.subr.mxu0 0.0
        %2408 = vmatpush2.msra.mxu0 0.0
        %2409 = vmatprep.subr.mxu0 0.0
        %2410 = vmatpush2.msra.mxu0 0.0
        %2411 = vmatprep.subr.mxu0 0.0
        %2412 = vmatpush2.msra.mxu0 0.0
        %2413 = vmatprep.subr.mxu0 0.0
        %2414 = vmatpush2.msra.mxu0 0.0
        %2415 = vmatprep.subr.mxu0 0.0
        %2416 = vmatpush2.msra.mxu0 0.0
        %2417 = vmatprep.subr.mxu0 0.0
        %2418 = vmatpush2.msra.mxu0 0.0
        %2419 = vmatprep.subr.mxu0 0.0
        %2420 = vmatpush2.msra.mxu0 0.0
        %2421 = vmatprep.subr.mxu0 0.0
        %2422 = vmatpush2.msra.mxu0 0.0
        %2423 = vmatprep.subr.mxu0 0.0
        %2424 = vmatpush2.msra.mxu0 0.0
        %2425 = vmatprep.mubr.f32.mxu0 0.0
        %2426 = vmatmul.mubr.f32.gmra.mxu0 %v2359
        %v2427 = vpop.f32.mrf.mxu0
        %v2428 = vadd.f32 0.0, %v2427
        %v2429 = vpop.f32.mrf.mxu0
        %2430 = vdwg.mxu0
        %2432 = vrot.lane.b32.xlu0 %v2282, 8
        %v2433 = vpop.permute.xlu0 %2432
        %2436 = vrot.lane.b32.xlu0 %v2355, 16
        %v2437 = vpop.permute.xlu0 %2436
        %2440 = vrot.lane.b32.xlu0 %v2428, 24
        %v2441 = vpop.permute.xlu0 %2440
        %v2443 = vsel %vm1790, %v2209, %v2433
        %vm2444 = vcmask 130048
        %v2445 = vsel %vm2444, %v2443, %v2437
        %vm2446 = vcmask 195584
        %v2447 = vsel %vm2446, %v2445, %v2441
        %v2448 = vld [vmem:[#allocation5] sm:$0xff]
        %v2449 = vld [vmem:[#allocation5 + $0x8] sm:$0xff]
        %v2450 = vld [vmem:[#allocation5 + $0x10] sm:$0xff]
        %v2451 = vld [vmem:[#allocation5 + $0x18] sm:$0xff]
        %v2452 = vld [vmem:[%s9] sm:$0x1]
        %v2454 = vlaneseq
        %v2455 = vshrl.u32 %v2454, 7
        %v2456 = vsub.s32 0, %v2455
        %v2457 = vrot.slane %v2452, %v2456
        %v2460 = vsel %vm941, %v2447, 0
        %2462 = vmatprep.subr.mxu0 0.0
        %2463 = vmatpush1.msra.mxu0 0.0
        %2464 = vmatprep.subr.mxu0 0.0
        %2465 = vmatpush1.msra.mxu0 0.0
        %2466 = vmatprep.subr.mxu0 0.0
        %2467 = vmatpush1.msra.mxu0 0.0
        %2468 = vmatprep.subr.mxu0 0.0
        %2469 = vmatpush1.msra.mxu0 0.0
        %2470 = vmatprep.subr.mxu0 0.0
        %2471 = vmatpush1.msra.mxu0 0.0
        %2472 = vmatprep.subr.mxu0 0.0
        %2473 = vmatpush1.msra.mxu0 0.0
        %2474 = vmatprep.subr.mxu0 0.0
        %2475 = vmatpush1.msra.mxu0 0.0
        %2476 = vmatprep.subr.mxu0 0.0
        %2477 = vmatpush1.msra.mxu0 0.0
        %2478 = vmatprep.subr.mxu0 0.0
        %2479 = vmatpush1.msra.mxu0 0.0
        %2480 = vmatprep.subr.mxu0 0.0
        %2481 = vmatpush1.msra.mxu0 0.0
        %2482 = vmatprep.subr.mxu0 0.0
        %2483 = vmatpush1.msra.mxu0 0.0
        %2484 = vmatprep.subr.mxu0 0.0
        %2485 = vmatpush1.msra.mxu0 0.0
        %2486 = vmatprep.subr.mxu0 0.0
        %2487 = vmatpush1.msra.mxu0 %v2451
        %2488 = vmatprep.subr.mxu0 0.0
        %2489 = vmatpush1.msra.mxu0 %v2450
        %2490 = vmatprep.subr.mxu0 0.0
        %2491 = vmatpush1.msra.mxu0 %v2449
        %2492 = vmatprep.subr.mxu0 0.0
        %2493 = vmatpush1.msra.mxu0 %v2448
        %2494 = vmatprep.subr.mxu0 0.0
        %2495 = vmatpush2.msra.mxu0 0.0
        %2496 = vmatprep.subr.mxu0 0.0
        %2497 = vmatpush2.msra.mxu0 0.0
        %2498 = vmatprep.subr.mxu0 0.0
        %2499 = vmatpush2.msra.mxu0 0.0
        %2500 = vmatprep.subr.mxu0 0.0
        %2501 = vmatpush2.msra.mxu0 0.0
        %2502 = vmatprep.subr.mxu0 0.0
        %2503 = vmatpush2.msra.mxu0 0.0
        %2504 = vmatprep.subr.mxu0 0.0
        %2505 = vmatpush2.msra.mxu0 0.0
        %2506 = vmatprep.subr.mxu0 0.0
        %2507 = vmatpush2.msra.mxu0 0.0
        %2508 = vmatprep.subr.mxu0 0.0
        %2509 = vmatpush2.msra.mxu0 0.0
        %2510 = vmatprep.subr.mxu0 0.0
        %2511 = vmatpush2.msra.mxu0 0.0
        %2512 = vmatprep.subr.mxu0 0.0
        %2513 = vmatpush2.msra.mxu0 0.0
        %2514 = vmatprep.subr.mxu0 0.0
        %2515 = vmatpush2.msra.mxu0 0.0
        %2516 = vmatprep.subr.mxu0 0.0
        %2517 = vmatpush2.msra.mxu0 0.0
        %2518 = vmatprep.subr.mxu0 0.0
        %2519 = vmatpush2.msra.mxu0 0.0
        %2520 = vmatprep.subr.mxu0 0.0
        %2521 = vmatpush2.msra.mxu0 0.0
        %2522 = vmatprep.subr.mxu0 0.0
        %2523 = vmatpush2.msra.mxu0 0.0
        %2524 = vmatprep.subr.mxu0 0.0
        %2525 = vmatpush2.msra.mxu0 0.0
        %2526 = vmatprep.mubr.f32.mxu0 0.0
        %2527 = vmatmul.mubr.f32.gmra.mxu0 %v2460
        %v2528 = vpop.f32.mrf.mxu0
        %v2529 = vadd.f32 %v2457, %v2528
        %v2530 = vpop.f32.mrf.mxu0
        %2531 = vdwg.mxu0
        %v2532 = vadd.f32 %v2529, %v1511
        %v2533 = vld [vmem:[%s10] sm:$0x1]
        %v2534 = vld [vmem:[#allocation7] sm:$0x1]
        %v2535 = vsel %vm941, %v2532, 0.0
        %2536 = vadd.xlane.f32.xlu0 %v2535
        %v2537 = vpop.xlane.xlu0 %2536
        %v2538 = vmul.f32 %v2537, %v1163
        %v2539 = vsub.f32 %v2532, %v2538
        %v2540 = vmul.f32 %v2539, %v2539
        %v2541 = vsel %vm941, %v2540, 0.0
        %2542 = vadd.xlane.f32.xlu0 %v2541
        %v2543 = vpop.xlane.xlu0 %2542
        %v2544 = vmul.f32 %v2543, %v1163
        %v2545 = vadd.f32 %v2544, 1e-05
        %v2546 = vrsqrt.pop %v2545
        %v2547 = vmul.f32 %v2539, %v2546
        %v2549 = vlaneseq
        %v2550 = vshrl.u32 %v2549, 7
        %v2551 = vsub.s32 0, %v2550
        %v2552 = vrot.slane %v2533, %v2551
        %v2554 = vmul.f32 %v2547, %v2552
        %v2556 = vlaneseq
        %v2557 = vshrl.u32 %v2556, 7
        %v2558 = vsub.s32 0, %v2557
        %v2559 = vrot.slane %v2534, %v2558
        %v2561 = vadd.f32 %v2554, %v2559
        %v2562 = vld [vmem:[#allocation8] sm:$0xff]
        %v2563 = vld [vmem:[#allocation8 + $0x8] sm:$0xff]
        %v2564 = vld [vmem:[#allocation8 + $0x10] sm:$0xff]
        %v2565 = vld [vmem:[#allocation8 + $0x18] sm:$0xff]
        %v2566 = vld [vmem:[#allocation10] sm:$0x1]
        %v2568 = vlaneseq
        %v2569 = vshrl.u32 %v2568, 7
        %v2570 = vsub.s32 0, %v2569
        %v2571 = vrot.slane %v2566, %v2570
        %v2574 = vsel %vm941, %v2561, 0
        %2576 = vmatprep.subr.mxu0 0.0
        %2577 = vmatpush1.msra.mxu0 0.0
        %2578 = vmatprep.subr.mxu0 0.0
        %2579 = vmatpush1.msra.mxu0 0.0
        %2580 = vmatprep.subr.mxu0 0.0
        %2581 = vmatpush1.msra.mxu0 0.0
        %2582 = vmatprep.subr.mxu0 0.0
        %2583 = vmatpush1.msra.mxu0 0.0
        %2584 = vmatprep.subr.mxu0 0.0
        %2585 = vmatpush1.msra.mxu0 0.0
        %2586 = vmatprep.subr.mxu0 0.0
        %2587 = vmatpush1.msra.mxu0 0.0
        %2588 = vmatprep.subr.mxu0 0.0
        %2589 = vmatpush1.msra.mxu0 0.0
        %2590 = vmatprep.subr.mxu0 0.0
        %2591 = vmatpush1.msra.mxu0 0.0
        %2592 = vmatprep.subr.mxu0 0.0
        %2593 = vmatpush1.msra.mxu0 0.0
        %2594 = vmatprep.subr.mxu0 0.0
        %2595 = vmatpush1.msra.mxu0 0.0
        %2596 = vmatprep.subr.mxu0 0.0
        %2597 = vmatpush1.msra.mxu0 0.0
        %2598 = vmatprep.subr.mxu0 0.0
        %2599 = vmatpush1.msra.mxu0 0.0
        %2600 = vmatprep.subr.mxu0 0.0
        %2601 = vmatpush1.msra.mxu0 %v2565
        %2602 = vmatprep.subr.mxu0 0.0
        %2603 = vmatpush1.msra.mxu0 %v2564
        %2604 = vmatprep.subr.mxu0 0.0
        %2605 = vmatpush1.msra.mxu0 %v2563
        %2606 = vmatprep.subr.mxu0 0.0
        %2607 = vmatpush1.msra.mxu0 %v2562
        %2608 = vmatprep.subr.mxu0 0.0
        %2609 = vmatpush2.msra.mxu0 0.0
        %2610 = vmatprep.subr.mxu0 0.0
        %2611 = vmatpush2.msra.mxu0 0.0
        %2612 = vmatprep.subr.mxu0 0.0
        %2613 = vmatpush2.msra.mxu0 0.0
        %2614 = vmatprep.subr.mxu0 0.0
        %2615 = vmatpush2.msra.mxu0 0.0
        %2616 = vmatprep.subr.mxu0 0.0
        %2617 = vmatpush2.msra.mxu0 0.0
        %2618 = vmatprep.subr.mxu0 0.0
        %2619 = vmatpush2.msra.mxu0 0.0
        %2620 = vmatprep.subr.mxu0 0.0
        %2621 = vmatpush2.msra.mxu0 0.0
        %2622 = vmatprep.subr.mxu0 0.0
        %2623 = vmatpush2.msra.mxu0 0.0
        %2624 = vmatprep.subr.mxu0 0.0
        %2625 = vmatpush2.msra.mxu0 0.0
        %2626 = vmatprep.subr.mxu0 0.0
        %2627 = vmatpush2.msra.mxu0 0.0
        %2628 = vmatprep.subr.mxu0 0.0
        %2629 = vmatpush2.msra.mxu0 0.0
        %2630 = vmatprep.subr.mxu0 0.0
        %2631 = vmatpush2.msra.mxu0 0.0
        %2632 = vmatprep.subr.mxu0 0.0
        %2633 = vmatpush2.msra.mxu0 0.0
        %2634 = vmatprep.subr.mxu0 0.0
        %2635 = vmatpush2.msra.mxu0 0.0
        %2636 = vmatprep.subr.mxu0 0.0
        %2637 = vmatpush2.msra.mxu0 0.0
        %2638 = vmatprep.subr.mxu0 0.0
        %2639 = vmatpush2.msra.mxu0 0.0
        %2640 = vmatprep.mubr.f32.mxu0 0.0
        %2641 = vmatmul.mubr.f32.gmra.mxu0 %v2574
        %v2642 = vpop.f32.mrf.mxu0
        %v2643 = vadd.f32 %v2571, %v2642
        %v2644 = vpop.f32.mrf.mxu0
        %2645 = vdwg.mxu0
        %v2646 = vmax.f32 %v2643, 0.0
        %v2647 = vld [vmem:[%s14] sm:$0xff]
        %v2648 = vld [vmem:[%s14 + $0x8] sm:$0xff]
        %v2649 = vld [vmem:[%s14 + $0x10] sm:$0xff]
        %v2650 = vld [vmem:[%s14 + $0x18] sm:$0xff]
        %v2651 = vld [vmem:[%s14 + $0x20] sm:$0xff]
        %v2652 = vld [vmem:[%s14 + $0x28] sm:$0xff]
        %v2653 = vld [vmem:[%s14 + $0x30] sm:$0xff]
        %v2654 = vld [vmem:[%s14 + $0x38] sm:$0xff]
        %v2655 = vld [vmem:[#allocation11] sm:$0x1]
        %v2657 = vlaneseq
        %v2658 = vshrl.u32 %v2657, 7
        %v2659 = vsub.s32 0, %v2658
        %v2660 = vrot.slane %v2655, %v2659
        %vm2662 = vcmask 523264
        %v2664 = vsel %vm2662, %v2646, 0
        %2666 = vmatprep.subr.mxu0 0.0
        %2667 = vmatpush1.msra.mxu0 0.0
        %2668 = vmatprep.subr.mxu0 0.0
        %2669 = vmatpush1.msra.mxu0 0.0
        %2670 = vmatprep.subr.mxu0 0.0
        %2671 = vmatpush1.msra.mxu0 0.0
        %2672 = vmatprep.subr.mxu0 0.0
        %2673 = vmatpush1.msra.mxu0 0.0
        %2674 = vmatprep.subr.mxu0 0.0
        %2675 = vmatpush1.msra.mxu0 0.0
        %2676 = vmatprep.subr.mxu0 0.0
        %2677 = vmatpush1.msra.mxu0 0.0
        %2678 = vmatprep.subr.mxu0 0.0
        %2679 = vmatpush1.msra.mxu0 0.0
        %2680 = vmatprep.subr.mxu0 0.0
        %2681 = vmatpush1.msra.mxu0 0.0
        %2682 = vmatprep.subr.mxu0 0.0
        %2683 = vmatpush1.msra.mxu0 %v2654
        %2684 = vmatprep.subr.mxu0 0.0
        %2685 = vmatpush1.msra.mxu0 %v2653
        %2686 = vmatprep.subr.mxu0 0.0
        %2687 = vmatpush1.msra.mxu0 %v2652
        %2688 = vmatprep.subr.mxu0 0.0
        %2689 = vmatpush1.msra.mxu0 %v2651
        %2690 = vmatprep.subr.mxu0 0.0
        %2691 = vmatpush1.msra.mxu0 %v2650
        %2692 = vmatprep.subr.mxu0 0.0
        %2693 = vmatpush1.msra.mxu0 %v2649
        %2694 = vmatprep.subr.mxu0 0.0
        %2695 = vmatpush1.msra.mxu0 %v2648
        %2696 = vmatprep.subr.mxu0 0.0
        %2697 = vmatpush1.msra.mxu0 %v2647
        %2698 = vmatprep.subr.mxu0 0.0
        %2699 = vmatpush2.msra.mxu0 0.0
        %2700 = vmatprep.subr.mxu0 0.0
        %2701 = vmatpush2.msra.mxu0 0.0
        %2702 = vmatprep.subr.mxu0 0.0
        %2703 = vmatpush2.msra.mxu0 0.0
        %2704 = vmatprep.subr.mxu0 0.0
        %2705 = vmatpush2.msra.mxu0 0.0
        %2706 = vmatprep.subr.mxu0 0.0
        %2707 = vmatpush2.msra.mxu0 0.0
        %2708 = vmatprep.subr.mxu0 0.0
        %2709 = vmatpush2.msra.mxu0 0.0
        %2710 = vmatprep.subr.mxu0 0.0
        %2711 = vmatpush2.msra.mxu0 0.0
        %2712 = vmatprep.subr.mxu0 0.0
        %2713 = vmatpush2.msra.mxu0 0.0
        %2714 = vmatprep.subr.mxu0 0.0
        %2715 = vmatpush2.msra.mxu0 0.0
        %2716 = vmatprep.subr.mxu0 0.0
        %2717 = vmatpush2.msra.mxu0 0.0
        %2718 = vmatprep.subr.mxu0 0.0
        %2719 = vmatpush2.msra.mxu0 0.0
        %2720 = vmatprep.subr.mxu0 0.0
        %2721 = vmatpush2.msra.mxu0 0.0
        %2722 = vmatprep.subr.mxu0 0.0
        %2723 = vmatpush2.msra.mxu0 0.0
        %2724 = vmatprep.subr.mxu0 0.0
        %2725 = vmatpush2.msra.mxu0 0.0
        %2726 = vmatprep.subr.mxu0 0.0
        %2727 = vmatpush2.msra.mxu0 0.0
        %2728 = vmatprep.subr.mxu0 0.0
        %2729 = vmatpush2.msra.mxu0 0.0
        %2730 = vmatprep.mubr.f32.mxu0 0.0
        %2731 = vmatmul.mubr.f32.gmra.mxu0 %v2664
        %v2732 = vpop.f32.mrf.mxu0
        %v2733 = vadd.f32 %v2660, %v2732
        %v2734 = vpop.f32.mrf.mxu0
        %2735 = vdwg.mxu0
        %v2736 = vadd.f32 %v2733, %v2561
        %v2737 = vld [vmem:[#allocation13] sm:$0x1]
        %v2738 = vld [vmem:[#allocation14] sm:$0x1]
        %v2739 = vsel %vm941, %v2736, 0.0
        %2740 = vadd.xlane.f32.xlu0 %v2739
        %v2741 = vpop.xlane.xlu0 %2740
        %v2742 = vmul.f32 %v2741, %v1163
        %v2743 = vsub.f32 %v2736, %v2742
        %v2744 = vmul.f32 %v2743, %v2743
        %v2745 = vsel %vm941, %v2744, 0.0
        %2746 = vadd.xlane.f32.xlu0 %v2745
        %v2747 = vpop.xlane.xlu0 %2746
        %v2748 = vmul.f32 %v2747, %v1163
        %v2749 = vadd.f32 %v2748, 1e-05
        %v2750 = vrsqrt.pop %v2749
        %v2751 = vmul.f32 %v2743, %v2750
        %v2753 = vlaneseq
        %v2754 = vshrl.u32 %v2753, 7
        %v2755 = vsub.s32 0, %v2754
        %v2756 = vrot.slane %v2737, %v2755
        %v2758 = vmul.f32 %v2751, %v2756
        %v2760 = vlaneseq
        %v2761 = vshrl.u32 %v2760, 7
        %v2762 = vsub.s32 0, %v2761
        %v2763 = vrot.slane %v2738, %v2762
        %v2765 = vadd.f32 %v2758, %v2763
        %s2766 = scalar_lea.vmem %s6, 96
        %v2767 = vld [vmem:[%s2766] sm:$0xff]
        %v2768 = vld [vmem:[%s2766 + $0x8] sm:$0xff]
        %v2769 = vld [vmem:[%s2766 + $0x10] sm:$0xff]
        %v2770 = vld [vmem:[%s2766 + $0x18] sm:$0xff]
        %v2771 = vld [vmem:[%s2766 + $0x20] sm:$0xff]
        %v2772 = vld [vmem:[%s2766 + $0x28] sm:$0xff]
        %v2773 = vld [vmem:[%s2766 + $0x30] sm:$0xff]
        %v2774 = vld [vmem:[%s2766 + $0x38] sm:$0xff]
        %v2775 = vld [vmem:[%s2766 + $0x40] sm:$0xff]
        %v2776 = vld [vmem:[%s2766 + $0x48] sm:$0xff]
        %v2777 = vld [vmem:[%s2766 + $0x50] sm:$0xff]
        %v2778 = vld [vmem:[%s2766 + $0x58] sm:$0xff]
        %s2779 = scalar_lea.vmem %s7, 3
        %v2780 = vld [vmem:[%s2779] sm:$0x1]
        %v2781 = vld [vmem:[%s2779 + $0x1] sm:$0x1]
        %v2782 = vld [vmem:[%s2779 + $0x2] sm:$0x1]
        %v2786 = vlaneseq
        %v2787 = vshrl.u32 %v2786, 7
        %v2788 = vsub.s32 0, %v2787
        %v2789 = vrot.slane %v2780, %v2788
        %v2790 = vlaneseq
        %v2791 = vshrl.u32 %v2790, 7
        %v2792 = vsub.s32 0, %v2791
        %v2793 = vrot.slane %v2781, %v2792
        %v2794 = vlaneseq
        %v2795 = vshrl.u32 %v2794, 7
        %v2796 = vsub.s32 0, %v2795
        %v2797 = vrot.slane %v2782, %v2796
        %v2802 = vsel %vm941, %v2765, 0
        %2804 = vmatprep.subr.mxu0 0.0
        %2805 = vmatpush1.msra.mxu0 0.0
        %2806 = vmatprep.subr.mxu0 0.0
        %2807 = vmatpush1.msra.mxu0 0.0
        %2808 = vmatprep.subr.mxu0 0.0
        %2809 = vmatpush1.msra.mxu0 0.0
        %2810 = vmatprep.subr.mxu0 0.0
        %2811 = vmatpush1.msra.mxu0 0.0
        %2812 = vmatprep.subr.mxu0 0.0
        %2813 = vmatpush1.msra.mxu0 0.0
        %2814 = vmatprep.subr.mxu0 0.0
        %2815 = vmatpush1.msra.mxu0 0.0
        %2816 = vmatprep.subr.mxu0 0.0
        %2817 = vmatpush1.msra.mxu0 0.0
        %2818 = vmatprep.subr.mxu0 0.0
        %2819 = vmatpush1.msra.mxu0 0.0
        %2820 = vmatprep.subr.mxu0 0.0
        %2821 = vmatpush1.msra.mxu0 0.0
        %2822 = vmatprep.subr.mxu0 0.0
        %2823 = vmatpush1.msra.mxu0 0.0
        %2824 = vmatprep.subr.mxu0 0.0
        %2825 = vmatpush1.msra.mxu0 0.0
        %2826 = vmatprep.subr.mxu0 0.0
        %2827 = vmatpush1.msra.mxu0 0.0
        %2828 = vmatprep.subr.mxu0 0.0
        %2829 = vmatpush1.msra.mxu0 %v2770
        %2830 = vmatprep.subr.mxu0 0.0
        %2831 = vmatpush1.msra.mxu0 %v2769
        %2832 = vmatprep.subr.mxu0 0.0
        %2833 = vmatpush1.msra.mxu0 %v2768
        %2834 = vmatprep.subr.mxu0 0.0
        %2835 = vmatpush1.msra.mxu0 %v2767
        %2836 = vmatprep.subr.mxu0 0.0
        %2837 = vmatpush2.msra.mxu0 0.0
        %2838 = vmatprep.subr.mxu0 0.0
        %2839 = vmatpush2.msra.mxu0 0.0
        %2840 = vmatprep.subr.mxu0 0.0
        %2841 = vmatpush2.msra.mxu0 0.0
        %2842 = vmatprep.subr.mxu0 0.0
        %2843 = vmatpush2.msra.mxu0 0.0
        %2844 = vmatprep.subr.mxu0 0.0
        %2845 = vmatpush2.msra.mxu0 0.0
        %2846 = vmatprep.subr.mxu0 0.0
        %2847 = vmatpush2.msra.mxu0 0.0
        %2848 = vmatprep.subr.mxu0 0.0
        %2849 = vmatpush2.msra.mxu0 0.0
        %2850 = vmatprep.subr.mxu0 0.0
        %2851 = vmatpush2.msra.mxu0 0.0
        %2852 = vmatprep.subr.mxu0 0.0
        %2853 = vmatpush2.msra.mxu0 0.0
        %2854 = vmatprep.subr.mxu0 0.0
        %2855 = vmatpush2.msra.mxu0 0.0
        %2856 = vmatprep.subr.mxu0 0.0
        %2857 = vmatpush2.msra.mxu0 0.0
        %2858 = vmatprep.subr.mxu0 0.0
        %2859 = vmatpush2.msra.mxu0 0.0
        %2860 = vmatprep.subr.mxu0 0.0
        %2861 = vmatpush2.msra.mxu0 0.0
        %2862 = vmatprep.subr.mxu0 0.0
        %2863 = vmatpush2.msra.mxu0 0.0
        %2864 = vmatprep.subr.mxu0 0.0
        %2865 = vmatpush2.msra.mxu0 0.0
        %2866 = vmatprep.subr.mxu0 0.0
        %2867 = vmatpush2.msra.mxu0 0.0
        %2868 = vmatprep.mubr.f32.mxu0 0.0
        %2869 = vmatmul.mubr.f32.gmra.mxu0 %v2802
        %v2870 = vpop.f32.mrf.mxu0
        %v2871 = vadd.f32 %v2789, %v2870
        %v2872 = vpop.f32.mrf.mxu0
        %2873 = vdwg.mxu0
        %2874 = vmatprep.subr.mxu0 0.0
        %2875 = vmatpush1.msra.mxu0 0.0
        %2876 = vmatprep.subr.mxu0 0.0
        %2877 = vmatpush1.msra.mxu0 0.0
        %2878 = vmatprep.subr.mxu0 0.0
        %2879 = vmatpush1.msra.mxu0 0.0
        %2880 = vmatprep.subr.mxu0 0.0
        %2881 = vmatpush1.msra.mxu0 0.0
        %2882 = vmatprep.subr.mxu0 0.0
        %2883 = vmatpush1.msra.mxu0 0.0
        %2884 = vmatprep.subr.mxu0 0.0
        %2885 = vmatpush1.msra.mxu0 0.0
        %2886 = vmatprep.subr.mxu0 0.0
        %2887 = vmatpush1.msra.mxu0 0.0
        %2888 = vmatprep.subr.mxu0 0.0
        %2889 = vmatpush1.msra.mxu0 0.0
        %2890 = vmatprep.subr.mxu0 0.0
        %2891 = vmatpush1.msra.mxu0 0.0
        %2892 = vmatprep.subr.mxu0 0.0
        %2893 = vmatpush1.msra.mxu0 0.0
        %2894 = vmatprep.subr.mxu0 0.0
        %2895 = vmatpush1.msra.mxu0 0.0
        %2896 = vmatprep.subr.mxu0 0.0
        %2897 = vmatpush1.msra.mxu0 0.0
        %2898 = vmatprep.subr.mxu0 0.0
        %2899 = vmatpush1.msra.mxu0 %v2774
        %2900 = vmatprep.subr.mxu0 0.0
        %2901 = vmatpush1.msra.mxu0 %v2773
        %2902 = vmatprep.subr.mxu0 0.0
        %2903 = vmatpush1.msra.mxu0 %v2772
        %2904 = vmatprep.subr.mxu0 0.0
        %2905 = vmatpush1.msra.mxu0 %v2771
        %2906 = vmatprep.subr.mxu0 0.0
        %2907 = vmatpush2.msra.mxu0 0.0
        %2908 = vmatprep.subr.mxu0 0.0
        %2909 = vmatpush2.msra.mxu0 0.0
        %2910 = vmatprep.subr.mxu0 0.0
        %2911 = vmatpush2.msra.mxu0 0.0
        %2912 = vmatprep.subr.mxu0 0.0
        %2913 = vmatpush2.msra.mxu0 0.0
        %2914 = vmatprep.subr.mxu0 0.0
        %2915 = vmatpush2.msra.mxu0 0.0
        %2916 = vmatprep.subr.mxu0 0.0
        %2917 = vmatpush2.msra.mxu0 0.0
        %2918 = vmatprep.subr.mxu0 0.0
        %2919 = vmatpush2.msra.mxu0 0.0
        %2920 = vmatprep.subr.mxu0 0.0
        %2921 = vmatpush2.msra.mxu0 0.0
        %2922 = vmatprep.subr.mxu0 0.0
        %2923 = vmatpush2.msra.mxu0 0.0
        %2924 = vmatprep.subr.mxu0 0.0
        %2925 = vmatpush2.msra.mxu0 0.0
        %2926 = vmatprep.subr.mxu0 0.0
        %2927 = vmatpush2.msra.mxu0 0.0
        %2928 = vmatprep.subr.mxu0 0.0
        %2929 = vmatpush2.msra.mxu0 0.0
        %2930 = vmatprep.subr.mxu0 0.0
        %2931 = vmatpush2.msra.mxu0 0.0
        %2932 = vmatprep.subr.mxu0 0.0
        %2933 = vmatpush2.msra.mxu0 0.0
        %2934 = vmatprep.subr.mxu0 0.0
        %2935 = vmatpush2.msra.mxu0 0.0
        %2936 = vmatprep.subr.mxu0 0.0
        %2937 = vmatpush2.msra.mxu0 0.0
        %2938 = vmatprep.mubr.f32.mxu0 0.0
        %2939 = vmatmul.mubr.f32.gmra.mxu0 %v2802
        %v2940 = vpop.f32.mrf.mxu0
        %v2941 = vadd.f32 %v2793, %v2940
        %v2942 = vpop.f32.mrf.mxu0
        %2943 = vdwg.mxu0
        %2944 = vmatprep.subr.mxu0 0.0
        %2945 = vmatpush1.msra.mxu0 0.0
        %2946 = vmatprep.subr.mxu0 0.0
        %2947 = vmatpush1.msra.mxu0 0.0
        %2948 = vmatprep.subr.mxu0 0.0
        %2949 = vmatpush1.msra.mxu0 0.0
        %2950 = vmatprep.subr.mxu0 0.0
        %2951 = vmatpush1.msra.mxu0 0.0
        %2952 = vmatprep.subr.mxu0 0.0
        %2953 = vmatpush1.msra.mxu0 0.0
        %2954 = vmatprep.subr.mxu0 0.0
        %2955 = vmatpush1.msra.mxu0 0.0
        %2956 = vmatprep.subr.mxu0 0.0
        %2957 = vmatpush1.msra.mxu0 0.0
        %2958 = vmatprep.subr.mxu0 0.0
        %2959 = vmatpush1.msra.mxu0 0.0
        %2960 = vmatprep.subr.mxu0 0.0
        %2961 = vmatpush1.msra.mxu0 0.0
        %2962 = vmatprep.subr.mxu0 0.0
        %2963 = vmatpush1.msra.mxu0 0.0
        %2964 = vmatprep.subr.mxu0 0.0
        %2965 = vmatpush1.msra.mxu0 0.0
        %2966 = vmatprep.subr.mxu0 0.0
        %2967 = vmatpush1.msra.mxu0 0.0
        %2968 = vmatprep.subr.mxu0 0.0
        %2969 = vmatpush1.msra.mxu0 %v2778
        %2970 = vmatprep.subr.mxu0 0.0
        %2971 = vmatpush1.msra.mxu0 %v2777
        %2972 = vmatprep.subr.mxu0 0.0
        %2973 = vmatpush1.msra.mxu0 %v2776
        %2974 = vmatprep.subr.mxu0 0.0
        %2975 = vmatpush1.msra.mxu0 %v2775
        %2976 = vmatprep.subr.mxu0 0.0
        %2977 = vmatpush2.msra.mxu0 0.0
        %2978 = vmatprep.subr.mxu0 0.0
        %2979 = vmatpush2.msra.mxu0 0.0
        %2980 = vmatprep.subr.mxu0 0.0
        %2981 = vmatpush2.msra.mxu0 0.0
        %2982 = vmatprep.subr.mxu0 0.0
        %2983 = vmatpush2.msra.mxu0 0.0
        %2984 = vmatprep.subr.mxu0 0.0
        %2985 = vmatpush2.msra.mxu0 0.0
        %2986 = vmatprep.subr.mxu0 0.0
        %2987 = vmatpush2.msra.mxu0 0.0
        %2988 = vmatprep.subr.mxu0 0.0
        %2989 = vmatpush2.msra.mxu0 0.0
        %2990 = vmatprep.subr.mxu0 0.0
        %2991 = vmatpush2.msra.mxu0 0.0
        %2992 = vmatprep.subr.mxu0 0.0
        %2993 = vmatpush2.msra.mxu0 0.0
        %2994 = vmatprep.subr.mxu0 0.0
        %2995 = vmatpush2.msra.mxu0 0.0
        %2996 = vmatprep.subr.mxu0 0.0
        %2997 = vmatpush2.msra.mxu0 0.0
        %2998 = vmatprep.subr.mxu0 0.0
        %2999 = vmatpush2.msra.mxu0 0.0
        %3000 = vmatprep.subr.mxu0 0.0
        %3001 = vmatpush2.msra.mxu0 0.0
        %3002 = vmatprep.subr.mxu0 0.0
        %3003 = vmatpush2.msra.mxu0 0.0
        %3004 = vmatprep.subr.mxu0 0.0
        %3005 = vmatpush2.msra.mxu0 0.0
        %3006 = vmatprep.subr.mxu0 0.0
        %3007 = vmatpush2.msra.mxu0 0.0
        %3008 = vmatprep.mubr.f32.mxu0 0.0
        %3009 = vmatmul.mubr.f32.gmra.mxu0 %v2802
        %v3010 = vpop.f32.mrf.mxu0
        %v3011 = vadd.f32 %v2797, %v3010
        %v3012 = vpop.f32.mrf.mxu0
        %3013 = vdwg.mxu0
        %3015 = vrot.lane.b32.xlu0 %v2871, 120
        %v3016 = vpop.permute.xlu0 %3015
        %3017 = vrot.lane.b32.xlu0 %v2871, 112
        %v3018 = vpop.permute.xlu0 %3017
        %3019 = vrot.lane.b32.xlu0 %v2871, 104
        %v3020 = vpop.permute.xlu0 %3019
        %3022 = vrot.lane.b32.xlu0 %v2941, 120
        %v3023 = vpop.permute.xlu0 %3022
        %3024 = vrot.lane.b32.xlu0 %v2941, 112
        %v3025 = vpop.permute.xlu0 %3024
        %3026 = vrot.lane.b32.xlu0 %v2941, 104
        %v3027 = vpop.permute.xlu0 %3026
        %3029 = vrot.lane.b32.xlu0 %v3011, 120
        %v3030 = vpop.permute.xlu0 %3029
        %3032 = vrot.lane.b32.xlu0 %v3011, 112
        %v3033 = vpop.permute.xlu0 %3032
        %3035 = vrot.lane.b32.xlu0 %v3011, 104
        %v3036 = vpop.permute.xlu0 %3035
        %v3038 = vsel %vm1790, %v2871, 0
        %v3040 = vsel %vm1790, %v2941, 0
        %3042 = vmatprep.subr.mxu0 0.0
        %3043 = vmatpush1.xpose.msra.mxu0 0.0
        %3044 = vmatprep.subr.mxu0 0.0
        %3045 = vmatpush1.xpose.msra.mxu0 0.0
        %3046 = vmatprep.subr.mxu0 0.0
        %3047 = vmatpush1.xpose.msra.mxu0 0.0
        %3048 = vmatprep.subr.mxu0 0.0
        %3049 = vmatpush1.xpose.msra.mxu0 0.0
        %3050 = vmatprep.subr.mxu0 0.0
        %3051 = vmatpush1.xpose.msra.mxu0 0.0
        %3052 = vmatprep.subr.mxu0 0.0
        %3053 = vmatpush1.xpose.msra.mxu0 0.0
        %3054 = vmatprep.subr.mxu0 0.0
        %3055 = vmatpush1.xpose.msra.mxu0 0.0
        %3056 = vmatprep.subr.mxu0 0.0
        %3057 = vmatpush1.xpose.msra.mxu0 0.0
        %3058 = vmatprep.subr.mxu0 0.0
        %3059 = vmatpush1.xpose.msra.mxu0 0.0
        %3060 = vmatprep.subr.mxu0 0.0
        %3061 = vmatpush1.xpose.msra.mxu0 0.0
        %3062 = vmatprep.subr.mxu0 0.0
        %3063 = vmatpush1.xpose.msra.mxu0 0.0
        %3064 = vmatprep.subr.mxu0 0.0
        %3065 = vmatpush1.xpose.msra.mxu0 0.0
        %3066 = vmatprep.subr.mxu0 0.0
        %3067 = vmatpush1.xpose.msra.mxu0 0.0
        %3068 = vmatprep.subr.mxu0 0.0
        %3069 = vmatpush1.xpose.msra.mxu0 0.0
        %3070 = vmatprep.subr.mxu0 0.0
        %3071 = vmatpush1.xpose.msra.mxu0 0.0
        %3072 = vmatprep.subr.mxu0 0.0
        %3073 = vmatpush1.xpose.msra.mxu0 %v3040
        %3074 = vmatprep.subr.mxu0 0.0
        %3075 = vmatpush2.xpose.msra.mxu0 0.0
        %3076 = vmatprep.subr.mxu0 0.0
        %3077 = vmatpush2.xpose.msra.mxu0 0.0
        %3078 = vmatprep.subr.mxu0 0.0
        %3079 = vmatpush2.xpose.msra.mxu0 0.0
        %3080 = vmatprep.subr.mxu0 0.0
        %3081 = vmatpush2.xpose.msra.mxu0 0.0
        %3082 = vmatprep.subr.mxu0 0.0
        %3083 = vmatpush2.xpose.msra.mxu0 0.0
        %3084 = vmatprep.subr.mxu0 0.0
        %3085 = vmatpush2.xpose.msra.mxu0 0.0
        %3086 = vmatprep.subr.mxu0 0.0
        %3087 = vmatpush2.xpose.msra.mxu0 0.0
        %3088 = vmatprep.subr.mxu0 0.0
        %3089 = vmatpush2.xpose.msra.mxu0 0.0
        %3090 = vmatprep.subr.mxu0 0.0
        %3091 = vmatpush2.xpose.msra.mxu0 0.0
        %3092 = vmatprep.subr.mxu0 0.0
        %3093 = vmatpush2.xpose.msra.mxu0 0.0
        %3094 = vmatprep.subr.mxu0 0.0
        %3095 = vmatpush2.xpose.msra.mxu0 0.0
        %3096 = vmatprep.subr.mxu0 0.0
        %3097 = vmatpush2.xpose.msra.mxu0 0.0
        %3098 = vmatprep.subr.mxu0 0.0
        %3099 = vmatpush2.xpose.msra.mxu0 0.0
        %3100 = vmatprep.subr.mxu0 0.0
        %3101 = vmatpush2.xpose.msra.mxu0 0.0
        %3102 = vmatprep.subr.mxu0 0.0
        %3103 = vmatpush2.xpose.msra.mxu0 0.0
        %3104 = vmatprep.subr.mxu0 0.0
        %3105 = vmatpush2.xpose.msra.mxu0 0.0
        %3106 = vmatprep.mubr.f32.mxu0 0.0
        %3107 = vmatmul.mubr.f32.gmra.mxu0 %v3038
        %v3108 = vpop.f32.mrf.mxu0
        %v3109 = vadd.f32 0.0, %v3108
        %v3110 = vpop.f32.mrf.mxu0
        %3111 = vdwg.mxu0
        %v3112 = vsel %vm1790, %v3016, 0
        %v3114 = vsel %vm1790, %v3023, 0
        %3116 = vmatprep.subr.mxu0 0.0
        %3117 = vmatpush1.xpose.msra.mxu0 0.0
        %3118 = vmatprep.subr.mxu0 0.0
        %3119 = vmatpush1.xpose.msra.mxu0 0.0
        %3120 = vmatprep.subr.mxu0 0.0
        %3121 = vmatpush1.xpose.msra.mxu0 0.0
        %3122 = vmatprep.subr.mxu0 0.0
        %3123 = vmatpush1.xpose.msra.mxu0 0.0
        %3124 = vmatprep.subr.mxu0 0.0
        %3125 = vmatpush1.xpose.msra.mxu0 0.0
        %3126 = vmatprep.subr.mxu0 0.0
        %3127 = vmatpush1.xpose.msra.mxu0 0.0
        %3128 = vmatprep.subr.mxu0 0.0
        %3129 = vmatpush1.xpose.msra.mxu0 0.0
        %3130 = vmatprep.subr.mxu0 0.0
        %3131 = vmatpush1.xpose.msra.mxu0 0.0
        %3132 = vmatprep.subr.mxu0 0.0
        %3133 = vmatpush1.xpose.msra.mxu0 0.0
        %3134 = vmatprep.subr.mxu0 0.0
        %3135 = vmatpush1.xpose.msra.mxu0 0.0
        %3136 = vmatprep.subr.mxu0 0.0
        %3137 = vmatpush1.xpose.msra.mxu0 0.0
        %3138 = vmatprep.subr.mxu0 0.0
        %3139 = vmatpush1.xpose.msra.mxu0 0.0
        %3140 = vmatprep.subr.mxu0 0.0
        %3141 = vmatpush1.xpose.msra.mxu0 0.0
        %3142 = vmatprep.subr.mxu0 0.0
        %3143 = vmatpush1.xpose.msra.mxu0 0.0
        %3144 = vmatprep.subr.mxu0 0.0
        %3145 = vmatpush1.xpose.msra.mxu0 0.0
        %3146 = vmatprep.subr.mxu0 0.0
        %3147 = vmatpush1.xpose.msra.mxu0 %v3114
        %3148 = vmatprep.subr.mxu0 0.0
        %3149 = vmatpush2.xpose.msra.mxu0 0.0
        %3150 = vmatprep.subr.mxu0 0.0
        %3151 = vmatpush2.xpose.msra.mxu0 0.0
        %3152 = vmatprep.subr.mxu0 0.0
        %3153 = vmatpush2.xpose.msra.mxu0 0.0
        %3154 = vmatprep.subr.mxu0 0.0
        %3155 = vmatpush2.xpose.msra.mxu0 0.0
        %3156 = vmatprep.subr.mxu0 0.0
        %3157 = vmatpush2.xpose.msra.mxu0 0.0
        %3158 = vmatprep.subr.mxu0 0.0
        %3159 = vmatpush2.xpose.msra.mxu0 0.0
        %3160 = vmatprep.subr.mxu0 0.0
        %3161 = vmatpush2.xpose.msra.mxu0 0.0
        %3162 = vmatprep.subr.mxu0 0.0
        %3163 = vmatpush2.xpose.msra.mxu0 0.0
        %3164 = vmatprep.subr.mxu0 0.0
        %3165 = vmatpush2.xpose.msra.mxu0 0.0
        %3166 = vmatprep.subr.mxu0 0.0
        %3167 = vmatpush2.xpose.msra.mxu0 0.0
        %3168 = vmatprep.subr.mxu0 0.0
        %3169 = vmatpush2.xpose.msra.mxu0 0.0
        %3170 = vmatprep.subr.mxu0 0.0
        %3171 = vmatpush2.xpose.msra.mxu0 0.0
        %3172 = vmatprep.subr.mxu0 0.0
        %3173 = vmatpush2.xpose.msra.mxu0 0.0
        %3174 = vmatprep.subr.mxu0 0.0
        %3175 = vmatpush2.xpose.msra.mxu0 0.0
        %3176 = vmatprep.subr.mxu0 0.0
        %3177 = vmatpush2.xpose.msra.mxu0 0.0
        %3178 = vmatprep.subr.mxu0 0.0
        %3179 = vmatpush2.xpose.msra.mxu0 0.0
        %3180 = vmatprep.mubr.f32.mxu0 0.0
        %3181 = vmatmul.mubr.f32.gmra.mxu0 %v3112
        %v3182 = vpop.f32.mrf.mxu0
        %v3183 = vadd.f32 0.0, %v3182
        %v3184 = vpop.f32.mrf.mxu0
        %3185 = vdwg.mxu0
        %v3186 = vsel %vm1790, %v3018, 0
        %v3188 = vsel %vm1790, %v3025, 0
        %3190 = vmatprep.subr.mxu0 0.0
        %3191 = vmatpush1.xpose.msra.mxu0 0.0
        %3192 = vmatprep.subr.mxu0 0.0
        %3193 = vmatpush1.xpose.msra.mxu0 0.0
        %3194 = vmatprep.subr.mxu0 0.0
        %3195 = vmatpush1.xpose.msra.mxu0 0.0
        %3196 = vmatprep.subr.mxu0 0.0
        %3197 = vmatpush1.xpose.msra.mxu0 0.0
        %3198 = vmatprep.subr.mxu0 0.0
        %3199 = vmatpush1.xpose.msra.mxu0 0.0
        %3200 = vmatprep.subr.mxu0 0.0
        %3201 = vmatpush1.xpose.msra.mxu0 0.0
        %3202 = vmatprep.subr.mxu0 0.0
        %3203 = vmatpush1.xpose.msra.mxu0 0.0
        %3204 = vmatprep.subr.mxu0 0.0
        %3205 = vmatpush1.xpose.msra.mxu0 0.0
        %3206 = vmatprep.subr.mxu0 0.0
        %3207 = vmatpush1.xpose.msra.mxu0 0.0
        %3208 = vmatprep.subr.mxu0 0.0
        %3209 = vmatpush1.xpose.msra.mxu0 0.0
        %3210 = vmatprep.subr.mxu0 0.0
        %3211 = vmatpush1.xpose.msra.mxu0 0.0
        %3212 = vmatprep.subr.mxu0 0.0
        %3213 = vmatpush1.xpose.msra.mxu0 0.0
        %3214 = vmatprep.subr.mxu0 0.0
        %3215 = vmatpush1.xpose.msra.mxu0 0.0
        %3216 = vmatprep.subr.mxu0 0.0
        %3217 = vmatpush1.xpose.msra.mxu0 0.0
        %3218 = vmatprep.subr.mxu0 0.0
        %3219 = vmatpush1.xpose.msra.mxu0 0.0
        %3220 = vmatprep.subr.mxu0 0.0
        %3221 = vmatpush1.xpose.msra.mxu0 %v3188
        %3222 = vmatprep.subr.mxu0 0.0
        %3223 = vmatpush2.xpose.msra.mxu0 0.0
        %3224 = vmatprep.subr.mxu0 0.0
        %3225 = vmatpush2.xpose.msra.mxu0 0.0
        %3226 = vmatprep.subr.mxu0 0.0
        %3227 = vmatpush2.xpose.msra.mxu0 0.0
        %3228 = vmatprep.subr.mxu0 0.0
        %3229 = vmatpush2.xpose.msra.mxu0 0.0
        %3230 = vmatprep.subr.mxu0 0.0
        %3231 = vmatpush2.xpose.msra.mxu0 0.0
        %3232 = vmatprep.subr.mxu0 0.0
        %3233 = vmatpush2.xpose.msra.mxu0 0.0
        %3234 = vmatprep.subr.mxu0 0.0
        %3235 = vmatpush2.xpose.msra.mxu0 0.0
        %3236 = vmatprep.subr.mxu0 0.0
        %3237 = vmatpush2.xpose.msra.mxu0 0.0
        %3238 = vmatprep.subr.mxu0 0.0
        %3239 = vmatpush2.xpose.msra.mxu0 0.0
        %3240 = vmatprep.subr.mxu0 0.0
        %3241 = vmatpush2.xpose.msra.mxu0 0.0
        %3242 = vmatprep.subr.mxu0 0.0
        %3243 = vmatpush2.xpose.msra.mxu0 0.0
        %3244 = vmatprep.subr.mxu0 0.0
        %3245 = vmatpush2.xpose.msra.mxu0 0.0
        %3246 = vmatprep.subr.mxu0 0.0
        %3247 = vmatpush2.xpose.msra.mxu0 0.0
        %3248 = vmatprep.subr.mxu0 0.0
        %3249 = vmatpush2.xpose.msra.mxu0 0.0
        %3250 = vmatprep.subr.mxu0 0.0
        %3251 = vmatpush2.xpose.msra.mxu0 0.0
        %3252 = vmatprep.subr.mxu0 0.0
        %3253 = vmatpush2.xpose.msra.mxu0 0.0
        %3254 = vmatprep.mubr.f32.mxu0 0.0
        %3255 = vmatmul.mubr.f32.gmra.mxu0 %v3186
        %v3256 = vpop.f32.mrf.mxu0
        %v3257 = vadd.f32 0.0, %v3256
        %v3258 = vpop.f32.mrf.mxu0
        %3259 = vdwg.mxu0
        %v3260 = vsel %vm1790, %v3020, 0
        %v3262 = vsel %vm1790, %v3027, 0
        %3264 = vmatprep.subr.mxu0 0.0
        %3265 = vmatpush1.xpose.msra.mxu0 0.0
        %3266 = vmatprep.subr.mxu0 0.0
        %3267 = vmatpush1.xpose.msra.mxu0 0.0
        %3268 = vmatprep.subr.mxu0 0.0
        %3269 = vmatpush1.xpose.msra.mxu0 0.0
        %3270 = vmatprep.subr.mxu0 0.0
        %3271 = vmatpush1.xpose.msra.mxu0 0.0
        %3272 = vmatprep.subr.mxu0 0.0
        %3273 = vmatpush1.xpose.msra.mxu0 0.0
        %3274 = vmatprep.subr.mxu0 0.0
        %3275 = vmatpush1.xpose.msra.mxu0 0.0
        %3276 = vmatprep.subr.mxu0 0.0
        %3277 = vmatpush1.xpose.msra.mxu0 0.0
        %3278 = vmatprep.subr.mxu0 0.0
        %3279 = vmatpush1.xpose.msra.mxu0 0.0
        %3280 = vmatprep.subr.mxu0 0.0
        %3281 = vmatpush1.xpose.msra.mxu0 0.0
        %3282 = vmatprep.subr.mxu0 0.0
        %3283 = vmatpush1.xpose.msra.mxu0 0.0
        %3284 = vmatprep.subr.mxu0 0.0
        %3285 = vmatpush1.xpose.msra.mxu0 0.0
        %3286 = vmatprep.subr.mxu0 0.0
        %3287 = vmatpush1.xpose.msra.mxu0 0.0
        %3288 = vmatprep.subr.mxu0 0.0
        %3289 = vmatpush1.xpose.msra.mxu0 0.0
        %3290 = vmatprep.subr.mxu0 0.0
        %3291 = vmatpush1.xpose.msra.mxu0 0.0
        %3292 = vmatprep.subr.mxu0 0.0
        %3293 = vmatpush1.xpose.msra.mxu0 0.0
        %3294 = vmatprep.subr.mxu0 0.0
        %3295 = vmatpush1.xpose.msra.mxu0 %v3262
        %3296 = vmatprep.subr.mxu0 0.0
        %3297 = vmatpush2.xpose.msra.mxu0 0.0
        %3298 = vmatprep.subr.mxu0 0.0
        %3299 = vmatpush2.xpose.msra.mxu0 0.0
        %3300 = vmatprep.subr.mxu0 0.0
        %3301 = vmatpush2.xpose.msra.mxu0 0.0
        %3302 = vmatprep.subr.mxu0 0.0
        %3303 = vmatpush2.xpose.msra.mxu0 0.0
        %3304 = vmatprep.subr.mxu0 0.0
        %3305 = vmatpush2.xpose.msra.mxu0 0.0
        %3306 = vmatprep.subr.mxu0 0.0
        %3307 = vmatpush2.xpose.msra.mxu0 0.0
        %3308 = vmatprep.subr.mxu0 0.0
        %3309 = vmatpush2.xpose.msra.mxu0 0.0
        %3310 = vmatprep.subr.mxu0 0.0
        %3311 = vmatpush2.xpose.msra.mxu0 0.0
        %3312 = vmatprep.subr.mxu0 0.0
        %3313 = vmatpush2.xpose.msra.mxu0 0.0
        %3314 = vmatprep.subr.mxu0 0.0
        %3315 = vmatpush2.xpose.msra.mxu0 0.0
        %3316 = vmatprep.subr.mxu0 0.0
        %3317 = vmatpush2.xpose.msra.mxu0 0.0
        %3318 = vmatprep.subr.mxu0 0.0
        %3319 = vmatpush2.xpose.msra.mxu0 0.0
        %3320 = vmatprep.subr.mxu0 0.0
        %3321 = vmatpush2.xpose.msra.mxu0 0.0
        %3322 = vmatprep.subr.mxu0 0.0
        %3323 = vmatpush2.xpose.msra.mxu0 0.0
        %3324 = vmatprep.subr.mxu0 0.0
        %3325 = vmatpush2.xpose.msra.mxu0 0.0
        %3326 = vmatprep.subr.mxu0 0.0
        %3327 = vmatpush2.xpose.msra.mxu0 0.0
        %3328 = vmatprep.mubr.f32.mxu0 0.0
        %3329 = vmatmul.mubr.f32.gmra.mxu0 %v3260
        %v3330 = vpop.f32.mrf.mxu0
        %v3331 = vadd.f32 0.0, %v3330
        %v3332 = vpop.f32.mrf.mxu0
        %3333 = vdwg.mxu0
        %v3334 = vmul.f32 %v3109, 0.35355338
        %v3335 = vmul.f32 %v3183, 0.35355338
        %v3336 = vmul.f32 %v3257, 0.35355338
        %v3337 = vmul.f32 %v3331, 0.35355338
        %v3338 = vsel %vm1790, %v3334, -inf
        %3339 = vmax.xlane.f32.xlu0 %v3338
        %v3340 = vpop.xlane.xlu0 %3339
        %v3341 = vsel %vm1790, %v3335, -inf
        %3342 = vmax.xlane.f32.xlu0 %v3341
        %v3343 = vpop.xlane.xlu0 %3342
        %v3344 = vsel %vm1790, %v3336, -inf
        %3345 = vmax.xlane.f32.xlu0 %v3344
        %v3346 = vpop.xlane.xlu0 %3345
        %v3347 = vsel %vm1790, %v3337, -inf
        %3348 = vmax.xlane.f32.xlu0 %v3347
        %v3349 = vpop.xlane.xlu0 %3348
        %v3350 = vsub.f32 %v3334, %v3340
        %v3351 = vsub.f32 %v3335, %v3343
        %v3352 = vsub.f32 %v3336, %v3346
        %v3353 = vsub.f32 %v3337, %v3349
        %v3354 = vmul.f32 %v3350, 1.442695
        %v3355 = vpow.pop %v3354
        %v3356 = vmul.f32 %v3351, 1.442695
        %v3357 = vpow.pop %v3356
        %v3358 = vmul.f32 %v3352, 1.442695
        %v3359 = vpow.pop %v3358
        %v3360 = vmul.f32 %v3353, 1.442695
        %v3361 = vpow.pop %v3360
        %v3362 = vsel %vm1790, %v3355, 0.0
        %3363 = vadd.xlane.f32.xlu0 %v3362
        %v3364 = vpop.xlane.xlu0 %3363
        %v3365 = vsel %vm1790, %v3357, 0.0
        %3366 = vadd.xlane.f32.xlu0 %v3365
        %v3367 = vpop.xlane.xlu0 %3366
        %v3368 = vsel %vm1790, %v3359, 0.0
        %3369 = vadd.xlane.f32.xlu0 %v3368
        %v3370 = vpop.xlane.xlu0 %3369
        %v3371 = vsel %vm1790, %v3361, 0.0
        %3372 = vadd.xlane.f32.xlu0 %v3371
        %v3373 = vpop.xlane.xlu0 %3372
        %v3374 = vrcp.pop %v3364
        %v3375 = vrcp.pop %v3367
        %v3376 = vrcp.pop %v3370
        %v3377 = vrcp.pop %v3373
        %v3378 = vmul.f32 %v3355, %v3374
        %v3379 = vmul.f32 %v3357, %v3375
        %v3380 = vmul.f32 %v3359, %v3376
        %v3381 = vmul.f32 %v3361, %v3377
        %s3382 = scalar_lea.vmem %s817, 32
        %3383 = vst.msk [vmem:[%s3382] sm:$0xff] %vm1790, %v3378
        %3384 = vst.msk [vmem:[%s3382 + $0x8] sm:$0xff] %vm1790, %v3379
        %3385 = vst.msk [vmem:[%s3382 + $0x10] sm:$0xff] %vm1790, %v3380
        %3386 = vst.msk [vmem:[%s3382 + $0x18] sm:$0xff] %vm1790, %v3381
        %v3388 = vsel %vm1790, %v3378, 0
        %3390 = vmatprep.subr.mxu0 0.0
        %3391 = vmatpush1.msra.mxu0 0.0
        %3392 = vmatprep.subr.mxu0 0.0
        %3393 = vmatpush1.msra.mxu0 0.0
        %3394 = vmatprep.subr.mxu0 0.0
        %3395 = vmatpush1.msra.mxu0 0.0
        %3396 = vmatprep.subr.mxu0 0.0
        %3397 = vmatpush1.msra.mxu0 0.0
        %3398 = vmatprep.subr.mxu0 0.0
        %3399 = vmatpush1.msra.mxu0 0.0
        %3400 = vmatprep.subr.mxu0 0.0
        %3401 = vmatpush1.msra.mxu0 0.0
        %3402 = vmatprep.subr.mxu0 0.0
        %3403 = vmatpush1.msra.mxu0 0.0
        %3404 = vmatprep.subr.mxu0 0.0
        %3405 = vmatpush1.msra.mxu0 0.0
        %3406 = vmatprep.subr.mxu0 0.0
        %3407 = vmatpush1.msra.mxu0 0.0
        %3408 = vmatprep.subr.mxu0 0.0
        %3409 = vmatpush1.msra.mxu0 0.0
        %3410 = vmatprep.subr.mxu0 0.0
        %3411 = vmatpush1.msra.mxu0 0.0
        %3412 = vmatprep.subr.mxu0 0.0
        %3413 = vmatpush1.msra.mxu0 0.0
        %3414 = vmatprep.subr.mxu0 0.0
        %3415 = vmatpush1.msra.mxu0 0.0
        %3416 = vmatprep.subr.mxu0 0.0
        %3417 = vmatpush1.msra.mxu0 0.0
        %3418 = vmatprep.subr.mxu0 0.0
        %3419 = vmatpush1.msra.mxu0 0.0
        %3420 = vmatprep.subr.mxu0 0.0
        %3421 = vmatpush1.msra.mxu0 %v3011
        %3422 = vmatprep.subr.mxu0 0.0
        %3423 = vmatpush2.msra.mxu0 0.0
        %3424 = vmatprep.subr.mxu0 0.0
        %3425 = vmatpush2.msra.mxu0 0.0
        %3426 = vmatprep.subr.mxu0 0.0
        %3427 = vmatpush2.msra.mxu0 0.0
        %3428 = vmatprep.subr.mxu0 0.0
        %3429 = vmatpush2.msra.mxu0 0.0
        %3430 = vmatprep.subr.mxu0 0.0
        %3431 = vmatpush2.msra.mxu0 0.0
        %3432 = vmatprep.subr.mxu0 0.0
        %3433 = vmatpush2.msra.mxu0 0.0
        %3434 = vmatprep.subr.mxu0 0.0
        %3435 = vmatpush2.msra.mxu0 0.0
        %3436 = vmatprep.subr.mxu0 0.0
        %3437 = vmatpush2.msra.mxu0 0.0
        %3438 = vmatprep.subr.mxu0 0.0
        %3439 = vmatpush2.msra.mxu0 0.0
        %3440 = vmatprep.subr.mxu0 0.0
        %3441 = vmatpush2.msra.mxu0 0.0
        %3442 = vmatprep.subr.mxu0 0.0
        %3443 = vmatpush2.msra.mxu0 0.0
        %3444 = vmatprep.subr.mxu0 0.0
        %3445 = vmatpush2.msra.mxu0 0.0
        %3446 = vmatprep.subr.mxu0 0.0
        %3447 = vmatpush2.msra.mxu0 0.0
        %3448 = vmatprep.subr.mxu0 0.0
        %3449 = vmatpush2.msra.mxu0 0.0
        %3450 = vmatprep.subr.mxu0 0.0
        %3451 = vmatpush2.msra.mxu0 0.0
        %3452 = vmatprep.subr.mxu0 0.0
        %3453 = vmatpush2.msra.mxu0 0.0
        %3454 = vmatprep.mubr.f32.mxu0 0.0
        %3455 = vmatmul.mubr.f32.gmra.mxu0 %v3388
        %v3456 = vpop.f32.mrf.mxu0
        %v3457 = vadd.f32 0.0, %v3456
        %v3458 = vpop.f32.mrf.mxu0
        %3459 = vdwg.mxu0
        %v3461 = vsel %vm1790, %v3379, 0
        %3463 = vmatprep.subr.mxu0 0.0
        %3464 = vmatpush1.msra.mxu0 0.0
        %3465 = vmatprep.subr.mxu0 0.0
        %3466 = vmatpush1.msra.mxu0 0.0
        %3467 = vmatprep.subr.mxu0 0.0
        %3468 = vmatpush1.msra.mxu0 0.0
        %3469 = vmatprep.subr.mxu0 0.0
        %3470 = vmatpush1.msra.mxu0 0.0
        %3471 = vmatprep.subr.mxu0 0.0
        %3472 = vmatpush1.msra.mxu0 0.0
        %3473 = vmatprep.subr.mxu0 0.0
        %3474 = vmatpush1.msra.mxu0 0.0
        %3475 = vmatprep.subr.mxu0 0.0
        %3476 = vmatpush1.msra.mxu0 0.0
        %3477 = vmatprep.subr.mxu0 0.0
        %3478 = vmatpush1.msra.mxu0 0.0
        %3479 = vmatprep.subr.mxu0 0.0
        %3480 = vmatpush1.msra.mxu0 0.0
        %3481 = vmatprep.subr.mxu0 0.0
        %3482 = vmatpush1.msra.mxu0 0.0
        %3483 = vmatprep.subr.mxu0 0.0
        %3484 = vmatpush1.msra.mxu0 0.0
        %3485 = vmatprep.subr.mxu0 0.0
        %3486 = vmatpush1.msra.mxu0 0.0
        %3487 = vmatprep.subr.mxu0 0.0
        %3488 = vmatpush1.msra.mxu0 0.0
        %3489 = vmatprep.subr.mxu0 0.0
        %3490 = vmatpush1.msra.mxu0 0.0
        %3491 = vmatprep.subr.mxu0 0.0
        %3492 = vmatpush1.msra.mxu0 0.0
        %3493 = vmatprep.subr.mxu0 0.0
        %3494 = vmatpush1.msra.mxu0 %v3030
        %3495 = vmatprep.subr.mxu0 0.0
        %3496 = vmatpush2.msra.mxu0 0.0
        %3497 = vmatprep.subr.mxu0 0.0
        %3498 = vmatpush2.msra.mxu0 0.0
        %3499 = vmatprep.subr.mxu0 0.0
        %3500 = vmatpush2.msra.mxu0 0.0
        %3501 = vmatprep.subr.mxu0 0.0
        %3502 = vmatpush2.msra.mxu0 0.0
        %3503 = vmatprep.subr.mxu0 0.0
        %3504 = vmatpush2.msra.mxu0 0.0
        %3505 = vmatprep.subr.mxu0 0.0
        %3506 = vmatpush2.msra.mxu0 0.0
        %3507 = vmatprep.subr.mxu0 0.0
        %3508 = vmatpush2.msra.mxu0 0.0
        %3509 = vmatprep.subr.mxu0 0.0
        %3510 = vmatpush2.msra.mxu0 0.0
        %3511 = vmatprep.subr.mxu0 0.0
        %3512 = vmatpush2.msra.mxu0 0.0
        %3513 = vmatprep.subr.mxu0 0.0
        %3514 = vmatpush2.msra.mxu0 0.0
        %3515 = vmatprep.subr.mxu0 0.0
        %3516 = vmatpush2.msra.mxu0 0.0
        %3517 = vmatprep.subr.mxu0 0.0
        %3518 = vmatpush2.msra.mxu0 0.0
        %3519 = vmatprep.subr.mxu0 0.0
        %3520 = vmatpush2.msra.mxu0 0.0
        %3521 = vmatprep.subr.mxu0 0.0
        %3522 = vmatpush2.msra.mxu0 0.0
        %3523 = vmatprep.subr.mxu0 0.0
        %3524 = vmatpush2.msra.mxu0 0.0
        %3525 = vmatprep.subr.mxu0 0.0
        %3526 = vmatpush2.msra.mxu0 0.0
        %3527 = vmatprep.mubr.f32.mxu0 0.0
        %3528 = vmatmul.mubr.f32.gmra.mxu0 %v3461
        %v3529 = vpop.f32.mrf.mxu0
        %v3530 = vadd.f32 0.0, %v3529
        %v3531 = vpop.f32.mrf.mxu0
        %3532 = vdwg.mxu0
        %v3534 = vsel %vm1790, %v3380, 0
        %3536 = vmatprep.subr.mxu0 0.0
        %3537 = vmatpush1.msra.mxu0 0.0
        %3538 = vmatprep.subr.mxu0 0.0
        %3539 = vmatpush1.msra.mxu0 0.0
        %3540 = vmatprep.subr.mxu0 0.0
        %3541 = vmatpush1.msra.mxu0 0.0
        %3542 = vmatprep.subr.mxu0 0.0
        %3543 = vmatpush1.msra.mxu0 0.0
        %3544 = vmatprep.subr.mxu0 0.0
        %3545 = vmatpush1.msra.mxu0 0.0
        %3546 = vmatprep.subr.mxu0 0.0
        %3547 = vmatpush1.msra.mxu0 0.0
        %3548 = vmatprep.subr.mxu0 0.0
        %3549 = vmatpush1.msra.mxu0 0.0
        %3550 = vmatprep.subr.mxu0 0.0
        %3551 = vmatpush1.msra.mxu0 0.0
        %3552 = vmatprep.subr.mxu0 0.0
        %3553 = vmatpush1.msra.mxu0 0.0
        %3554 = vmatprep.subr.mxu0 0.0
        %3555 = vmatpush1.msra.mxu0 0.0
        %3556 = vmatprep.subr.mxu0 0.0
        %3557 = vmatpush1.msra.mxu0 0.0
        %3558 = vmatprep.subr.mxu0 0.0
        %3559 = vmatpush1.msra.mxu0 0.0
        %3560 = vmatprep.subr.mxu0 0.0
        %3561 = vmatpush1.msra.mxu0 0.0
        %3562 = vmatprep.subr.mxu0 0.0
        %3563 = vmatpush1.msra.mxu0 0.0
        %3564 = vmatprep.subr.mxu0 0.0
        %3565 = vmatpush1.msra.mxu0 0.0
        %3566 = vmatprep.subr.mxu0 0.0
        %3567 = vmatpush1.msra.mxu0 %v3033
        %3568 = vmatprep.subr.mxu0 0.0
        %3569 = vmatpush2.msra.mxu0 0.0
        %3570 = vmatprep.subr.mxu0 0.0
        %3571 = vmatpush2.msra.mxu0 0.0
        %3572 = vmatprep.subr.mxu0 0.0
        %3573 = vmatpush2.msra.mxu0 0.0
        %3574 = vmatprep.subr.mxu0 0.0
        %3575 = vmatpush2.msra.mxu0 0.0
        %3576 = vmatprep.subr.mxu0 0.0
        %3577 = vmatpush2.msra.mxu0 0.0
        %3578 = vmatprep.subr.mxu0 0.0
        %3579 = vmatpush2.msra.mxu0 0.0
        %3580 = vmatprep.subr.mxu0 0.0
        %3581 = vmatpush2.msra.mxu0 0.0
        %3582 = vmatprep.subr.mxu0 0.0
        %3583 = vmatpush2.msra.mxu0 0.0
        %3584 = vmatprep.subr.mxu0 0.0
        %3585 = vmatpush2.msra.mxu0 0.0
        %3586 = vmatprep.subr.mxu0 0.0
        %3587 = vmatpush2.msra.mxu0 0.0
        %3588 = vmatprep.subr.mxu0 0.0
        %3589 = vmatpush2.msra.mxu0 0.0
        %3590 = vmatprep.subr.mxu0 0.0
        %3591 = vmatpush2.msra.mxu0 0.0
        %3592 = vmatprep.subr.mxu0 0.0
        %3593 = vmatpush2.msra.mxu0 0.0
        %3594 = vmatprep.subr.mxu0 0.0
        %3595 = vmatpush2.msra.mxu0 0.0
        %3596 = vmatprep.subr.mxu0 0.0
        %3597 = vmatpush2.msra.mxu0 0.0
        %3598 = vmatprep.subr.mxu0 0.0
        %3599 = vmatpush2.msra.mxu0 0.0
        %3600 = vmatprep.mubr.f32.mxu0 0.0
        %3601 = vmatmul.mubr.f32.gmra.mxu0 %v3534
        %v3602 = vpop.f32.mrf.mxu0
        %v3603 = vadd.f32 0.0, %v3602
        %v3604 = vpop.f32.mrf.mxu0
        %3605 = vdwg.mxu0
        %v3607 = vsel %vm1790, %v3381, 0
        %3609 = vmatprep.subr.mxu0 0.0
        %3610 = vmatpush1.msra.mxu0 0.0
        %3611 = vmatprep.subr.mxu0 0.0
        %3612 = vmatpush1.msra.mxu0 0.0
        %3613 = vmatprep.subr.mxu0 0.0
        %3614 = vmatpush1.msra.mxu0 0.0
        %3615 = vmatprep.subr.mxu0 0.0
        %3616 = vmatpush1.msra.mxu0 0.0
        %3617 = vmatprep.subr.mxu0 0.0
        %3618 = vmatpush1.msra.mxu0 0.0
        %3619 = vmatprep.subr.mxu0 0.0
        %3620 = vmatpush1.msra.mxu0 0.0
        %3621 = vmatprep.subr.mxu0 0.0
        %3622 = vmatpush1.msra.mxu0 0.0
        %3623 = vmatprep.subr.mxu0 0.0
        %3624 = vmatpush1.msra.mxu0 0.0
        %3625 = vmatprep.subr.mxu0 0.0
        %3626 = vmatpush1.msra.mxu0 0.0
        %3627 = vmatprep.subr.mxu0 0.0
        %3628 = vmatpush1.msra.mxu0 0.0
        %3629 = vmatprep.subr.mxu0 0.0
        %3630 = vmatpush1.msra.mxu0 0.0
        %3631 = vmatprep.subr.mxu0 0.0
        %3632 = vmatpush1.msra.mxu0 0.0
        %3633 = vmatprep.subr.mxu0 0.0
        %3634 = vmatpush1.msra.mxu0 0.0
        %3635 = vmatprep.subr.mxu0 0.0
        %3636 = vmatpush1.msra.mxu0 0.0
        %3637 = vmatprep.subr.mxu0 0.0
        %3638 = vmatpush1.msra.mxu0 0.0
        %3639 = vmatprep.subr.mxu0 0.0
        %3640 = vmatpush1.msra.mxu0 %v3036
        %3641 = vmatprep.subr.mxu0 0.0
        %3642 = vmatpush2.msra.mxu0 0.0
        %3643 = vmatprep.subr.mxu0 0.0
        %3644 = vmatpush2.msra.mxu0 0.0
        %3645 = vmatprep.subr.mxu0 0.0
        %3646 = vmatpush2.msra.mxu0 0.0
        %3647 = vmatprep.subr.mxu0 0.0
        %3648 = vmatpush2.msra.mxu0 0.0
        %3649 = vmatprep.subr.mxu0 0.0
        %3650 = vmatpush2.msra.mxu0 0.0
        %3651 = vmatprep.subr.mxu0 0.0
        %3652 = vmatpush2.msra.mxu0 0.0
        %3653 = vmatprep.subr.mxu0 0.0
        %3654 = vmatpush2.msra.mxu0 0.0
        %3655 = vmatprep.subr.mxu0 0.0
        %3656 = vmatpush2.msra.mxu0 0.0
        %3657 = vmatprep.subr.mxu0 0.0
        %3658 = vmatpush2.msra.mxu0 0.0
        %3659 = vmatprep.subr.mxu0 0.0
        %3660 = vmatpush2.msra.mxu0 0.0
        %3661 = vmatprep.subr.mxu0 0.0
        %3662 = vmatpush2.msra.mxu0 0.0
        %3663 = vmatprep.subr.mxu0 0.0
        %3664 = vmatpush2.msra.mxu0 0.0
        %3665 = vmatprep.subr.mxu0 0.0
        %3666 = vmatpush2.msra.mxu0 0.0
        %3667 = vmatprep.subr.mxu0 0.0
        %3668 = vmatpush2.msra.mxu0 0.0
        %3669 = vmatprep.subr.mxu0 0.0
        %3670 = vmatpush2.msra.mxu0 0.0
        %3671 = vmatprep.subr.mxu0 0.0
        %3672 = vmatpush2.msra.mxu0 0.0
        %3673 = vmatprep.mubr.f32.mxu0 0.0
        %3674 = vmatmul.mubr.f32.gmra.mxu0 %v3607
        %v3675 = vpop.f32.mrf.mxu0
        %v3676 = vadd.f32 0.0, %v3675
        %v3677 = vpop.f32.mrf.mxu0
        %3678 = vdwg.mxu0
        %3680 = vrot.lane.b32.xlu0 %v3530, 8
        %v3681 = vpop.permute.xlu0 %3680
        %3684 = vrot.lane.b32.xlu0 %v3603, 16
        %v3685 = vpop.permute.xlu0 %3684
        %3688 = vrot.lane.b32.xlu0 %v3676, 24
        %v3689 = vpop.permute.xlu0 %3688
        %v3691 = vsel %vm1790, %v3457, %v3681
        %v3692 = vsel %vm2444, %v3691, %v3685
        %v3693 = vsel %vm2446, %v3692, %v3689
        %s3694 = scalar_lea.vmem [#allocation5], 32
        %v3695 = vld [vmem:[%s3694] sm:$0xff]
        %v3696 = vld [vmem:[%s3694 + $0x8] sm:$0xff]
        %v3697 = vld [vmem:[%s3694 + $0x10] sm:$0xff]
        %v3698 = vld [vmem:[%s3694 + $0x18] sm:$0xff]
        %s3699 = scalar_lea.vmem %s9, 1
        %v3700 = vld [vmem:[%s3699] sm:$0x1]
        %v3702 = vlaneseq
        %v3703 = vshrl.u32 %v3702, 7
        %v3704 = vsub.s32 0, %v3703
        %v3705 = vrot.slane %v3700, %v3704
        %v3708 = vsel %vm941, %v3693, 0
        %3710 = vmatprep.subr.mxu0 0.0
        %3711 = vmatpush1.msra.mxu0 0.0
        %3712 = vmatprep.subr.mxu0 0.0
        %3713 = vmatpush1.msra.mxu0 0.0
        %3714 = vmatprep.subr.mxu0 0.0
        %3715 = vmatpush1.msra.mxu0 0.0
        %3716 = vmatprep.subr.mxu0 0.0
        %3717 = vmatpush1.msra.mxu0 0.0
        %3718 = vmatprep.subr.mxu0 0.0
        %3719 = vmatpush1.msra.mxu0 0.0
        %3720 = vmatprep.subr.mxu0 0.0
        %3721 = vmatpush1.msra.mxu0 0.0
        %3722 = vmatprep.subr.mxu0 0.0
        %3723 = vmatpush1.msra.mxu0 0.0
        %3724 = vmatprep.subr.mxu0 0.0
        %3725 = vmatpush1.msra.mxu0 0.0
        %3726 = vmatprep.subr.mxu0 0.0
        %3727 = vmatpush1.msra.mxu0 0.0
        %3728 = vmatprep.subr.mxu0 0.0
        %3729 = vmatpush1.msra.mxu0 0.0
        %3730 = vmatprep.subr.mxu0 0.0
        %3731 = vmatpush1.msra.mxu0 0.0
        %3732 = vmatprep.subr.mxu0 0.0
        %3733 = vmatpush1.msra.mxu0 0.0
        %3734 = vmatprep.subr.mxu0 0.0
        %3735 = vmatpush1.msra.mxu0 %v3698
        %3736 = vmatprep.subr.mxu0 0.0
        %3737 = vmatpush1.msra.mxu0 %v3697
        %3738 = vmatprep.subr.mxu0 0.0
        %3739 = vmatpush1.msra.mxu0 %v3696
        %3740 = vmatprep.subr.mxu0 0.0
        %3741 = vmatpush1.msra.mxu0 %v3695
        %3742 = vmatprep.subr.mxu0 0.0
        %3743 = vmatpush2.msra.mxu0 0.0
        %3744 = vmatprep.subr.mxu0 0.0
        %3745 = vmatpush2.msra.mxu0 0.0
        %3746 = vmatprep.subr.mxu0 0.0
        %3747 = vmatpush2.msra.mxu0 0.0
        %3748 = vmatprep.subr.mxu0 0.0
        %3749 = vmatpush2.msra.mxu0 0.0
        %3750 = vmatprep.subr.mxu0 0.0
        %3751 = vmatpush2.msra.mxu0 0.0
        %3752 = vmatprep.subr.mxu0 0.0
        %3753 = vmatpush2.msra.mxu0 0.0
        %3754 = vmatprep.subr.mxu0 0.0
        %3755 = vmatpush2.msra.mxu0 0.0
        %3756 = vmatprep.subr.mxu0 0.0
        %3757 = vmatpush2.msra.mxu0 0.0
        %3758 = vmatprep.subr.mxu0 0.0
        %3759 = vmatpush2.msra.mxu0 0.0
        %3760 = vmatprep.subr.mxu0 0.0
        %3761 = vmatpush2.msra.mxu0 0.0
        %3762 = vmatprep.subr.mxu0 0.0
        %3763 = vmatpush2.msra.mxu0 0.0
        %3764 = vmatprep.subr.mxu0 0.0
        %3765 = vmatpush2.msra.mxu0 0.0
        %3766 = vmatprep.subr.mxu0 0.0
        %3767 = vmatpush2.msra.mxu0 0.0
        %3768 = vmatprep.subr.mxu0 0.0
        %3769 = vmatpush2.msra.mxu0 0.0
        %3770 = vmatprep.subr.mxu0 0.0
        %3771 = vmatpush2.msra.mxu0 0.0
        %3772 = vmatprep.subr.mxu0 0.0
        %3773 = vmatpush2.msra.mxu0 0.0
        %3774 = vmatprep.mubr.f32.mxu0 0.0
        %3775 = vmatmul.mubr.f32.gmra.mxu0 %v3708
        %v3776 = vpop.f32.mrf.mxu0
        %v3777 = vadd.f32 %v3705, %v3776
        %v3778 = vpop.f32.mrf.mxu0
        %3779 = vdwg.mxu0
        %v3780 = vadd.f32 %v3777, %v2765
        %s3781 = scalar_lea.vmem %s10, 1
        %v3782 = vld [vmem:[%s3781] sm:$0x1]
        %s3783 = scalar_lea.vmem [#allocation7], 1
        %v3784 = vld [vmem:[%s3783] sm:$0x1]
        %v3785 = vsel %vm941, %v3780, 0.0
        %3786 = vadd.xlane.f32.xlu0 %v3785
        %v3787 = vpop.xlane.xlu0 %3786
        %v3788 = vmul.f32 %v3787, %v1163
        %v3789 = vsub.f32 %v3780, %v3788
        %v3790 = vmul.f32 %v3789, %v3789
        %v3791 = vsel %vm941, %v3790, 0.0
        %3792 = vadd.xlane.f32.xlu0 %v3791
        %v3793 = vpop.xlane.xlu0 %3792
        %v3794 = vmul.f32 %v3793, %v1163
        %v3795 = vadd.f32 %v3794, 1e-05
        %v3796 = vrsqrt.pop %v3795
        %v3797 = vmul.f32 %v3789, %v3796
        %v3799 = vlaneseq
        %v3800 = vshrl.u32 %v3799, 7
        %v3801 = vsub.s32 0, %v3800
        %v3802 = vrot.slane %v3782, %v3801
        %v3804 = vmul.f32 %v3797, %v3802
        %v3806 = vlaneseq
        %v3807 = vshrl.u32 %v3806, 7
        %v3808 = vsub.s32 0, %v3807
        %v3809 = vrot.slane %v3784, %v3808
        %v3811 = vadd.f32 %v3804, %v3809
        %s3812 = scalar_lea.vmem [#allocation8], 32
        %v3813 = vld [vmem:[%s3812] sm:$0xff]
        %v3814 = vld [vmem:[%s3812 + $0x8] sm:$0xff]
        %v3815 = vld [vmem:[%s3812 + $0x10] sm:$0xff]
        %v3816 = vld [vmem:[%s3812 + $0x18] sm:$0xff]
        %s3817 = scalar_lea.vmem [#allocation10], 1
        %v3818 = vld [vmem:[%s3817] sm:$0x1]
        %v3820 = vlaneseq
        %v3821 = vshrl.u32 %v3820, 7
        %v3822 = vsub.s32 0, %v3821
        %v3823 = vrot.slane %v3818, %v3822
        %v3826 = vsel %vm941, %v3811, 0
        %3828 = vmatprep.subr.mxu0 0.0
        %3829 = vmatpush1.msra.mxu0 0.0
        %3830 = vmatprep.subr.mxu0 0.0
        %3831 = vmatpush1.msra.mxu0 0.0
        %3832 = vmatprep.subr.mxu0 0.0
        %3833 = vmatpush1.msra.mxu0 0.0
        %3834 = vmatprep.subr.mxu0 0.0
        %3835 = vmatpush1.msra.mxu0 0.0
        %3836 = vmatprep.subr.mxu0 0.0
        %3837 = vmatpush1.msra.mxu0 0.0
        %3838 = vmatprep.subr.mxu0 0.0
        %3839 = vmatpush1.msra.mxu0 0.0
        %3840 = vmatprep.subr.mxu0 0.0
        %3841 = vmatpush1.msra.mxu0 0.0
        %3842 = vmatprep.subr.mxu0 0.0
        %3843 = vmatpush1.msra.mxu0 0.0
        %3844 = vmatprep.subr.mxu0 0.0
        %3845 = vmatpush1.msra.mxu0 0.0
        %3846 = vmatprep.subr.mxu0 0.0
        %3847 = vmatpush1.msra.mxu0 0.0
        %3848 = vmatprep.subr.mxu0 0.0
        %3849 = vmatpush1.msra.mxu0 0.0
        %3850 = vmatprep.subr.mxu0 0.0
        %3851 = vmatpush1.msra.mxu0 0.0
        %3852 = vmatprep.subr.mxu0 0.0
        %3853 = vmatpush1.msra.mxu0 %v3816
        %3854 = vmatprep.subr.mxu0 0.0
        %3855 = vmatpush1.msra.mxu0 %v3815
        %3856 = vmatprep.subr.mxu0 0.0
        %3857 = vmatpush1.msra.mxu0 %v3814
        %3858 = vmatprep.subr.mxu0 0.0
        %3859 = vmatpush1.msra.mxu0 %v3813
        %3860 = vmatprep.subr.mxu0 0.0
        %3861 = vmatpush2.msra.mxu0 0.0
        %3862 = vmatprep.subr.mxu0 0.0
        %3863 = vmatpush2.msra.mxu0 0.0
        %3864 = vmatprep.subr.mxu0 0.0
        %3865 = vmatpush2.msra.mxu0 0.0
        %3866 = vmatprep.subr.mxu0 0.0
        %3867 = vmatpush2.msra.mxu0 0.0
        %3868 = vmatprep.subr.mxu0 0.0
        %3869 = vmatpush2.msra.mxu0 0.0
        %3870 = vmatprep.subr.mxu0 0.0
        %3871 = vmatpush2.msra.mxu0 0.0
        %3872 = vmatprep.subr.mxu0 0.0
        %3873 = vmatpush2.msra.mxu0 0.0
        %3874 = vmatprep.subr.mxu0 0.0
        %3875 = vmatpush2.msra.mxu0 0.0
        %3876 = vmatprep.subr.mxu0 0.0
        %3877 = vmatpush2.msra.mxu0 0.0
        %3878 = vmatprep.subr.mxu0 0.0
        %3879 = vmatpush2.msra.mxu0 0.0
        %3880 = vmatprep.subr.mxu0 0.0
        %3881 = vmatpush2.msra.mxu0 0.0
        %3882 = vmatprep.subr.mxu0 0.0
        %3883 = vmatpush2.msra.mxu0 0.0
        %3884 = vmatprep.subr.mxu0 0.0
        %3885 = vmatpush2.msra.mxu0 0.0
        %3886 = vmatprep.subr.mxu0 0.0
        %3887 = vmatpush2.msra.mxu0 0.0
        %3888 = vmatprep.subr.mxu0 0.0
        %3889 = vmatpush2.msra.mxu0 0.0
        %3890 = vmatprep.subr.mxu0 0.0
        %3891 = vmatpush2.msra.mxu0 0.0
        %3892 = vmatprep.mubr.f32.mxu0 0.0
        %3893 = vmatmul.mubr.f32.gmra.mxu0 %v3826
        %v3894 = vpop.f32.mrf.mxu0
        %v3895 = vadd.f32 %v3823, %v3894
        %v3896 = vpop.f32.mrf.mxu0
        %3897 = vdwg.mxu0
        %v3898 = vmax.f32 %v3895, 0.0
        %s3899 = scalar_lea.vmem %s14, 64
        %v3900 = vld [vmem:[%s3899] sm:$0xff]
        %v3901 = vld [vmem:[%s3899 + $0x8] sm:$0xff]
        %v3902 = vld [vmem:[%s3899 + $0x10] sm:$0xff]
        %v3903 = vld [vmem:[%s3899 + $0x18] sm:$0xff]
        %v3904 = vld [vmem:[%s3899 + $0x20] sm:$0xff]
        %v3905 = vld [vmem:[%s3899 + $0x28] sm:$0xff]
        %v3906 = vld [vmem:[%s3899 + $0x30] sm:$0xff]
        %v3907 = vld [vmem:[%s3899 + $0x38] sm:$0xff]
        %s3908 = scalar_lea.vmem [#allocation11], 1
        %v3909 = vld [vmem:[%s3908] sm:$0x1]
        %v3911 = vlaneseq
        %v3912 = vshrl.u32 %v3911, 7
        %v3913 = vsub.s32 0, %v3912
        %v3914 = vrot.slane %v3909, %v3913
        %v3917 = vsel %vm2662, %v3898, 0
        %3919 = vmatprep.subr.mxu0 0.0
        %3920 = vmatpush1.msra.mxu0 0.0
        %3921 = vmatprep.subr.mxu0 0.0
        %3922 = vmatpush1.msra.mxu0 0.0
        %3923 = vmatprep.subr.mxu0 0.0
        %3924 = vmatpush1.msra.mxu0 0.0
        %3925 = vmatprep.subr.mxu0 0.0
        %3926 = vmatpush1.msra.mxu0 0.0
        %3927 = vmatprep.subr.mxu0 0.0
        %3928 = vmatpush1.msra.mxu0 0.0
        %3929 = vmatprep.subr.mxu0 0.0
        %3930 = vmatpush1.msra.mxu0 0.0
        %3931 = vmatprep.subr.mxu0 0.0
        %3932 = vmatpush1.msra.mxu0 0.0
        %3933 = vmatprep.subr.mxu0 0.0
        %3934 = vmatpush1.msra.mxu0 0.0
        %3935 = vmatprep.subr.mxu0 0.0
        %3936 = vmatpush1.msra.mxu0 %v3907
        %3937 = vmatprep.subr.mxu0 0.0
        %3938 = vmatpush1.msra.mxu0 %v3906
        %3939 = vmatprep.subr.mxu0 0.0
        %3940 = vmatpush1.msra.mxu0 %v3905
        %3941 = vmatprep.subr.mxu0 0.0
        %3942 = vmatpush1.msra.mxu0 %v3904
        %3943 = vmatprep.subr.mxu0 0.0
        %3944 = vmatpush1.msra.mxu0 %v3903
        %3945 = vmatprep.subr.mxu0 0.0
        %3946 = vmatpush1.msra.mxu0 %v3902
        %3947 = vmatprep.subr.mxu0 0.0
        %3948 = vmatpush1.msra.mxu0 %v3901
        %3949 = vmatprep.subr.mxu0 0.0
        %3950 = vmatpush1.msra.mxu0 %v3900
        %3951 = vmatprep.subr.mxu0 0.0
        %3952 = vmatpush2.msra.mxu0 0.0
        %3953 = vmatprep.subr.mxu0 0.0
        %3954 = vmatpush2.msra.mxu0 0.0
        %3955 = vmatprep.subr.mxu0 0.0
        %3956 = vmatpush2.msra.mxu0 0.0
        %3957 = vmatprep.subr.mxu0 0.0
        %3958 = vmatpush2.msra.mxu0 0.0
        %3959 = vmatprep.subr.mxu0 0.0
        %3960 = vmatpush2.msra.mxu0 0.0
        %3961 = vmatprep.subr.mxu0 0.0
        %3962 = vmatpush2.msra.mxu0 0.0
        %3963 = vmatprep.subr.mxu0 0.0
        %3964 = vmatpush2.msra.mxu0 0.0
        %3965 = vmatprep.subr.mxu0 0.0
        %3966 = vmatpush2.msra.mxu0 0.0
        %3967 = vmatprep.subr.mxu0 0.0
        %3968 = vmatpush2.msra.mxu0 0.0
        %3969 = vmatprep.subr.mxu0 0.0
        %3970 = vmatpush2.msra.mxu0 0.0
        %3971 = vmatprep.subr.mxu0 0.0
        %3972 = vmatpush2.msra.mxu0 0.0
        %3973 = vmatprep.subr.mxu0 0.0
        %3974 = vmatpush2.msra.mxu0 0.0
        %3975 = vmatprep.subr.mxu0 0.0
        %3976 = vmatpush2.msra.mxu0 0.0
        %3977 = vmatprep.subr.mxu0 0.0
        %3978 = vmatpush2.msra.mxu0 0.0
        %3979 = vmatprep.subr.mxu0 0.0
        %3980 = vmatpush2.msra.mxu0 0.0
        %3981 = vmatprep.subr.mxu0 0.0
        %3982 = vmatpush2.msra.mxu0 0.0
        %3983 = vmatprep.mubr.f32.mxu0 0.0
        %3984 = vmatmul.mubr.f32.gmra.mxu0 %v3917
        %v3985 = vpop.f32.mrf.mxu0
        %v3986 = vadd.f32 %v3914, %v3985
        %v3987 = vpop.f32.mrf.mxu0
        %3988 = vdwg.mxu0
        %v3989 = vadd.f32 %v3986, %v3811
        %s3990 = scalar_lea.vmem [#allocation13], 1
        %v3991 = vld [vmem:[%s3990] sm:$0x1]
        %s3992 = scalar_lea.vmem [#allocation14], 1
        %v3993 = vld [vmem:[%s3992] sm:$0x1]
        %v3994 = vsel %vm941, %v3989, 0.0
        %3995 = vadd.xlane.f32.xlu0 %v3994
        %v3996 = vpop.xlane.xlu0 %3995
        %v3997 = vmul.f32 %v3996, %v1163
        %v3998 = vsub.f32 %v3989, %v3997
        %v3999 = vmul.f32 %v3998, %v3998
        %v4000 = vsel %vm941, %v3999, 0.0
        %4001 = vadd.xlane.f32.xlu0 %v4000
        %v4002 = vpop.xlane.xlu0 %4001
        %v4003 = vmul.f32 %v4002, %v1163
        %v4004 = vadd.f32 %v4003, 1e-05
        %v4005 = vrsqrt.pop %v4004
        %v4006 = vmul.f32 %v3998, %v4005
        %v4008 = vlaneseq
        %v4009 = vshrl.u32 %v4008, 7
        %v4010 = vsub.s32 0, %v4009
        %v4011 = vrot.slane %v3991, %v4010
        %v4013 = vmul.f32 %v4006, %v4011
        %v4015 = vlaneseq
        %v4016 = vshrl.u32 %v4015, 7
        %v4017 = vsub.s32 0, %v4016
        %v4018 = vrot.slane %v3993, %v4017
        %v4020 = vadd.f32 %v4013, %v4018
        %v4021 = vsel %vm941, %v4020, -inf
        %v4022 = vrot.slane %v4021, 4
        %v4023 = vmax.f32 %v4021, %v4022
        %v4024 = vrot.slane %v4023, 2
        %v4025 = vmax.f32 %v4023, %v4024
        %v4026 = vrot.slane %v4025, 1
        %v4027 = vmax.f32 %v4025, %v4026
        %v4028 = vld [vmem:[%s18] sm:$0xff]
        %v4029 = vld [vmem:[%s18 + $0x8] sm:$0xff]
        %v4030 = vld [vmem:[%s18 + $0x10] sm:$0xff]
        %v4031 = vld [vmem:[%s18 + $0x18] sm:$0xff]
        %v4032 = vld [vmem:[#allocation16] sm:$0x1]
        %v4034 = vsel %vm941, %v4027, 0
        %4036 = vmatprep.subr.mxu0 0.0
        %4037 = vmatpush1.msra.mxu0 0.0
        %4038 = vmatprep.subr.mxu0 0.0
        %4039 = vmatpush1.msra.mxu0 0.0
        %4040 = vmatprep.subr.mxu0 0.0
        %4041 = vmatpush1.msra.mxu0 0.0
        %4042 = vmatprep.subr.mxu0 0.0
        %4043 = vmatpush1.msra.mxu0 0.0
        %4044 = vmatprep.subr.mxu0 0.0
        %4045 = vmatpush1.msra.mxu0 0.0
        %4046 = vmatprep.subr.mxu0 0.0
        %4047 = vmatpush1.msra.mxu0 0.0
        %4048 = vmatprep.subr.mxu0 0.0
        %4049 = vmatpush1.msra.mxu0 0.0
        %4050 = vmatprep.subr.mxu0 0.0
        %4051 = vmatpush1.msra.mxu0 0.0
        %4052 = vmatprep.subr.mxu0 0.0
        %4053 = vmatpush1.msra.mxu0 0.0
        %4054 = vmatprep.subr.mxu0 0.0
        %4055 = vmatpush1.msra.mxu0 0.0
        %4056 = vmatprep.subr.mxu0 0.0
        %4057 = vmatpush1.msra.mxu0 0.0
        %4058 = vmatprep.subr.mxu0 0.0
        %4059 = vmatpush1.msra.mxu0 0.0
        %4060 = vmatprep.subr.mxu0 0.0
        %4061 = vmatpush1.msra.mxu0 %v4031
        %4062 = vmatprep.subr.mxu0 0.0
        %4063 = vmatpush1.msra.mxu0 %v4030
        %4064 = vmatprep.subr.mxu0 0.0
        %4065 = vmatpush1.msra.mxu0 %v4029
        %4066 = vmatprep.subr.mxu0 0.0
        %4067 = vmatpush1.msra.mxu0 %v4028
        %4068 = vmatprep.subr.mxu0 0.0
        %4069 = vmatpush2.msra.mxu0 0.0
        %4070 = vmatprep.subr.mxu0 0.0
        %4071 = vmatpush2.msra.mxu0 0.0
        %4072 = vmatprep.subr.mxu0 0.0
        %4073 = vmatpush2.msra.mxu0 0.0
        %4074 = vmatprep.subr.mxu0 0.0
        %4075 = vmatpush2.msra.mxu0 0.0
        %4076 = vmatprep.subr.mxu0 0.0
        %4077 = vmatpush2.msra.mxu0 0.0
        %4078 = vmatprep.subr.mxu0 0.0
        %4079 = vmatpush2.msra.mxu0 0.0
        %4080 = vmatprep.subr.mxu0 0.0
        %4081 = vmatpush2.msra.mxu0 0.0
        %4082 = vmatprep.subr.mxu0 0.0
        %4083 = vmatpush2.msra.mxu0 0.0
        %4084 = vmatprep.subr.mxu0 0.0
        %4085 = vmatpush2.msra.mxu0 0.0
        %4086 = vmatprep.subr.mxu0 0.0
        %4087 = vmatpush2.msra.mxu0 0.0
        %4088 = vmatprep.subr.mxu0 0.0
        %4089 = vmatpush2.msra.mxu0 0.0
        %4090 = vmatprep.subr.mxu0 0.0
        %4091 = vmatpush2.msra.mxu0 0.0
        %4092 = vmatprep.subr.mxu0 0.0
        %4093 = vmatpush2.msra.mxu0 0.0
        %4094 = vmatprep.subr.mxu0 0.0
        %4095 = vmatpush2.msra.mxu0 0.0
        %4096 = vmatprep.subr.mxu0 0.0
        %4097 = vmatpush2.msra.mxu0 0.0
        %4098 = vmatprep.subr.mxu0 0.0
        %4099 = vmatpush2.msra.mxu0 0.0
        %4100 = vmatprep.mubr.f32.mxu0 0.0
        %4101 = vmatmul.mubr.f32.gmra.mxu0 %v4034
        %v4102 = vpop.f32.mrf.mxu0
        %v4103 = vadd.f32 %v4032, %v4102
        %v4104 = vpop.f32.mrf.mxu0
        %4105 = vdwg.mxu0
        %vm4106 = vcmask 24576
        %v4107 = vsel %vm4106, %v4103, -inf
        %4108 = vmax.xlane.f32.xlu0 %v4107
        %v4109 = vpop.xlane.xlu0 %4108
        %v4110 = vsub.f32 %v4103, %v4109
        %v4111 = vmul.f32 %v4110, 1.442695
        %v4112 = vpow.pop %v4111
        %v4113 = vsel %vm4106, %v4112, 0.0
        %4114 = vadd.xlane.f32.xlu0 %v4113
        %v4115 = vpop.xlane.xlu0 %4114
        %v4116 = vlog2.pop %v4115
        %v4117 = vmul.f32 %v4116, 0.6931472
        %v4118 = vsub.f32 %v4110, %v4117
        %4119 = vst.msk [vmem:[%s800] sm:$0x1] %vm4106, %v4118
        %s4120 = sand.u32 %s481, 1
        %s4121 = scalar_lea.sflag [#allocation4], %s4120
        %s4122 = sand.u32 %s481, 1
        %s4123 = scalar_lea.vmem [#allocation17], %s4122
        %p4124 = scmp.lt.s32.totalorder %s43, 1
        %s4125 = scalar_select %p4124, %s43, 1
        %s4126 = smul.addr %s4125, 8
        %s4127 = smul.addr %s4126, 8
        %s4128 = scalar_lea.vmem %s21, %s4127
        // Predicated region
        $region137: #{transformer_baseline_forward.1} parent=99 // pred_check
          %p4129 = pneg %p491
        $region138: #{transformer_baseline_forward.1} parent=99 // pred_check_branch
          %4131 = sbr.rel (%p4129) target = $region140
        $region139: #{transformer_baseline_forward.1} parent=99 // pred_region
          %s4133 = ssub.s32 16, 16
          %4134 = vsyncadd %s4121, %s4133
          %s4135 = smul.addr %s43, 16
          %s4136 = scalar_lea.hbm %s20, %s4135
          %s4138 = sshll.u32 %s4123, 4
          %s4139 = int_to_ptr.vmem [resolvable:$true] %s4138
          %4141 = dma.vmem_to_hbm [thread:$0]  %s4139, 16, %s4136, %s4121
        $region140: #{transformer_baseline_forward.1} parent=99 // pred_fallthru
          _
        // Predicated region
        $region141: #{transformer_baseline_forward.1} parent=99 // pred_check
          %p4142 = pneg %p517
        $region142: #{transformer_baseline_forward.1} parent=99 // pred_check_branch
          %4144 = sbr.rel (%p4142) target = $region144
        $region143: #{transformer_baseline_forward.1} parent=99 // pred_region
          _
        $region144: #{transformer_baseline_forward.1} parent=99 // pred_fallthru
          _
      $region100: #{transformer_baseline_forward.1} parent=5 // pred_fallthru
        _
      %p4145 = scmp.le.s32.totalorder 2, %s38
      // Predicated region
      $region145: #{transformer_baseline_forward.1} parent=5 // pred_check
        %p4146 = pneg %p4145
      $region146: #{transformer_baseline_forward.1} parent=5 // pred_check_branch
        %4148 = sbr.rel (%p4146) target = $region148
      $region147: #{transformer_baseline_forward.1} parent=5 // pred_region
        %s4149 = ssub.s32 %s38, 2
        // Predicated region
        $region149: #{transformer_baseline_forward.1} parent=147 // pred_check
          %p4150 = pneg %p497
        $region150: #{transformer_baseline_forward.1} parent=147 // pred_check_branch
          %4152 = sbr.rel (%p4150) target = $region152
        $region151: #{transformer_baseline_forward.1} parent=147 // pred_region
          %s4153 = sand.u32 %s482, 1
          %s4154 = scalar_lea.sflag [#allocation4], %s4153
          %s4155 = sand.u32 %s482, 1
          %s4156 = scalar_lea.vmem [#allocation17], %s4155
          %4157 = dma.done %s4154, 16
        $region152: #{transformer_baseline_forward.1} parent=147 // pred_fallthru
          _
        // Predicated region
        $region153: #{transformer_baseline_forward.1} parent=147 // pred_check
          %p4158 = pneg %p523
        $region154: #{transformer_baseline_forward.1} parent=147 // pred_check_branch
          %4160 = sbr.rel (%p4158) target = $region156
        $region155: #{transformer_baseline_forward.1} parent=147 // pred_region
          %p4161 = scmp.lt.s32.totalorder %s44, 1
          %s4162 = scalar_select %p4161, %s44, 1
          %s4163 = smul.addr %s4162, 8
          %s4164 = smul.addr %s4163, 8
          %s4165 = scalar_lea.vmem %s21, %s4164
        $region156: #{transformer_baseline_forward.1} parent=147 // pred_fallthru
          _
      $region148: #{transformer_baseline_forward.1} parent=5 // pred_fallthru
        _
    $region6: #{transformer_baseline_forward.1} parent=1 // loop_footer
      %s42 = sadd.s32 1, %s38
    $region7: #{transformer_baseline_forward.1} parent=1 // loop_footer_branch
      %37 = sbr.rel target = $region3
    $region8: #{transformer_baseline_forward.1} parent=1 // loop_exit
      _
    %4166 = vsyncpa [#allocation3], 1
    %s4167 = scalar_lea.sflag [#allocation3], 1
    %4168 = vsyncpa %s4167, 1
    %4169 = vsyncpa [#allocation6], 1
    %4170 = vsyncpa [#allocation9], 1
    %4171 = vsyncpa [#allocation12], 1
    %4172 = vsyncpa [#allocation15], 1
    %4173 = vsyncpa [#allocation4], 1
    %s4174 = scalar_lea.sflag [#allocation4], 1
    %4175 = vsyncpa %s4174, 1

</llo_original>
